<compile_context>
chip_gen: v6e
topology: v6e:2x2x1
jax: 0.10.0
libtpu: 0.0.40
codegen_flags: <defaults>
</compile_context>

<pallas_src>
import jax
import jax.numpy as jnp
from jax.experimental import pallas as pl
from jax.experimental.pallas import tpu as pltpu

# ---------------- synthetic config ----------------
N_FREQS        = 2
N_BANDS        = 2 * N_FREQS + 1                 # identity + (sin, cos) per freq = 5
PARAM_DIMS     = 6                               # RayParam n_dims (Pluecker)
EMB_HIDDEN     = 64
EMB_OUT        = 32                              # embedding_net.out_channels
BASIS_CHANNELS = 8
NUM_BASIS      = 4
COEFF_PE_IN    = EMB_OUT - BASIS_CHANNELS        # 24
MLP_HIDDEN     = 64
FUSED_HIDDEN   = 2 * MLP_HIDDEN                  # 128 = [coeff hidden | basis hidden]
COEFF_OUT      = (NUM_BASIS + 1) * 3             # 15
BASIS_OUT      = NUM_BASIS * 3                   # 12
FUSED_OUT      = 32                              # padded: coeffs 0:15 | pad | basis 16:28 | pad
BASIS_ROW_LO   = 16                              # 8-aligned sublane offset for basis rows

EMB_PE_OUT     = PARAM_DIMS * N_BANDS            # 30
COEFF_PE_OUT   = COEFF_PE_IN * N_BANDS           # 120
BASIS_PE_OUT   = BASIS_CHANNELS * N_BANDS        # 40

BAND_PAD       = 8                               # param band rows padded 6 -> 8
CONST_PAD      = 8                               # appended constant block (ones row + zeros)

# packed (stacked-K, bias-folded) weight shapes
WE0_K = N_BANDS * BAND_PAD                       # 40  (col 6 of band 0 carries be0)
WE1_K = EMB_HIDDEN + CONST_PAD                   # 72  (col 64 carries be1)
WF0_K = N_BANDS * EMB_OUT + CONST_PAD            # 168 (col 160 carries bf0)
WF1_K = FUSED_HIDDEN + CONST_PAD                 # 136 (col 128 carries bf1)


# ========================= Pallas kernel =========================

def basis_model_kernel(rays_ref,
                       we0_ref, we1_ref,          # embedding_net  (stacked-K, bias folded)
                       wf0_ref, wf1_ref,          # fused coeff|basis net (stacked-K, bias folded)
                       p3_ref,                    # (3,12) averaging matrix (bf16, 1/B folded)
                       out_ref):
    f32, bf16 = jnp.float32, jnp.bfloat16
    r = rays_ref[...]                                          # [6, tm] f32, feature-major
    tm = r.shape[1]

    ones_row = jnp.ones((1, tm), f32)
    zeros_row = jnp.zeros((1, tm), f32)
    # 8-row constant block: row 0 = 1 (bias carrier), rows 1:8 = 0
    const_blk = jnp.concatenate([jnp.ones((1, tm), bf16),
                                 jnp.zeros((CONST_PAD - 1, tm), bf16)], axis=0)

    # ---- RayParam (Pluecker): d_hat = d/|d|, m = o x d_hat (full-lane row ops) ----
    o0, o1, o2 = r[0:1, :], r[1:2, :], r[2:3, :]
    d0, d1, d2 = r[3:4, :], r[4:5, :], r[5:6, :]
    inv = jax.lax.rsqrt(d0 * d0 + d1 * d1 + d2 * d2 + 1e-8)
    dn0, dn1, dn2 = d0 * inv, d1 * inv, d2 * inv
    m0 = o1 * dn2 - o2 * dn1
    m1 = o2 * dn0 - o0 * dn2
    m2 = o0 * dn1 - o1 * dn0
    # band-0 block padded to 8 rows: rows 0:6 = param, row 6 = 1 (carries be0), row 7 = 0
    param_pad = jnp.concatenate(
        [dn0, dn1, dn2, m0, m1, m2, ones_row, zeros_row], axis=0)        # [8, tm] f32

    def pe_slab(x):
        # Stacked PE bands [x, sin x, cos x, sin 2x, cos 2x] along the sublane axis.
        # Double-angle identities keep sin2/cos2 on the VPU (halves EUP pushes).
        # Elementwise math in f32 for v5e portability; single bf16 cast at the
        # MXU operand.  (On v6e/v7x this block could run in bf16 for extra VPU/
        # EUP throughput.)
        s = jnp.sin(x)
        c = jnp.cos(x)
        s2 = 2.0 * (s * c)
        c2 = 1.0 - 2.0 * (s * s)
        return jnp.concatenate([x, s, c, s2, c2], axis=0).astype(bf16)

    # ---- embedding PE + embedding_net (2-layer MLP, ReLU hidden), biases folded ----
    feat0 = pe_slab(param_pad)                                           # [40, tm] bf16
    he = jnp.dot(we0_ref[...], feat0, preferred_element_type=f32)        # [64, tm] f32
    he = jnp.maximum(he, 0.0).astype(bf16)
    he = jnp.concatenate([he, const_blk], axis=0)                        # [72, tm] bf16
    emb = jnp.dot(we1_ref[...], he, preferred_element_type=f32)          # [32, tm] f32
    # emb rows 0:8 = basis channels, 8:32 = coeff channels (block weights encode the split)

    # ---- fused coeff/basis branch: single stacked-K matmul -> 128-row hidden ----
    feat1 = jnp.concatenate([pe_slab(emb), const_blk], axis=0)           # [168, tm] bf16
    hf = jnp.dot(wf0_ref[...], feat1, preferred_element_type=f32)        # [128, tm] f32
    hf = jnp.maximum(hf, 0.0).astype(bf16)
    hf = jnp.concatenate([hf, const_blk], axis=0)                        # [136, tm] bf16
    out2 = jnp.dot(wf1_ref[...], hf, preferred_element_type=f32)         # [32, tm] f32

    coeffs_main = out2[0:BASIS_OUT, :]                                   # [12, tm]
    base_color  = out2[BASIS_OUT:COEFF_OUT, :]                           # [3, tm]
    basis       = out2[BASIS_ROW_LO:BASIS_ROW_LO + BASIS_OUT, :]         # [12, tm]

    # (coeffs * basis).mean(1) as a tiny bf16-operand matmul on the MXU.
    prod  = (coeffs_main * basis).astype(bf16)                           # [12, tm]
    mean3 = jnp.dot(p3_ref[...], prod, preferred_element_type=f32)       # [3, tm]
    out_ref[...] = jax.nn.sigmoid(mean3 + base_color).astype(out_ref.dtype)


# ========================= weight init / packing =========================

def init_raw_params(key):
    """Raw (PyTorch-layout) weights in f32: 12 arrays (w/b per layer)."""
    shapes = [
        ("we0", (EMB_PE_OUT, EMB_HIDDEN)),   ("be0", (EMB_HIDDEN,)),
        ("we1", (EMB_HIDDEN, EMB_OUT)),      ("be1", (EMB_OUT,)),
        ("wc0", (COEFF_PE_OUT, MLP_HIDDEN)), ("bc0", (MLP_HIDDEN,)),
        ("wc1", (MLP_HIDDEN, COEFF_OUT)),    ("bc1", (COEFF_OUT,)),
        ("wb0", (BASIS_PE_OUT, MLP_HIDDEN)), ("bb0", (MLP_HIDDEN,)),
        ("wb1", (MLP_HIDDEN, BASIS_OUT)),    ("bb1", (BASIS_OUT,)),
    ]
    params = []
    keys = jax.random.split(key, len(shapes))
    for (name, shp), k in zip(shapes, keys):
        if name.startswith("w"):
            scale = (2.0 / (shp[0] + shp[1])) ** 0.5
            params.append(scale * jax.random.normal(k, shp, dtype=jnp.float32))
        else:
            params.append(0.01 * jax.random.normal(k, shp, dtype=jnp.float32))
    return tuple(params)


def pack_params(raw):
    """Reorganize raw weights into the stacked-K, block-fused, bias-folded,
    transposed bf16 form consumed by the kernel."""
    (we0, be0, we1, be1, wc0, bc0, wc1, bc1, wb0, bb0, wb1, bb1) = raw
    bf16 = jnp.bfloat16

    # embedding layer 1: bands stacked along K with 8-row padding per band;
    # column 6 of band 0 multiplies the constant-1 feature row -> carries be0.
    we0p = jnp.zeros((EMB_HIDDEN, WE0_K), jnp.float32)                   # (64, 40)
    we0_bands = we0.reshape(N_BANDS, PARAM_DIMS, EMB_HIDDEN)
    for k in range(N_BANDS):
        we0p = we0p.at[:, BAND_PAD * k: BAND_PAD * k + PARAM_DIMS].set(we0_bands[k].T)
    we0p = we0p.at[:, PARAM_DIMS].set(be0)

    # embedding layer 2: K = 64 hidden + 8 constant rows; column 64 carries be1.
    we1p = jnp.zeros((EMB_OUT, WE1_K), jnp.float32)                      # (32, 72)
    we1p = we1p.at[:, :EMB_HIDDEN].set(we1.T)
    we1p = we1p.at[:, EMB_HIDDEN].set(be1)

    # fused (coeff | basis) layer 1: K = 5*32 bands + 8 constant rows.
    #   emb rows 0:8 -> basis channels, 8:32 -> coeff channels
    #   hidden rows 0:64 -> coeff hidden, 64:128 -> basis hidden
    #   column 160 carries [bc0; bb0]
    wf0p = jnp.zeros((FUSED_HIDDEN, WF0_K), jnp.float32)                 # (128, 168)
    wc0_bands = wc0.reshape(N_BANDS, COEFF_PE_IN, MLP_HIDDEN)
    wb0_bands = wb0.reshape(N_BANDS, BASIS_CHANNELS, MLP_HIDDEN)
    for k in range(N_BANDS):
        col = EMB_OUT * k
        wf0p = wf0p.at[:MLP_HIDDEN, col + BASIS_CHANNELS: col + EMB_OUT].set(wc0_bands[k].T)
        wf0p = wf0p.at[MLP_HIDDEN:, col: col + BASIS_CHANNELS].set(wb0_bands[k].T)
    wf0p = wf0p.at[:MLP_HIDDEN, N_BANDS * EMB_OUT].set(bc0)
    wf0p = wf0p.at[MLP_HIDDEN:, N_BANDS * EMB_OUT].set(bb0)

    # fused layer 2: block-diagonal, padded to 32 output rows; K = 128 + 8;
    #   rows 0:12 coeffs_main, 12:15 base_color, 16:28 basis; column 128 carries biases.
    wf1p = jnp.zeros((FUSED_OUT, WF1_K), jnp.float32)                    # (32, 136)
    wf1p = wf1p.at[:COEFF_OUT, :MLP_HIDDEN].set(wc1.T)
    wf1p = wf1p.at[BASIS_ROW_LO:BASIS_ROW_LO + BASIS_OUT, MLP_HIDDEN:FUSED_HIDDEN].set(wb1.T)
    wf1p = wf1p.at[:COEFF_OUT, FUSED_HIDDEN].set(bc1)
    wf1p = wf1p.at[BASIS_ROW_LO:BASIS_ROW_LO + BASIS_OUT, FUSED_HIDDEN].set(bb1)

    # averaging matrix for (coeffs * basis).mean(1): out[j] = 1/B * sum_b prod[3b+j]
    p3 = jnp.zeros((3, NUM_BASIS * 3), jnp.float32)
    for b in range(NUM_BASIS):
        for j in range(3):
            p3 = p3.at[j, 3 * b + j].set(1.0 / NUM_BASIS)

    return (we0p.astype(bf16), we1p.astype(bf16),
            wf0p.astype(bf16), wf1p.astype(bf16), p3.astype(bf16))


# ========================= wrapper =========================

def _auto_tile(n_rows, max_tm=1024):
    """Pick a row tile (multiple of 128): as large as possible up to max_tm, but
    aim for >= 2 tiles so the 'parallel' grid axis can shard across both v7x
    TensorCores."""
    half = -(-n_rows // 2)
    tm = -(-half // 128) * 128
    return max(128, min(max_tm, tm))


def basis_model_forward(rays, packed, *, tm=None):
    """rays: (N, 6) f32 -> (N, 3) f32.  tm is the row tile (multiple of 128)."""
    N = rays.shape[0]
    if tm is None:
        tm = _auto_tile(N)
    assert tm % 128 == 0, "row tile must be a multiple of 128 lanes"
    n_tiles = -(-N // tm)
    N_pad = n_tiles * tm
    rays_p = rays if N_pad == N else jnp.pad(rays, ((0, N_pad - N), (0, 0)))
    rays_fm = rays_p.T                                   # (6, N_pad) feature-major
    # TODO(synk): accepting feature-major rays directly would drop the host-side
    # transpose/pad launches (minor latency win for small N).

    # Weights live whole-array in VMEM (no pipeline double-buffering).
    weight_specs = [pl.BlockSpec(memory_space=pltpu.MemorySpace.VMEM)] * len(packed)
    in_specs = [pl.BlockSpec((PARAM_DIMS, tm), lambda i: (0, i))] + weight_specs
    out_spec = pl.BlockSpec((3, tm), lambda i: (0, i))   # lane-dense output stores

    weight_bytes = sum(int(p.size) * p.dtype.itemsize for p in packed)
    macs_per_ray = (EMB_HIDDEN * WE0_K                   # embedding layer 1 (stacked-K)
                    + EMB_OUT * WE1_K                    # embedding layer 2
                    + FUSED_HIDDEN * WF0_K               # fused layer 1 (stacked-K)
                    + FUSED_OUT * WF1_K                  # fused layer 2
                    + 3 * NUM_BASIS * 3)                 # averaging matmul
    cost = pl.CostEstimate(
        flops=int(2 * N_pad * macs_per_ray),
        transcendentals=int(N_pad * (2 * (BAND_PAD + EMB_OUT) + 4)),  # sin/cos + rsqrt + sigmoid
        bytes_accessed=int(N_pad * (6 + 3) * 4 + weight_bytes),
    )

    out_fm = pl.pallas_call(
        basis_model_kernel,
        out_shape=jax.ShapeDtypeStruct((3, N_pad), jnp.float32),
        grid_spec=pltpu.PrefetchScalarGridSpec(
            num_scalar_prefetch=0,
            grid=(n_tiles,),
            in_specs=in_specs,
            out_specs=out_spec,
        ),
        compiler_params=pltpu.CompilerParams(
            dimension_semantics=("parallel",),           # shard row tiles across cores
            vmem_limit_bytes=32 * 1024 * 1024,           # actual usage ~few MB; safe on v5e/v6e/v7x
        ),
        cost_estimate=cost,
    )(rays_fm, *packed)

    return out_fm[:, :N].T                               # (N, 3)


# ========================= pure-JAX f32 reference =========================

def basis_model_reference(rays, raw):
    (we0, be0, we1, be1, wc0, bc0, wc1, bc1, wb0, bb0, wb1, bb1) = raw
    hi = jax.lax.Precision.HIGHEST
    o, d = rays[:, :3], rays[:, 3:6]
    inv = jax.lax.rsqrt(jnp.sum(d * d, axis=-1, keepdims=True) + 1e-8)
    dn = d * inv
    m = jnp.stack([o[:, 1] * dn[:, 2] - o[:, 2] * dn[:, 1],
                   o[:, 2] * dn[:, 0] - o[:, 0] * dn[:, 2],
                   o[:, 0] * dn[:, 1] - o[:, 1] * dn[:, 0]], axis=-1)
    param = jnp.concatenate([dn, m], axis=-1)

    def pe(x):
        feats = [x]
        for k in range(N_FREQS):
            f = float(2 ** k)
            feats += [jnp.sin(f * x), jnp.cos(f * x)]
        return jnp.concatenate(feats, axis=-1)

    h = jnp.maximum(jnp.dot(pe(param), we0, precision=hi) + be0, 0.0)
    emb = jnp.dot(h, we1, precision=hi) + be1
    basis_in, coeff_in = emb[:, :BASIS_CHANNELS], emb[:, BASIS_CHANNELS:]
    hc = jnp.maximum(jnp.dot(pe(coeff_in), wc0, precision=hi) + bc0, 0.0)
    coeffs = jnp.dot(hc, wc1, precision=hi) + bc1
    hb = jnp.maximum(jnp.dot(pe(basis_in), wb0, precision=hi) + bb0, 0.0)
    basis = jnp.dot(hb, wb1, precision=hi) + bb1
    base_color = coeffs[:, -3:]
    cm = coeffs[:, :-3].reshape(rays.shape[0], NUM_BASIS, 3)
    bs = basis.reshape(rays.shape[0], NUM_BASIS, 3)
    return jax.nn.sigmoid((cm * bs).mean(axis=1) + base_color)


# ========================= demo / self-check =========================

if __name__ == "__main__":
    key = jax.random.PRNGKey(0)
    k_rays, k_params = jax.random.split(key)

    N = 1000                       # not a tile multiple (exercises padding + multi-tile grid)
    rays = jax.random.normal(k_rays, (N, 6), dtype=jnp.float32)

    raw = init_raw_params(k_params)
    packed = pack_params(raw)

    out = basis_model_forward(rays, packed)   # auto tile: 512 -> 2 grid steps
    out = jax.block_until_ready(out)

    assert out.shape == (N, 3)
    assert bool(jnp.all(jnp.isfinite(out)))
    assert bool(jnp.all((out >= 0.0) & (out <= 1.0)))        # sigmoid range

    ref = basis_model_reference(rays, raw)
    max_err = float(jnp.max(jnp.abs(out - ref)))
    assert max_err < 5e-2, f"kernel vs f32 reference max abs err = {max_err}"

    print("KERNEL_OK")
</pallas_src>

<mosaic_0001>
module attributes {stable_mosaic.version = 11 : i64} {
  func.func @basis_model_kernel(%arg0: i32, %arg1: memref<6x512xf32, #tpu.memory_space<vmem>>, %arg2: memref<64x40xbf16, #tpu.memory_space<vmem>>, %arg3: memref<32x72xbf16, #tpu.memory_space<vmem>>, %arg4: memref<128x168xbf16, #tpu.memory_space<vmem>>, %arg5: memref<32x136xbf16, #tpu.memory_space<vmem>>, %arg6: memref<3x12xbf16, #tpu.memory_space<vmem>>, %arg7: memref<3x512xf32, #tpu.memory_space<vmem>>) attributes {dimension_semantics = [#tpu.dimension_semantics<parallel>], iteration_bounds = array<i64: 2>, scalar_prefetch = 0 : i64, scratch_operands = 0 : i64, tpu.core_type = #tpu.core_type<tc>, window_params = [{transform_indices = @transform_0, window_bounds = array<i64: 6, 512>}, {pipeline_mode = #tpu.pipeline_mode<synchronous>, transform_indices = @transform_1, window_bounds = array<i64: 64, 40>}, {pipeline_mode = #tpu.pipeline_mode<synchronous>, transform_indices = @transform_2, window_bounds = array<i64: 32, 72>}, {pipeline_mode = #tpu.pipeline_mode<synchronous>, transform_indices = @transform_3, window_bounds = array<i64: 128, 168>}, {pipeline_mode = #tpu.pipeline_mode<synchronous>, transform_indices = @transform_4, window_bounds = array<i64: 32, 136>}, {pipeline_mode = #tpu.pipeline_mode<synchronous>, transform_indices = @transform_5, window_bounds = array<i64: 3, 12>}, {transform_indices = @transform_6, window_bounds = array<i64: 3, 512>}]} {
    %c0 = arith.constant 0 : index
    %c0_0 = arith.constant 0 : index
    %0 = vector.load %arg1[%c0, %c0_0] : memref<6x512xf32, #tpu.memory_space<vmem>>, vector<6x512xf32>
    %cst = arith.constant 1.000000e+00 : f32
    %1 = vector.broadcast %cst : f32 to vector<1x512xf32>
    %cst_1 = arith.constant 0.000000e+00 : f32
    %2 = vector.broadcast %cst_1 : f32 to vector<1x512xf32>
    %cst_2 = arith.constant 1.000000e+00 : bf16
    %3 = vector.broadcast %cst_2 : bf16 to vector<1x512xbf16>
    %cst_3 = arith.constant 0.000000e+00 : bf16
    %4 = vector.broadcast %cst_3 : bf16 to vector<7x512xbf16>
    %5 = tpu.concatenate %3, %4 in 0 : vector<1x512xbf16>, vector<7x512xbf16> -> vector<8x512xbf16>
    %6 = vector.extract_strided_slice %0 {offsets = [0, 0], sizes = [1, 512], strides = [1, 1]} : vector<6x512xf32> to vector<1x512xf32>
    %7 = vector.extract_strided_slice %0 {offsets = [1, 0], sizes = [1, 512], strides = [1, 1]} : vector<6x512xf32> to vector<1x512xf32>
    %8 = vector.extract_strided_slice %0 {offsets = [2, 0], sizes = [1, 512], strides = [1, 1]} : vector<6x512xf32> to vector<1x512xf32>
    %9 = vector.extract_strided_slice %0 {offsets = [3, 0], sizes = [1, 512], strides = [1, 1]} : vector<6x512xf32> to vector<1x512xf32>
    %10 = vector.extract_strided_slice %0 {offsets = [4, 0], sizes = [1, 512], strides = [1, 1]} : vector<6x512xf32> to vector<1x512xf32>
    %11 = vector.extract_strided_slice %0 {offsets = [5, 0], sizes = [1, 512], strides = [1, 1]} : vector<6x512xf32> to vector<1x512xf32>
    %12 = arith.mulf %9, %9 : vector<1x512xf32>
    %13 = arith.mulf %10, %10 : vector<1x512xf32>
    %14 = arith.addf %12, %13 : vector<1x512xf32>
    %15 = arith.mulf %11, %11 : vector<1x512xf32>
    %16 = arith.addf %14, %15 : vector<1x512xf32>
    %cst_4 = arith.constant 9.99999993E-9 : f32
    %17 = vector.broadcast %cst_4 : f32 to vector<1x512xf32>
    %18 = arith.addf %16, %17 : vector<1x512xf32>
    %19 = math.rsqrt %18 : vector<1x512xf32>
    %20 = arith.mulf %9, %19 : vector<1x512xf32>
    %21 = arith.mulf %10, %19 : vector<1x512xf32>
    %22 = arith.mulf %11, %19 : vector<1x512xf32>
    %23 = arith.mulf %7, %22 : vector<1x512xf32>
    %24 = arith.mulf %8, %21 : vector<1x512xf32>
    %25 = arith.subf %23, %24 : vector<1x512xf32>
    %26 = arith.mulf %8, %20 : vector<1x512xf32>
    %27 = arith.mulf %6, %22 : vector<1x512xf32>
    %28 = arith.subf %26, %27 : vector<1x512xf32>
    %29 = arith.mulf %6, %21 : vector<1x512xf32>
    %30 = arith.mulf %7, %20 : vector<1x512xf32>
    %31 = arith.subf %29, %30 : vector<1x512xf32>
    %32 = tpu.concatenate %20, %21, %22, %25, %28, %31, %1, %2 in 0 : vector<1x512xf32>, vector<1x512xf32>, vector<1x512xf32>, vector<1x512xf32>, vector<1x512xf32>, vector<1x512xf32>, vector<1x512xf32>, vector<1x512xf32> -> vector<8x512xf32>
    %33 = math.sin %32 : vector<8x512xf32>
    %34 = math.cos %32 : vector<8x512xf32>
    %35 = arith.mulf %33, %34 : vector<8x512xf32>
    %cst_5 = arith.constant 2.000000e+00 : f32
    %36 = vector.broadcast %cst_5 : f32 to vector<8x512xf32>
    %37 = arith.mulf %36, %35 : vector<8x512xf32>
    %38 = arith.mulf %33, %33 : vector<8x512xf32>
    %cst_6 = arith.constant 2.000000e+00 : f32
    %39 = vector.broadcast %cst_6 : f32 to vector<8x512xf32>
    %40 = arith.mulf %39, %38 : vector<8x512xf32>
    %cst_7 = arith.constant 1.000000e+00 : f32
    %41 = vector.broadcast %cst_7 : f32 to vector<8x512xf32>
    %42 = arith.subf %41, %40 : vector<8x512xf32>
    %43 = tpu.concatenate %32, %33, %34, %37, %42 in 0 : vector<8x512xf32>, vector<8x512xf32>, vector<8x512xf32>, vector<8x512xf32>, vector<8x512xf32> -> vector<40x512xf32>
    %44 = arith.truncf %43 : vector<40x512xf32> to vector<40x512xbf16>
    %c0_8 = arith.constant 0 : index
    %c0_9 = arith.constant 0 : index
    %45 = vector.load %arg2[%c0_8, %c0_9] : memref<64x40xbf16, #tpu.memory_space<vmem>>, vector<64x40xbf16>
    %cst_10 = arith.constant dense<0.000000e+00> : vector<64x512xf32>
    %46 = tpu.matmul %45, %44, %cst_10 {dimension_numbers = #tpu.dot_dimension_numbers<[1], [0], [0], [1], [0, 0, 1, 1], [], []>} : vector<64x40xbf16>, vector<40x512xbf16>, vector<64x512xf32> -> vector<64x512xf32>
    %cst_11 = arith.constant 0.000000e+00 : f32
    %47 = vector.broadcast %cst_11 : f32 to vector<64x512xf32>
    %48 = arith.maximumf %46, %47 : vector<64x512xf32>
    %49 = arith.truncf %48 : vector<64x512xf32> to vector<64x512xbf16>
    %50 = tpu.concatenate %49, %5 in 0 : vector<64x512xbf16>, vector<8x512xbf16> -> vector<72x512xbf16>
    %c0_12 = arith.constant 0 : index
    %c0_13 = arith.constant 0 : index
    %51 = vector.load %arg3[%c0_12, %c0_13] : memref<32x72xbf16, #tpu.memory_space<vmem>>, vector<32x72xbf16>
    %cst_14 = arith.constant dense<0.000000e+00> : vector<32x512xf32>
    %52 = tpu.matmul %51, %50, %cst_14 {dimension_numbers = #tpu.dot_dimension_numbers<[1], [0], [0], [1], [0, 0, 1, 1], [], []>} : vector<32x72xbf16>, vector<72x512xbf16>, vector<32x512xf32> -> vector<32x512xf32>
    %53 = math.sin %52 : vector<32x512xf32>
    %54 = math.cos %52 : vector<32x512xf32>
    %55 = arith.mulf %53, %54 : vector<32x512xf32>
    %cst_15 = arith.constant 2.000000e+00 : f32
    %56 = vector.broadcast %cst_15 : f32 to vector<32x512xf32>
    %57 = arith.mulf %56, %55 : vector<32x512xf32>
    %58 = arith.mulf %53, %53 : vector<32x512xf32>
    %cst_16 = arith.constant 2.000000e+00 : f32
    %59 = vector.broadcast %cst_16 : f32 to vector<32x512xf32>
    %60 = arith.mulf %59, %58 : vector<32x512xf32>
    %cst_17 = arith.constant 1.000000e+00 : f32
    %61 = vector.broadcast %cst_17 : f32 to vector<32x512xf32>
    %62 = arith.subf %61, %60 : vector<32x512xf32>
    %63 = tpu.concatenate %52, %53, %54, %57, %62 in 0 : vector<32x512xf32>, vector<32x512xf32>, vector<32x512xf32>, vector<32x512xf32>, vector<32x512xf32> -> vector<160x512xf32>
    %64 = arith.truncf %63 : vector<160x512xf32> to vector<160x512xbf16>
    %65 = tpu.concatenate %64, %5 in 0 : vector<160x512xbf16>, vector<8x512xbf16> -> vector<168x512xbf16>
    %c0_18 = arith.constant 0 : index
    %c0_19 = arith.constant 0 : index
    %66 = vector.load %arg4[%c0_18, %c0_19] : memref<128x168xbf16, #tpu.memory_space<vmem>>, vector<128x168xbf16>
    %cst_20 = arith.constant dense<0.000000e+00> : vector<128x512xf32>
    %67 = tpu.matmul %66, %65, %cst_20 {dimension_numbers = #tpu.dot_dimension_numbers<[1], [0], [0], [1], [0, 0, 1, 1], [], []>} : vector<128x168xbf16>, vector<168x512xbf16>, vector<128x512xf32> -> vector<128x512xf32>
    %cst_21 = arith.constant 0.000000e+00 : f32
    %68 = vector.broadcast %cst_21 : f32 to vector<128x512xf32>
    %69 = arith.maximumf %67, %68 : vector<128x512xf32>
    %70 = arith.truncf %69 : vector<128x512xf32> to vector<128x512xbf16>
    %71 = tpu.concatenate %70, %5 in 0 : vector<128x512xbf16>, vector<8x512xbf16> -> vector<136x512xbf16>
    %c0_22 = arith.constant 0 : index
    %c0_23 = arith.constant 0 : index
    %72 = vector.load %arg5[%c0_22, %c0_23] : memref<32x136xbf16, #tpu.memory_space<vmem>>, vector<32x136xbf16>
    %cst_24 = arith.constant dense<0.000000e+00> : vector<32x512xf32>
    %73 = tpu.matmul %72, %71, %cst_24 {dimension_numbers = #tpu.dot_dimension_numbers<[1], [0], [0], [1], [0, 0, 1, 1], [], []>} : vector<32x136xbf16>, vector<136x512xbf16>, vector<32x512xf32> -> vector<32x512xf32>
    %74 = vector.extract_strided_slice %73 {offsets = [0, 0], sizes = [12, 512], strides = [1, 1]} : vector<32x512xf32> to vector<12x512xf32>
    %75 = vector.extract_strided_slice %73 {offsets = [12, 0], sizes = [3, 512], strides = [1, 1]} : vector<32x512xf32> to vector<3x512xf32>
    %76 = vector.extract_strided_slice %73 {offsets = [16, 0], sizes = [12, 512], strides = [1, 1]} : vector<32x512xf32> to vector<12x512xf32>
    %77 = arith.mulf %74, %76 : vector<12x512xf32>
    %78 = arith.truncf %77 : vector<12x512xf32> to vector<12x512xbf16>
    %c0_25 = arith.constant 0 : index
    %c0_26 = arith.constant 0 : index
    %79 = vector.load %arg6[%c0_25, %c0_26] : memref<3x12xbf16, #tpu.memory_space<vmem>>, vector<3x12xbf16>
    %cst_27 = arith.constant dense<0.000000e+00> : vector<3x512xf32>
    %80 = tpu.matmul %79, %78, %cst_27 {dimension_numbers = #tpu.dot_dimension_numbers<[1], [0], [0], [1], [0, 0, 1, 1], [], []>} : vector<3x12xbf16>, vector<12x512xbf16>, vector<3x512xf32> -> vector<3x512xf32>
    %81 = arith.addf %80, %75 : vector<3x512xf32>
    %82 = arith.negf %81 : vector<3x512xf32>
    %83 = math.exp %82 : vector<3x512xf32>
    %cst_28 = arith.constant 1.000000e+00 : f32
    %84 = vector.broadcast %cst_28 : f32 to vector<3x512xf32>
    %85 = arith.addf %84, %83 : vector<3x512xf32>
    %86 = arith.divf %84, %85 : vector<3x512xf32>
    %c0_29 = arith.constant 0 : index
    %c0_30 = arith.constant 0 : index
    %87 = vector.load %arg7[%c0_29, %c0_30] : memref<3x512xf32, #tpu.memory_space<vmem>>, vector<3x512xf32>
    tpu.vector_store %arg7[%c0_29, %c0_30], %86 {strides = array<i32>} : memref<3x512xf32, #tpu.memory_space<vmem>>, vector<3x512xf32>,
    return
  }
  func.func @transform_0(%arg0: i32) -> (i32, i32) {
    %c0_i32 = arith.constant 0 : i32
    %c0_i32_0 = arith.constant 0 : i32
    return %c0_i32, %arg0 : i32, i32
  }
  func.func @transform_1(%arg0: i32) -> (i32, i32) {
    %c0_i32 = arith.constant 0 : i32
    %c0_i32_0 = arith.constant 0 : i32
    %c0_i32_1 = arith.constant 0 : i32
    return %c0_i32, %c0_i32_0 : i32, i32
  }
  func.func @transform_2(%arg0: i32) -> (i32, i32) {
    %c0_i32 = arith.constant 0 : i32
    %c0_i32_0 = arith.constant 0 : i32
    %c0_i32_1 = arith.constant 0 : i32
    return %c0_i32, %c0_i32_0 : i32, i32
  }
  func.func @transform_3(%arg0: i32) -> (i32, i32) {
    %c0_i32 = arith.constant 0 : i32
    %c0_i32_0 = arith.constant 0 : i32
    %c0_i32_1 = arith.constant 0 : i32
    return %c0_i32, %c0_i32_0 : i32, i32
  }
  func.func @transform_4(%arg0: i32) -> (i32, i32) {
    %c0_i32 = arith.constant 0 : i32
    %c0_i32_0 = arith.constant 0 : i32
    %c0_i32_1 = arith.constant 0 : i32
    return %c0_i32, %c0_i32_0 : i32, i32
  }
  func.func @transform_5(%arg0: i32) -> (i32, i32) {
    %c0_i32 = arith.constant 0 : i32
    %c0_i32_0 = arith.constant 0 : i32
    %c0_i32_1 = arith.constant 0 : i32
    return %c0_i32, %c0_i32_0 : i32, i32
  }
  func.func @transform_6(%arg0: i32) -> (i32, i32) {
    %c0_i32 = arith.constant 0 : i32
    %c0_i32_0 = arith.constant 0 : i32
    return %c0_i32, %arg0 : i32, i32
  }
}

</mosaic_0001>

<llo_original>
// kernel: tpu_custom_call.1
$region0: #{tpu_custom_call.1}
  #allocation0 [shape = 'u32[]', space=smem, size = 0x4, offset = 0x4, fixed_abs, tag = 'smem constant byte address 0x4 - core index']
  #allocation1 [shape = 'u32[144,128]{1,0:T(1,128)}', space=vmem, size = 0x12000, scoped, tag = 'internal scratch']
  %s0 = inlined_call_operand.vmem [shape: f32[6,1024], index: 0, kind: input, shape index: {}]
  %s1 = inlined_call_operand.vmem [shape: bf16[64,40], index: 1, kind: input, shape index: {}]
  %s2 = inlined_call_operand.vmem [shape: bf16[32,72], index: 2, kind: input, shape index: {}]
  %s3 = inlined_call_operand.vmem [shape: bf16[128,168], index: 3, kind: input, shape index: {}]
  %s4 = inlined_call_operand.vmem [shape: bf16[32,136], index: 4, kind: input, shape index: {}]
  %s5 = inlined_call_operand.vmem [shape: bf16[3,12], index: 5, kind: input, shape index: {}]
  %s6 = inlined_call_operand.hbm [shape: f32[3,1024], index: 6, kind: output, shape index: {}]
  %s7 = sld [smem:[#allocation0]]
  $region57: #{tpu_custom_call.1} parent=0
    _
  %s9 = ssub.s32 1, %s7
  %s10 = scalar_select 0, %s9, %s7
  $region1: #{tpu_custom_call.1} parent=0
    #allocation2 [shape = 'u8[16384]{0}', space=vmem, size = 0x4000, scoped, tag = 'output window, operand 0']
    #allocation3 [shape = 's32[2]{0}', space=sflag, size = 0x8, scoped, tag = 'scoped memory for tpu_custom_call.1']
    %11 = vsyncpa [#allocation3], 0
    %s12 = scalar_lea.sflag [#allocation3], 1
    %13 = vsyncpa %s12, 0
    loop: start=0, step=1, limit=4
    $region2: #{tpu_custom_call.1} parent=1 // loop_pre_header
      _
    $region3: #{tpu_custom_call.1} parent=1 // loop_header
      %s15 = sphi 0, %s19
      %p16 = scmp.ge.s32.totalorder %s15, 4
      %s25 = sphi 0, %s27
      %s28 = sphi 0, %s25
      %s29 = sphi 0, %s28
      %s45 = sphi 0, %s29
      %s49 = sphi 0, %s49
      %s51 = sphi 0, %s49
      %s52 = sphi 0, %s51
      %s66 = sphi 0, %s52
      %s70 = sphi 0, %s70
      %s72 = sphi 0, %s70
      %s73 = sphi 0, %s72
      %s87 = sphi 0, %s73
      %s91 = sphi 0, %s91
      %s93 = sphi 0, %s91
      %s94 = sphi 0, %s93
      %s108 = sphi 0, %s94
      %s112 = sphi 0, %s112
      %s114 = sphi 0, %s112
      %s115 = sphi 0, %s114
      %s129 = sphi 0, %s115
      %s133 = sphi 0, %s133
      %s135 = sphi 0, %s133
      %s136 = sphi 0, %s135
      %s150 = sphi 0, %s136
      %s156 = sphi 0, %s158
      %s159 = sphi 0, %s156
      %s160 = sphi 0, %s159
      %s176 = sphi 0, %s160
    $region4: #{tpu_custom_call.1} parent=1 // loop_header_branch
      %18 = sbr.rel (%p16) target = $region8
    $region5: #{tpu_custom_call.1} parent=1 // loop_body
      %s20 = ssub.s32 %s15, 1
      %s21 = ssub.s32 %s15, 2
      %s22 = sadd.s32 %s15, 1
      %s23 = ssub.s32 %s15, %s22
      %p24 = scmp.eq.s32.totalorder %s23, 0
      %s26 = sadd.s32 %s25, 1
      %s27 = scalar_select %p24, %s25, %s26
      %p30 = pneg %p24
      %p31 = scmp.eq.s32.totalorder %s15, 1
      %p32 = por %p30, %p31
      %p33 = scmp.ne.s32.totalorder %s25, %s28
      %p34 = scmp.eq.s32.totalorder %s15, 0
      %p35 = por %p33, %p34
      %p36 = scmp.ne.s32.totalorder %s25, %s28
      %p37 = scmp.eq.s32.totalorder %s20, 1
      %p38 = por %p36, %p37
      %p39 = scmp.ne.s32.totalorder %s28, %s29
      %p40 = scmp.eq.s32.totalorder %s20, 0
      %p41 = por %p39, %p40
      %p42 = scmp.ne.s32.totalorder %s28, %s29
      %p43 = scmp.eq.s32.totalorder %s21, 1
      %p44 = por %p42, %p43
      %p46 = scmp.ne.s32.totalorder %s29, %s45
      %p47 = scmp.eq.s32.totalorder %s21, 0
      %p48 = por %p46, %p47
      %s50 = sadd.s32 %s49, 1
      %p53 = scmp.eq.s32.totalorder %s15, 1
      %p54 = scmp.ne.s32.totalorder %s49, %s51
      %p55 = scmp.eq.s32.totalorder %s15, 0
      %p56 = por %p54, %p55
      %p57 = scmp.ne.s32.totalorder %s49, %s51
      %p58 = scmp.eq.s32.totalorder %s20, 1
      %p59 = por %p57, %p58
      %p60 = scmp.ne.s32.totalorder %s51, %s52
      %p61 = scmp.eq.s32.totalorder %s20, 0
      %p62 = por %p60, %p61
      %p63 = scmp.ne.s32.totalorder %s51, %s52
      %p64 = scmp.eq.s32.totalorder %s21, 1
      %p65 = por %p63, %p64
      %p67 = scmp.ne.s32.totalorder %s52, %s66
      %p68 = scmp.eq.s32.totalorder %s21, 0
      %p69 = por %p67, %p68
      %s71 = sadd.s32 %s70, 1
      %p74 = scmp.eq.s32.totalorder %s15, 1
      %p75 = scmp.ne.s32.totalorder %s70, %s72
      %p76 = scmp.eq.s32.totalorder %s15, 0
      %p77 = por %p75, %p76
      %p78 = scmp.ne.s32.totalorder %s70, %s72
      %p79 = scmp.eq.s32.totalorder %s20, 1
      %p80 = por %p78, %p79
      %p81 = scmp.ne.s32.totalorder %s72, %s73
      %p82 = scmp.eq.s32.totalorder %s20, 0
      %p83 = por %p81, %p82
      %p84 = scmp.ne.s32.totalorder %s72, %s73
      %p85 = scmp.eq.s32.totalorder %s21, 1
      %p86 = por %p84, %p85
      %p88 = scmp.ne.s32.totalorder %s73, %s87
      %p89 = scmp.eq.s32.totalorder %s21, 0
      %p90 = por %p88, %p89
      %s92 = sadd.s32 %s91, 1
      %p95 = scmp.eq.s32.totalorder %s15, 1
      %p96 = scmp.ne.s32.totalorder %s91, %s93
      %p97 = scmp.eq.s32.totalorder %s15, 0
      %p98 = por %p96, %p97
      %p99 = scmp.ne.s32.totalorder %s91, %s93
      %p100 = scmp.eq.s32.totalorder %s20, 1
      %p101 = por %p99, %p100
      %p102 = scmp.ne.s32.totalorder %s93, %s94
      %p103 = scmp.eq.s32.totalorder %s20, 0
      %p104 = por %p102, %p103
      %p105 = scmp.ne.s32.totalorder %s93, %s94
      %p106 = scmp.eq.s32.totalorder %s21, 1
      %p107 = por %p105, %p106
      %p109 = scmp.ne.s32.totalorder %s94, %s108
      %p110 = scmp.eq.s32.totalorder %s21, 0
      %p111 = por %p109, %p110
      %s113 = sadd.s32 %s112, 1
      %p116 = scmp.eq.s32.totalorder %s15, 1
      %p117 = scmp.ne.s32.totalorder %s112, %s114
      %p118 = scmp.eq.s32.totalorder %s15, 0
      %p119 = por %p117, %p118
      %p120 = scmp.ne.s32.totalorder %s112, %s114
      %p121 = scmp.eq.s32.totalorder %s20, 1
      %p122 = por %p120, %p121
      %p123 = scmp.ne.s32.totalorder %s114, %s115
      %p124 = scmp.eq.s32.totalorder %s20, 0
      %p125 = por %p123, %p124
      %p126 = scmp.ne.s32.totalorder %s114, %s115
      %p127 = scmp.eq.s32.totalorder %s21, 1
      %p128 = por %p126, %p127
      %p130 = scmp.ne.s32.totalorder %s115, %s129
      %p131 = scmp.eq.s32.totalorder %s21, 0
      %p132 = por %p130, %p131
      %s134 = sadd.s32 %s133, 1
      %p137 = scmp.eq.s32.totalorder %s15, 1
      %p138 = scmp.ne.s32.totalorder %s133, %s135
      %p139 = scmp.eq.s32.totalorder %s15, 0
      %p140 = por %p138, %p139
      %p141 = scmp.ne.s32.totalorder %s133, %s135
      %p142 = scmp.eq.s32.totalorder %s20, 1
      %p143 = por %p141, %p142
      %p144 = scmp.ne.s32.totalorder %s135, %s136
      %p145 = scmp.eq.s32.totalorder %s20, 0
      %p146 = por %p144, %p145
      %p147 = scmp.ne.s32.totalorder %s135, %s136
      %p148 = scmp.eq.s32.totalorder %s21, 1
      %p149 = por %p147, %p148
      %p151 = scmp.ne.s32.totalorder %s136, %s150
      %p152 = scmp.eq.s32.totalorder %s21, 0
      %p153 = por %p151, %p152
      %s154 = ssub.s32 %s15, %s22
      %p155 = scmp.eq.s32.totalorder %s154, 0
      %s157 = sadd.s32 %s156, 1
      %s158 = scalar_select %p155, %s156, %s157
      %p161 = pneg %p155
      %p162 = scmp.eq.s32.totalorder %s15, 1
      %p163 = por %p161, %p162
      %p164 = scmp.ne.s32.totalorder %s156, %s159
      %p165 = scmp.eq.s32.totalorder %s15, 0
      %p166 = por %p164, %p165
      %p167 = scmp.ne.s32.totalorder %s156, %s159
      %p168 = scmp.eq.s32.totalorder %s20, 1
      %p169 = por %p167, %p168
      %p170 = scmp.ne.s32.totalorder %s159, %s160
      %p171 = scmp.eq.s32.totalorder %s20, 0
      %p172 = por %p170, %p171
      %p173 = scmp.ne.s32.totalorder %s159, %s160
      %p174 = scmp.eq.s32.totalorder %s21, 1
      %p175 = por %p173, %p174
      %p177 = scmp.ne.s32.totalorder %s160, %s176
      %p178 = scmp.eq.s32.totalorder %s21, 0
      %p179 = por %p177, %p178
      %p180 = scmp.le.s32.totalorder 1, %s15
      %p181 = scmp.lt.s32.totalorder %s15, 3
      %p182 = pnand %p180, %p181
      %p183 = pneg %p182
      // Predicated region
      $region9: #{tpu_custom_call.1} parent=5 // pred_check
        _
      $region10: #{tpu_custom_call.1} parent=5 // pred_check_branch
        %185 = sbr.rel (%p182) target = $region12
      $region11: #{tpu_custom_call.1} parent=5 // pred_region
        %s186 = ssub.s32 %s15, 1
        // Predicated region
        $region13: #{tpu_custom_call.1} parent=11 // pred_check
          %p187 = pneg %p62
        $region14: #{tpu_custom_call.1} parent=11 // pred_check_branch
          %189 = sbr.rel (%p187) target = $region16
        $region15: #{tpu_custom_call.1} parent=11 // pred_region
          _
        $region16: #{tpu_custom_call.1} parent=11 // pred_fallthru
          _
        // Predicated region
        $region17: #{tpu_custom_call.1} parent=11 // pred_check
          %p190 = pneg %p83
        $region18: #{tpu_custom_call.1} parent=11 // pred_check_branch
          %192 = sbr.rel (%p190) target = $region20
        $region19: #{tpu_custom_call.1} parent=11 // pred_region
          _
        $region20: #{tpu_custom_call.1} parent=11 // pred_fallthru
          _
        // Predicated region
        $region21: #{tpu_custom_call.1} parent=11 // pred_check
          %p193 = pneg %p104
        $region22: #{tpu_custom_call.1} parent=11 // pred_check_branch
          %195 = sbr.rel (%p193) target = $region24
        $region23: #{tpu_custom_call.1} parent=11 // pred_region
          _
        $region24: #{tpu_custom_call.1} parent=11 // pred_fallthru
          _
        // Predicated region
        $region25: #{tpu_custom_call.1} parent=11 // pred_check
          %p196 = pneg %p125
        $region26: #{tpu_custom_call.1} parent=11 // pred_check_branch
          %198 = sbr.rel (%p196) target = $region28
        $region27: #{tpu_custom_call.1} parent=11 // pred_region
          _
        $region28: #{tpu_custom_call.1} parent=11 // pred_fallthru
          _
        // Predicated region
        $region29: #{tpu_custom_call.1} parent=11 // pred_check
          %p199 = pneg %p146
        $region30: #{tpu_custom_call.1} parent=11 // pred_check_branch
          %201 = sbr.rel (%p199) target = $region32
        $region31: #{tpu_custom_call.1} parent=11 // pred_region
          _
        $region32: #{tpu_custom_call.1} parent=11 // pred_fallthru
          _
      $region12: #{tpu_custom_call.1} parent=5 // pred_fallthru
        _
      %p202 = scmp.lt.s32.totalorder %s15, 2
      // Predicated region
      $region33: #{tpu_custom_call.1} parent=5 // pred_check
        %p203 = pneg %p202
      $region34: #{tpu_custom_call.1} parent=5 // pred_check_branch
        %205 = sbr.rel (%p203) target = $region36
      $region35: #{tpu_custom_call.1} parent=5 // pred_region
        // Predicated region
        $region37: #{tpu_custom_call.1} parent=35 // pred_check
          %p206 = pneg %p35
        $region38: #{tpu_custom_call.1} parent=35 // pred_check_branch
          %208 = sbr.rel (%p206) target = $region40
        $region39: #{tpu_custom_call.1} parent=35 // pred_region
          %s209 = smul.u32 4, %s15
          %p210 = scmp.lt.s32.totalorder %s209, 7
          %s211 = scalar_select %p210, %s209, 7
          %s212 = smul.addr %s211, 8
          %s213 = scalar_lea.vmem %s0, %s212
          %s214 = smul.u32 4, %s15
        $region40: #{tpu_custom_call.1} parent=35 // pred_fallthru
          _
      $region36: #{tpu_custom_call.1} parent=5 // pred_fallthru
        _
      %p215 = scmp.le.s32.totalorder 1, %s15
      %p216 = scmp.lt.s32.totalorder %s15, 3
      %p217 = pnand %p215, %p216
      %p218 = pneg %p217
      // Predicated region
      $region41: #{tpu_custom_call.1} parent=5 // pred_check
        _
      $region42: #{tpu_custom_call.1} parent=5 // pred_check_branch
        %220 = sbr.rel (%p217) target = $region44
      $region43: #{tpu_custom_call.1} parent=5 // pred_region
        %s221 = ssub.s32 %s15, 1
        %s222 = smul.u32 4, %s20
        %p223 = scmp.lt.s32.totalorder %s222, 7
        %s224 = scalar_select %p223, %s222, 7
        %s225 = smul.addr %s224, 8
        %s226 = scalar_lea.vmem %s0, %s225
        %p227 = pneg %p41
        %p228 = pneg %p38
        %p229 = pneg %p62
        %p230 = pneg %p59
        %p231 = pneg %p83
        %p232 = pneg %p80
        %p233 = pneg %p104
        %p234 = pneg %p101
        %p235 = pneg %p125
        %p236 = pneg %p122
        %p237 = pneg %p146
        %p238 = pneg %p143
        %p239 = pneg %p172
        %p240 = pneg %p169
        %s241 = sand.u32 %s159, 1
        %s242 = scalar_lea.sflag [#allocation3], %s241
        %s243 = sand.u32 %s159, 1
        %s244 = smul.addr %s243, 16
        %s245 = scalar_lea.vmem [#allocation2], %s244
        %s246 = smul.u32 4, %s20
        %p247 = scmp.lt.s32.totalorder %s246, 7
        %s248 = scalar_select %p247, %s246, 7
        %s249 = smul.addr %s248, 8
        %s250 = scalar_lea.vmem %s0, %s249
        %s251 = smul.u32 4, %s20
        %s252 = smul.u32 4, %s20
        %v255 = vld [vmem:[%s250] sm:$0x3f]
        %v256 = vld [vmem:[%s250 + $0x8] sm:$0x3f]
        %v257 = vld [vmem:[%s250 + $0x10] sm:$0x3f]
        %v258 = vld [vmem:[%s250 + $0x18] sm:$0x3f]
        %vm259 = vcmask 1040384
        %vm260 = vsmask.f32 256
        %vm261 = vmand %vm259, %vm260
        %v262 = vsel %vm261, 1065369472, 0
        %v263 = vmul.f32 %v255, %v255
        %v264 = vmul.f32 %v256, %v256
        %v265 = vmul.f32 %v257, %v257
        %v266 = vmul.f32 %v258, %v258
        %v271 = vrot.slane %v263, 1
        %v272 = vrot.slane %v264, 1
        %v273 = vrot.slane %v265, 1
        %v274 = vrot.slane %v266, 1
        %v279 = vadd.f32 %v263, %v271
        %v280 = vadd.f32 %v264, %v272
        %v281 = vadd.f32 %v265, %v273
        %v282 = vadd.f32 %v266, %v274
        %v283 = vrot.slane %v263, 2
        %v284 = vrot.slane %v264, 2
        %v285 = vrot.slane %v265, 2
        %v286 = vrot.slane %v266, 2
        %v291 = vadd.f32 %v279, %v283
        %v292 = vadd.f32 %v280, %v284
        %v293 = vadd.f32 %v281, %v285
        %v294 = vadd.f32 %v282, %v286
        %v295 = vadd.f32 %v291, 1e-08
        %v296 = vadd.f32 %v292, 1e-08
        %v297 = vadd.f32 %v293, 1e-08
        %v298 = vadd.f32 %v294, 1e-08
        %v299 = vrsqrt.pop %v295
        %v300 = vrsqrt.pop %v296
        %v301 = vrsqrt.pop %v297
        %v302 = vrsqrt.pop %v298
        %v303 = vmul.f32 %v255, %v299
        %v304 = vmul.f32 %v256, %v300
        %v305 = vmul.f32 %v257, %v301
        %v306 = vmul.f32 %v258, %v302
        %v311 = vrot.slane %v299, 7
        %v312 = vrot.slane %v300, 7
        %v313 = vrot.slane %v301, 7
        %v314 = vrot.slane %v302, 7
        %v319 = vmul.f32 %v255, %v311
        %v320 = vmul.f32 %v256, %v312
        %v321 = vmul.f32 %v257, %v313
        %v322 = vmul.f32 %v258, %v314
        %v323 = vrot.slane %v299, 6
        %v324 = vrot.slane %v300, 6
        %v325 = vrot.slane %v301, 6
        %v326 = vrot.slane %v302, 6
        %v331 = vmul.f32 %v255, %v323
        %v332 = vmul.f32 %v256, %v324
        %v333 = vmul.f32 %v257, %v325
        %v334 = vmul.f32 %v258, %v326
        %v339 = vrot.slane %v331, 4
        %v340 = vrot.slane %v332, 4
        %v341 = vrot.slane %v333, 4
        %v342 = vrot.slane %v334, 4
        %v347 = vmul.f32 %v255, %v339
        %v348 = vmul.f32 %v256, %v340
        %v349 = vmul.f32 %v257, %v341
        %v350 = vmul.f32 %v258, %v342
        %v355 = vrot.slane %v319, 2
        %v356 = vrot.slane %v320, 2
        %v357 = vrot.slane %v321, 2
        %v358 = vrot.slane %v322, 2
        %v363 = vmul.f32 %v255, %v355
        %v364 = vmul.f32 %v256, %v356
        %v365 = vmul.f32 %v257, %v357
        %v366 = vmul.f32 %v258, %v358
        %v371 = vrot.slane %v363, 1
        %v372 = vrot.slane %v364, 1
        %v373 = vrot.slane %v365, 1
        %v374 = vrot.slane %v366, 1
        %v379 = vsub.f32 %v347, %v371
        %v380 = vsub.f32 %v348, %v372
        %v381 = vsub.f32 %v349, %v373
        %v382 = vsub.f32 %v350, %v374
        %v387 = vrot.slane %v303, 1
        %v388 = vrot.slane %v304, 1
        %v389 = vrot.slane %v305, 1
        %v390 = vrot.slane %v306, 1
        %v395 = vmul.f32 %v255, %v387
        %v396 = vmul.f32 %v256, %v388
        %v397 = vmul.f32 %v257, %v389
        %v398 = vmul.f32 %v258, %v390
        %v399 = vrot.slane %v331, 5
        %v400 = vrot.slane %v332, 5
        %v401 = vrot.slane %v333, 5
        %v402 = vrot.slane %v334, 5
        %v407 = vmul.f32 %v255, %v399
        %v408 = vmul.f32 %v256, %v400
        %v409 = vmul.f32 %v257, %v401
        %v410 = vmul.f32 %v258, %v402
        %v415 = vrot.slane %v407, 6
        %v416 = vrot.slane %v408, 6
        %v417 = vrot.slane %v409, 6
        %v418 = vrot.slane %v410, 6
        %v423 = vsub.f32 %v395, %v415
        %v424 = vsub.f32 %v396, %v416
        %v425 = vsub.f32 %v397, %v417
        %v426 = vsub.f32 %v398, %v418
        %v427 = vrot.slane %v319, 4
        %v428 = vrot.slane %v320, 4
        %v429 = vrot.slane %v321, 4
        %v430 = vrot.slane %v322, 4
        %v435 = vmul.f32 %v255, %v427
        %v436 = vmul.f32 %v256, %v428
        %v437 = vmul.f32 %v257, %v429
        %v438 = vmul.f32 %v258, %v430
        %v439 = vrot.slane %v303, 2
        %v440 = vrot.slane %v304, 2
        %v441 = vrot.slane %v305, 2
        %v442 = vrot.slane %v306, 2
        %v447 = vmul.f32 %v255, %v439
        %v448 = vmul.f32 %v256, %v440
        %v449 = vmul.f32 %v257, %v441
        %v450 = vmul.f32 %v258, %v442
        %v455 = vrot.slane %v447, 1
        %v456 = vrot.slane %v448, 1
        %v457 = vrot.slane %v449, 1
        %v458 = vrot.slane %v450, 1
        %v463 = vsub.f32 %v435, %v455
        %v464 = vsub.f32 %v436, %v456
        %v465 = vsub.f32 %v437, %v457
        %v466 = vsub.f32 %v438, %v458
        %v467 = vrot.slane %v303, 3
        %v468 = vrot.slane %v304, 3
        %v469 = vrot.slane %v305, 3
        %v470 = vrot.slane %v306, 3
        %v475 = vrot.slane %v319, 3
        %v476 = vrot.slane %v320, 3
        %v477 = vrot.slane %v321, 3
        %v478 = vrot.slane %v322, 3
        %v483 = vrot.slane %v331, 3
        %v484 = vrot.slane %v332, 3
        %v485 = vrot.slane %v333, 3
        %v486 = vrot.slane %v334, 3
        %v495 = vrot.slane %v379, 6
        %v496 = vrot.slane %v380, 6
        %v497 = vrot.slane %v381, 6
        %v498 = vrot.slane %v382, 6
        %v507 = vrot.slane %v423, 6
        %v508 = vrot.slane %v424, 6
        %v509 = vrot.slane %v425, 6
        %v510 = vrot.slane %v426, 6
        %v519 = vrot.slane %v463, 3
        %v520 = vrot.slane %v464, 3
        %v521 = vrot.slane %v465, 3
        %v522 = vrot.slane %v466, 3
        %vm527 = vcmask 1040384
        %v528 = vsel %vm527, %v467, %v475
        %v529 = vsel %vm527, %v468, %v476
        %v530 = vsel %vm527, %v469, %v477
        %v531 = vsel %vm527, %v470, %v478
        %vm532 = vcmask 1041408
        %v533 = vsel %vm532, %v528, %v483
        %v534 = vsel %vm532, %v529, %v484
        %v535 = vsel %vm532, %v530, %v485
        %v536 = vsel %vm532, %v531, %v486
        %vm537 = vcmask 1042432
        %v538 = vsel %vm537, %v533, %v495
        %v539 = vsel %vm537, %v534, %v496
        %v540 = vsel %vm537, %v535, %v497
        %v541 = vsel %vm537, %v536, %v498
        %vm542 = vcmask 1043456
        %v543 = vsel %vm542, %v538, %v507
        %v544 = vsel %vm542, %v539, %v508
        %v545 = vsel %vm542, %v540, %v509
        %v546 = vsel %vm542, %v541, %v510
        %vm547 = vcmask 1044480
        %v548 = vsel %vm547, %v543, %v519
        %v549 = vsel %vm547, %v544, %v520
        %v550 = vsel %vm547, %v545, %v521
        %v551 = vsel %vm547, %v546, %v522
        %vm552 = vcmask 1045504
        %v553 = vsel %vm552, %v548, 1.0
        %v554 = vsel %vm552, %v549, 1.0
        %v555 = vsel %vm552, %v550, 1.0
        %v556 = vsel %vm552, %v551, 1.0
        %vm557 = vcmask 1046528
        %v558 = vsel %vm557, %v553, 0.0
        %v559 = vsel %vm557, %v554, 0.0
        %v560 = vsel %vm557, %v555, 0.0
        %v561 = vsel %vm557, %v556, 0.0
        %v562 = vand.u32 2147483647, %v558
        %vm563 = vcmp.le.f32.partialorder %v562, 0.7853982
        %vm564 = vcmp.lt.s32.totalorder %v558, 0
        %v565 = vand.u32 %v558, 2139095040
        %v566 = vshrl.u32 %v565, 23
        %v567 = vsub.s32 %v566, 127
        %v568 = vand.u32 2147483647, %v558
        %v569 = vand.u32 %v568, 8388607
        %v570 = vor.u32 %v569, 8388608
        %v571 = vsub.s32 0, %v570
        %v572 = vadd.s32 %v567, 1
        %vm573 = vcmp.gt.s32.totalorder %v572, 0
        %v574 = vsel %vm573, %v572, 0
        %v575 = vshrl.u32 %v574, 5
        %v576 = vand.u32 %v574, 31
        %v577 = vsub.s32 32, %v576
        %v578 = vshrl.u32 683565275, %v577
        %v579 = vshll.u32 683565275, %v576
        %v580 = vshrl.u32 2475754826, %v577
        %v581 = vor.u32 %v579, %v580
        %v582 = vshll.u32 2475754826, %v576
        %v583 = vshrl.u32 2131351028, %v577
        %v584 = vor.u32 %v582, %v583
        %v585 = vshll.u32 2131351028, %v576
        %v586 = vshrl.u32 2102212464, %v577
        %v587 = vor.u32 %v585, %v586
        %v588 = vshll.u32 2102212464, %v576
        %v589 = vshrl.u32 920167782, %v577
        %v590 = vor.u32 %v588, %v589
        %v591 = vshll.u32 920167782, %v576
        %v592 = vshrl.u32 1326507024, %v577
        %v593 = vor.u32 %v591, %v592
        %vm594 = vcmp.lt.s32.totalorder %v575, 1
        %vm595 = vcmp.lt.s32.totalorder %v575, 2
        %vm596 = vcmp.lt.s32.totalorder %v575, 3
        %vm597 = vcmp.lt.s32.totalorder %v575, 4
        %v598 = vsel %vm594, %v578, %v581
        %v599 = vsel %vm597, %v587, 2102212464
        %v600 = vsel %vm596, %v584, %v599
        %v601 = vsel %vm595, %v598, %v600
        %v602 = vsel %vm594, %v581, %v584
        %v603 = vsel %vm597, %v590, 920167782
        %v604 = vsel %vm596, %v587, %v603
        %v605 = vsel %vm595, %v602, %v604
        %v606 = vsel %vm594, %v584, %v587
        %v607 = vsel %vm597, %v593, 1326507024
        %v608 = vsel %vm596, %v590, %v607
        %v609 = vsel %vm595, %v606, %v608
        %v610 = vshll.u32 %v570, 8
        %v611 = vmul.u32.u64.compose %v610, %v609
        %v612 = vextract.low.u32 %v611
        %v613 = vextract.high.u32 %v611
        %v614 = vmul.u32.u64.compose %v610, %v605
        %v615 = vextract.low.u32 %v614
        %v616 = vextract.high.u32 %v614
        %v617 = vmul.u32 %v610, %v601
        %v618 = vadd.s32 %v613, %v615
        %vm619 = vc.u32 %v613, %v615
        %v620 = vadd.s32 %v616, 1
        %v621 = vsel %vm619, %v620, %v616
        %v622 = vadd.s32 %v617, %v621
        %v623 = vadd.s32 %v622, 536870912
        %v624 = vshrl.u32 %v623, 30
        %v625 = vshll.u32 %v624, 30
        %v626 = vsub.s32 %v622, %v625
        %vm627 = vcmp.lt.s32.totalorder %v626, 0
        %v628 = vsub.s32 0, %v626
        %v629 = vsel %vm627, %v628, %v626
        %v630 = vclz %v629
        %v631 = vsub.s32 %v630, 2
        %vm632 = vcmp.gt.s32.totalorder 0, %v631
        %v633 = vsel %vm632, 0, %v631
        %v634 = vsub.s32 32, %v633
        %v635 = vshll.u32 %v626, %v633
        %v636 = vshrl.u32 %v618, %v634
        %v637 = vor.u32 %v635, %v636
        %v638 = vsub.s32 4294967266, %v633
        %v639 = vadd.s32 %v638, 127
        %v640 = vshll.u32 %v639, 23
        %v641 = vor.u32 4788187, %v640
        %v642 = vand.u32 2147483647, %v641
        %v644 = vcvt.s32.f32 %v637
        %v645 = vmul.f32 %v644, %v642
        %v646 = vxor.u32 %v645, 2147483648
        %v647 = vsel %vm564, %v646, %v645
        %v648 = vsub.s32 4, %v624
        %v649 = vsel %vm564, %v648, %v624
        %v650 = vsel %vm563, %v558, %v647
        %v651 = vsel %vm563, 0, %v649
        %v652 = vcosq.f32.pop %v650
        %v653 = vsinq.f32.pop %v650
        %vm654 = vweird.f32 %v558
        %v655 = vadd.s32 %v651, 3
        %v656 = vand.u32 %v655, 3
        %vm657 = vcmp.lt.s32.totalorder %v656, 2
        %vm658 = vcmp.eq.s32.totalorder %v656, 0
        %v659 = vxor.u32 %v653, 2147483648
        %v660 = vsel %vm658, %v652, %v659
        %vm661 = vcmp.eq.s32.totalorder %v656, 2
        %v662 = vxor.u32 %v652, 2147483648
        %v663 = vsel %vm661, %v662, %v653
        %v664 = vsel %vm657, %v660, %v663
        %v665 = vsel %vm654, nan, %v664
        %v666 = vand.u32 2147483647, %v559
        %vm667 = vcmp.le.f32.partialorder %v666, 0.7853982
        %vm668 = vcmp.lt.s32.totalorder %v559, 0
        %v669 = vand.u32 %v559, 2139095040
        %v670 = vshrl.u32 %v669, 23
        %v671 = vsub.s32 %v670, 127
        %v672 = vand.u32 2147483647, %v559
        %v673 = vand.u32 %v672, 8388607
        %v674 = vor.u32 %v673, 8388608
        %v675 = vsub.s32 0, %v674
        %v676 = vadd.s32 %v671, 1
        %vm677 = vcmp.gt.s32.totalorder %v676, 0
        %v678 = vsel %vm677, %v676, 0
        %v679 = vshrl.u32 %v678, 5
        %v680 = vand.u32 %v678, 31
        %v681 = vsub.s32 32, %v680
        %v682 = vshrl.u32 683565275, %v681
        %v683 = vshll.u32 683565275, %v680
        %v684 = vshrl.u32 2475754826, %v681
        %v685 = vor.u32 %v683, %v684
        %v686 = vshll.u32 2475754826, %v680
        %v687 = vshrl.u32 2131351028, %v681
        %v688 = vor.u32 %v686, %v687
        %v689 = vshll.u32 2131351028, %v680
        %v690 = vshrl.u32 2102212464, %v681
        %v691 = vor.u32 %v689, %v690
        %v692 = vshll.u32 2102212464, %v680
        %v693 = vshrl.u32 920167782, %v681
        %v694 = vor.u32 %v692, %v693
        %v695 = vshll.u32 920167782, %v680
        %v696 = vshrl.u32 1326507024, %v681
        %v697 = vor.u32 %v695, %v696
        %vm698 = vcmp.lt.s32.totalorder %v679, 1
        %vm699 = vcmp.lt.s32.totalorder %v679, 2
        %vm700 = vcmp.lt.s32.totalorder %v679, 3
        %vm701 = vcmp.lt.s32.totalorder %v679, 4
        %v702 = vsel %vm698, %v682, %v685
        %v703 = vsel %vm701, %v691, 2102212464
        %v704 = vsel %vm700, %v688, %v703
        %v705 = vsel %vm699, %v702, %v704
        %v706 = vsel %vm698, %v685, %v688
        %v707 = vsel %vm701, %v694, 920167782
        %v708 = vsel %vm700, %v691, %v707
        %v709 = vsel %vm699, %v706, %v708
        %v710 = vsel %vm698, %v688, %v691
        %v711 = vsel %vm701, %v697, 1326507024
        %v712 = vsel %vm700, %v694, %v711
        %v713 = vsel %vm699, %v710, %v712
        %v714 = vshll.u32 %v674, 8
        %v715 = vmul.u32.u64.compose %v714, %v713
        %v716 = vextract.low.u32 %v715
        %v717 = vextract.high.u32 %v715
        %v718 = vmul.u32.u64.compose %v714, %v709
        %v719 = vextract.low.u32 %v718
        %v720 = vextract.high.u32 %v718
        %v721 = vmul.u32 %v714, %v705
        %v722 = vadd.s32 %v717, %v719
        %vm723 = vc.u32 %v717, %v719
        %v724 = vadd.s32 %v720, 1
        %v725 = vsel %vm723, %v724, %v720
        %v726 = vadd.s32 %v721, %v725
        %v727 = vadd.s32 %v726, 536870912
        %v728 = vshrl.u32 %v727, 30
        %v729 = vshll.u32 %v728, 30
        %v730 = vsub.s32 %v726, %v729
        %vm731 = vcmp.lt.s32.totalorder %v730, 0
        %v732 = vsub.s32 0, %v730
        %v733 = vsel %vm731, %v732, %v730
        %v734 = vclz %v733
        %v735 = vsub.s32 %v734, 2
        %vm736 = vcmp.gt.s32.totalorder 0, %v735
        %v737 = vsel %vm736, 0, %v735
        %v738 = vsub.s32 32, %v737
        %v739 = vshll.u32 %v730, %v737
        %v740 = vshrl.u32 %v722, %v738
        %v741 = vor.u32 %v739, %v740
        %v742 = vsub.s32 4294967266, %v737
        %v743 = vadd.s32 %v742, 127
        %v744 = vshll.u32 %v743, 23
        %v745 = vor.u32 4788187, %v744
        %v746 = vand.u32 2147483647, %v745
        %v748 = vcvt.s32.f32 %v741
        %v749 = vmul.f32 %v748, %v746
        %v750 = vxor.u32 %v749, 2147483648
        %v751 = vsel %vm668, %v750, %v749
        %v752 = vsub.s32 4, %v728
        %v753 = vsel %vm668, %v752, %v728
        %v754 = vsel %vm667, %v559, %v751
        %v755 = vsel %vm667, 0, %v753
        %v756 = vcosq.f32.pop %v754
        %v757 = vsinq.f32.pop %v754
        %vm758 = vweird.f32 %v559
        %v759 = vadd.s32 %v755, 3
        %v760 = vand.u32 %v759, 3
        %vm761 = vcmp.lt.s32.totalorder %v760, 2
        %vm762 = vcmp.eq.s32.totalorder %v760, 0
        %v763 = vxor.u32 %v757, 2147483648
        %v764 = vsel %vm762, %v756, %v763
        %vm765 = vcmp.eq.s32.totalorder %v760, 2
        %v766 = vxor.u32 %v756, 2147483648
        %v767 = vsel %vm765, %v766, %v757
        %v768 = vsel %vm761, %v764, %v767
        %v769 = vsel %vm758, nan, %v768
        %v770 = vand.u32 2147483647, %v560
        %vm771 = vcmp.le.f32.partialorder %v770, 0.7853982
        %vm772 = vcmp.lt.s32.totalorder %v560, 0
        %v773 = vand.u32 %v560, 2139095040
        %v774 = vshrl.u32 %v773, 23
        %v775 = vsub.s32 %v774, 127
        %v776 = vand.u32 2147483647, %v560
        %v777 = vand.u32 %v776, 8388607
        %v778 = vor.u32 %v777, 8388608
        %v779 = vsub.s32 0, %v778
        %v780 = vadd.s32 %v775, 1
        %vm781 = vcmp.gt.s32.totalorder %v780, 0
        %v782 = vsel %vm781, %v780, 0
        %v783 = vshrl.u32 %v782, 5
        %v784 = vand.u32 %v782, 31
        %v785 = vsub.s32 32, %v784
        %v786 = vshrl.u32 683565275, %v785
        %v787 = vshll.u32 683565275, %v784
        %v788 = vshrl.u32 2475754826, %v785
        %v789 = vor.u32 %v787, %v788
        %v790 = vshll.u32 2475754826, %v784
        %v791 = vshrl.u32 2131351028, %v785
        %v792 = vor.u32 %v790, %v791
        %v793 = vshll.u32 2131351028, %v784
        %v794 = vshrl.u32 2102212464, %v785
        %v795 = vor.u32 %v793, %v794
        %v796 = vshll.u32 2102212464, %v784
        %v797 = vshrl.u32 920167782, %v785
        %v798 = vor.u32 %v796, %v797
        %v799 = vshll.u32 920167782, %v784
        %v800 = vshrl.u32 1326507024, %v785
        %v801 = vor.u32 %v799, %v800
        %vm802 = vcmp.lt.s32.totalorder %v783, 1
        %vm803 = vcmp.lt.s32.totalorder %v783, 2
        %vm804 = vcmp.lt.s32.totalorder %v783, 3
        %vm805 = vcmp.lt.s32.totalorder %v783, 4
        %v806 = vsel %vm802, %v786, %v789
        %v807 = vsel %vm805, %v795, 2102212464
        %v808 = vsel %vm804, %v792, %v807
        %v809 = vsel %vm803, %v806, %v808
        %v810 = vsel %vm802, %v789, %v792
        %v811 = vsel %vm805, %v798, 920167782
        %v812 = vsel %vm804, %v795, %v811
        %v813 = vsel %vm803, %v810, %v812
        %v814 = vsel %vm802, %v792, %v795
        %v815 = vsel %vm805, %v801, 1326507024
        %v816 = vsel %vm804, %v798, %v815
        %v817 = vsel %vm803, %v814, %v816
        %v818 = vshll.u32 %v778, 8
        %v819 = vmul.u32.u64.compose %v818, %v817
        %v820 = vextract.low.u32 %v819
        %v821 = vextract.high.u32 %v819
        %v822 = vmul.u32.u64.compose %v818, %v813
        %v823 = vextract.low.u32 %v822
        %v824 = vextract.high.u32 %v822
        %v825 = vmul.u32 %v818, %v809
        %v826 = vadd.s32 %v821, %v823
        %vm827 = vc.u32 %v821, %v823
        %v828 = vadd.s32 %v824, 1
        %v829 = vsel %vm827, %v828, %v824
        %v830 = vadd.s32 %v825, %v829
        %v831 = vadd.s32 %v830, 536870912
        %v832 = vshrl.u32 %v831, 30
        %v833 = vshll.u32 %v832, 30
        %v834 = vsub.s32 %v830, %v833
        %vm835 = vcmp.lt.s32.totalorder %v834, 0
        %v836 = vsub.s32 0, %v834
        %v837 = vsel %vm835, %v836, %v834
        %v838 = vclz %v837
        %v839 = vsub.s32 %v838, 2
        %vm840 = vcmp.gt.s32.totalorder 0, %v839
        %v841 = vsel %vm840, 0, %v839
        %v842 = vsub.s32 32, %v841
        %v843 = vshll.u32 %v834, %v841
        %v844 = vshrl.u32 %v826, %v842
        %v845 = vor.u32 %v843, %v844
        %v846 = vsub.s32 4294967266, %v841
        %v847 = vadd.s32 %v846, 127
        %v848 = vshll.u32 %v847, 23
        %v849 = vor.u32 4788187, %v848
        %v850 = vand.u32 2147483647, %v849
        %v852 = vcvt.s32.f32 %v845
        %v853 = vmul.f32 %v852, %v850
        %v854 = vxor.u32 %v853, 2147483648
        %v855 = vsel %vm772, %v854, %v853
        %v856 = vsub.s32 4, %v832
        %v857 = vsel %vm772, %v856, %v832
        %v858 = vsel %vm771, %v560, %v855
        %v859 = vsel %vm771, 0, %v857
        %v860 = vcosq.f32.pop %v858
        %v861 = vsinq.f32.pop %v858
        %vm862 = vweird.f32 %v560
        %v863 = vadd.s32 %v859, 3
        %v864 = vand.u32 %v863, 3
        %vm865 = vcmp.lt.s32.totalorder %v864, 2
        %vm866 = vcmp.eq.s32.totalorder %v864, 0
        %v867 = vxor.u32 %v861, 2147483648
        %v868 = vsel %vm866, %v860, %v867
        %vm869 = vcmp.eq.s32.totalorder %v864, 2
        %v870 = vxor.u32 %v860, 2147483648
        %v871 = vsel %vm869, %v870, %v861
        %v872 = vsel %vm865, %v868, %v871
        %v873 = vsel %vm862, nan, %v872
        %v874 = vand.u32 2147483647, %v561
        %vm875 = vcmp.le.f32.partialorder %v874, 0.7853982
        %vm876 = vcmp.lt.s32.totalorder %v561, 0
        %v877 = vand.u32 %v561, 2139095040
        %v878 = vshrl.u32 %v877, 23
        %v879 = vsub.s32 %v878, 127
        %v880 = vand.u32 2147483647, %v561
        %v881 = vand.u32 %v880, 8388607
        %v882 = vor.u32 %v881, 8388608
        %v883 = vsub.s32 0, %v882
        %v884 = vadd.s32 %v879, 1
        %vm885 = vcmp.gt.s32.totalorder %v884, 0
        %v886 = vsel %vm885, %v884, 0
        %v887 = vshrl.u32 %v886, 5
        %v888 = vand.u32 %v886, 31
        %v889 = vsub.s32 32, %v888
        %v890 = vshrl.u32 683565275, %v889
        %v891 = vshll.u32 683565275, %v888
        %v892 = vshrl.u32 2475754826, %v889
        %v893 = vor.u32 %v891, %v892
        %v894 = vshll.u32 2475754826, %v888
        %v895 = vshrl.u32 2131351028, %v889
        %v896 = vor.u32 %v894, %v895
        %v897 = vshll.u32 2131351028, %v888
        %v898 = vshrl.u32 2102212464, %v889
        %v899 = vor.u32 %v897, %v898
        %v900 = vshll.u32 2102212464, %v888
        %v901 = vshrl.u32 920167782, %v889
        %v902 = vor.u32 %v900, %v901
        %v903 = vshll.u32 920167782, %v888
        %v904 = vshrl.u32 1326507024, %v889
        %v905 = vor.u32 %v903, %v904
        %vm906 = vcmp.lt.s32.totalorder %v887, 1
        %vm907 = vcmp.lt.s32.totalorder %v887, 2
        %vm908 = vcmp.lt.s32.totalorder %v887, 3
        %vm909 = vcmp.lt.s32.totalorder %v887, 4
        %v910 = vsel %vm906, %v890, %v893
        %v911 = vsel %vm909, %v899, 2102212464
        %v912 = vsel %vm908, %v896, %v911
        %v913 = vsel %vm907, %v910, %v912
        %v914 = vsel %vm906, %v893, %v896
        %v915 = vsel %vm909, %v902, 920167782
        %v916 = vsel %vm908, %v899, %v915
        %v917 = vsel %vm907, %v914, %v916
        %v918 = vsel %vm906, %v896, %v899
        %v919 = vsel %vm909, %v905, 1326507024
        %v920 = vsel %vm908, %v902, %v919
        %v921 = vsel %vm907, %v918, %v920
        %v922 = vshll.u32 %v882, 8
        %v923 = vmul.u32.u64.compose %v922, %v921
        %v924 = vextract.low.u32 %v923
        %v925 = vextract.high.u32 %v923
        %v926 = vmul.u32.u64.compose %v922, %v917
        %v927 = vextract.low.u32 %v926
        %v928 = vextract.high.u32 %v926
        %v929 = vmul.u32 %v922, %v913
        %v930 = vadd.s32 %v925, %v927
        %vm931 = vc.u32 %v925, %v927
        %v932 = vadd.s32 %v928, 1
        %v933 = vsel %vm931, %v932, %v928
        %v934 = vadd.s32 %v929, %v933
        %v935 = vadd.s32 %v934, 536870912
        %v936 = vshrl.u32 %v935, 30
        %v937 = vshll.u32 %v936, 30
        %v938 = vsub.s32 %v934, %v937
        %vm939 = vcmp.lt.s32.totalorder %v938, 0
        %v940 = vsub.s32 0, %v938
        %v941 = vsel %vm939, %v940, %v938
        %v942 = vclz %v941
        %v943 = vsub.s32 %v942, 2
        %vm944 = vcmp.gt.s32.totalorder 0, %v943
        %v945 = vsel %vm944, 0, %v943
        %v946 = vsub.s32 32, %v945
        %v947 = vshll.u32 %v938, %v945
        %v948 = vshrl.u32 %v930, %v946
        %v949 = vor.u32 %v947, %v948
        %v950 = vsub.s32 4294967266, %v945
        %v951 = vadd.s32 %v950, 127
        %v952 = vshll.u32 %v951, 23
        %v953 = vor.u32 4788187, %v952
        %v954 = vand.u32 2147483647, %v953
        %v956 = vcvt.s32.f32 %v949
        %v957 = vmul.f32 %v956, %v954
        %v958 = vxor.u32 %v957, 2147483648
        %v959 = vsel %vm876, %v958, %v957
        %v960 = vsub.s32 4, %v936
        %v961 = vsel %vm876, %v960, %v936
        %v962 = vsel %vm875, %v561, %v959
        %v963 = vsel %vm875, 0, %v961
        %v964 = vcosq.f32.pop %v962
        %v965 = vsinq.f32.pop %v962
        %vm966 = vweird.f32 %v561
        %v967 = vadd.s32 %v963, 3
        %v968 = vand.u32 %v967, 3
        %vm969 = vcmp.lt.s32.totalorder %v968, 2
        %vm970 = vcmp.eq.s32.totalorder %v968, 0
        %v971 = vxor.u32 %v965, 2147483648
        %v972 = vsel %vm970, %v964, %v971
        %vm973 = vcmp.eq.s32.totalorder %v968, 2
        %v974 = vxor.u32 %v964, 2147483648
        %v975 = vsel %vm973, %v974, %v965
        %v976 = vsel %vm969, %v972, %v975
        %v977 = vsel %vm966, nan, %v976
        %v978 = vand.u32 2147483647, %v558
        %vm979 = vcmp.le.f32.partialorder %v978, 0.7853982
        %vm980 = vcmp.lt.s32.totalorder %v558, 0
        %v981 = vand.u32 %v558, 2139095040
        %v982 = vshrl.u32 %v981, 23
        %v983 = vsub.s32 %v982, 127
        %v984 = vand.u32 2147483647, %v558
        %v985 = vand.u32 %v984, 8388607
        %v986 = vor.u32 %v985, 8388608
        %v987 = vsub.s32 0, %v986
        %v988 = vadd.s32 %v983, 1
        %vm989 = vcmp.gt.s32.totalorder %v988, 0
        %v990 = vsel %vm989, %v988, 0
        %v991 = vshrl.u32 %v990, 5
        %v992 = vand.u32 %v990, 31
        %v993 = vsub.s32 32, %v992
        %v994 = vshrl.u32 683565275, %v993
        %v995 = vshll.u32 683565275, %v992
        %v996 = vshrl.u32 2475754826, %v993
        %v997 = vor.u32 %v995, %v996
        %v998 = vshll.u32 2475754826, %v992
        %v999 = vshrl.u32 2131351028, %v993
        %v1000 = vor.u32 %v998, %v999
        %v1001 = vshll.u32 2131351028, %v992
        %v1002 = vshrl.u32 2102212464, %v993
        %v1003 = vor.u32 %v1001, %v1002
        %v1004 = vshll.u32 2102212464, %v992
        %v1005 = vshrl.u32 920167782, %v993
        %v1006 = vor.u32 %v1004, %v1005
        %v1007 = vshll.u32 920167782, %v992
        %v1008 = vshrl.u32 1326507024, %v993
        %v1009 = vor.u32 %v1007, %v1008
        %vm1010 = vcmp.lt.s32.totalorder %v991, 1
        %vm1011 = vcmp.lt.s32.totalorder %v991, 2
        %vm1012 = vcmp.lt.s32.totalorder %v991, 3
        %vm1013 = vcmp.lt.s32.totalorder %v991, 4
        %v1014 = vsel %vm1010, %v994, %v997
        %v1015 = vsel %vm1013, %v1003, 2102212464
        %v1016 = vsel %vm1012, %v1000, %v1015
        %v1017 = vsel %vm1011, %v1014, %v1016
        %v1018 = vsel %vm1010, %v997, %v1000
        %v1019 = vsel %vm1013, %v1006, 920167782
        %v1020 = vsel %vm1012, %v1003, %v1019
        %v1021 = vsel %vm1011, %v1018, %v1020
        %v1022 = vsel %vm1010, %v1000, %v1003
        %v1023 = vsel %vm1013, %v1009, 1326507024
        %v1024 = vsel %vm1012, %v1006, %v1023
        %v1025 = vsel %vm1011, %v1022, %v1024
        %v1026 = vshll.u32 %v986, 8
        %v1027 = vmul.u32.u64.compose %v1026, %v1025
        %v1028 = vextract.low.u32 %v1027
        %v1029 = vextract.high.u32 %v1027
        %v1030 = vmul.u32.u64.compose %v1026, %v1021
        %v1031 = vextract.low.u32 %v1030
        %v1032 = vextract.high.u32 %v1030
        %v1033 = vmul.u32 %v1026, %v1017
        %v1034 = vadd.s32 %v1029, %v1031
        %vm1035 = vc.u32 %v1029, %v1031
        %v1036 = vadd.s32 %v1032, 1
        %v1037 = vsel %vm1035, %v1036, %v1032
        %v1038 = vadd.s32 %v1033, %v1037
        %v1039 = vadd.s32 %v1038, 536870912
        %v1040 = vshrl.u32 %v1039, 30
        %v1041 = vshll.u32 %v1040, 30
        %v1042 = vsub.s32 %v1038, %v1041
        %vm1043 = vcmp.lt.s32.totalorder %v1042, 0
        %v1044 = vsub.s32 0, %v1042
        %v1045 = vsel %vm1043, %v1044, %v1042
        %v1046 = vclz %v1045
        %v1047 = vsub.s32 %v1046, 2
        %vm1048 = vcmp.gt.s32.totalorder 0, %v1047
        %v1049 = vsel %vm1048, 0, %v1047
        %v1050 = vsub.s32 32, %v1049
        %v1051 = vshll.u32 %v1042, %v1049
        %v1052 = vshrl.u32 %v1034, %v1050
        %v1053 = vor.u32 %v1051, %v1052
        %v1054 = vsub.s32 4294967266, %v1049
        %v1055 = vadd.s32 %v1054, 127
        %v1056 = vshll.u32 %v1055, 23
        %v1057 = vor.u32 4788187, %v1056
        %v1058 = vand.u32 2147483647, %v1057
        %v1060 = vcvt.s32.f32 %v1053
        %v1061 = vmul.f32 %v1060, %v1058
        %v1062 = vxor.u32 %v1061, 2147483648
        %v1063 = vsel %vm980, %v1062, %v1061
        %v1064 = vsub.s32 4, %v1040
        %v1065 = vsel %vm980, %v1064, %v1040
        %v1066 = vsel %vm979, %v558, %v1063
        %v1067 = vsel %vm979, 0, %v1065
        %v1068 = vcosq.f32.pop %v1066
        %v1069 = vsinq.f32.pop %v1066
        %vm1070 = vweird.f32 %v558
        %v1071 = vand.u32 %v1067, 3
        %vm1072 = vcmp.lt.s32.totalorder %v1071, 2
        %vm1073 = vcmp.eq.s32.totalorder %v1071, 0
        %v1074 = vxor.u32 %v1069, 2147483648
        %v1075 = vsel %vm1073, %v1068, %v1074
        %vm1076 = vcmp.eq.s32.totalorder %v1071, 2
        %v1077 = vxor.u32 %v1068, 2147483648
        %v1078 = vsel %vm1076, %v1077, %v1069
        %v1079 = vsel %vm1072, %v1075, %v1078
        %v1080 = vsel %vm1070, nan, %v1079
        %v1081 = vand.u32 2147483647, %v559
        %vm1082 = vcmp.le.f32.partialorder %v1081, 0.7853982
        %vm1083 = vcmp.lt.s32.totalorder %v559, 0
        %v1084 = vand.u32 %v559, 2139095040
        %v1085 = vshrl.u32 %v1084, 23
        %v1086 = vsub.s32 %v1085, 127
        %v1087 = vand.u32 2147483647, %v559
        %v1088 = vand.u32 %v1087, 8388607
        %v1089 = vor.u32 %v1088, 8388608
        %v1090 = vsub.s32 0, %v1089
        %v1091 = vadd.s32 %v1086, 1
        %vm1092 = vcmp.gt.s32.totalorder %v1091, 0
        %v1093 = vsel %vm1092, %v1091, 0
        %v1094 = vshrl.u32 %v1093, 5
        %v1095 = vand.u32 %v1093, 31
        %v1096 = vsub.s32 32, %v1095
        %v1097 = vshrl.u32 683565275, %v1096
        %v1098 = vshll.u32 683565275, %v1095
        %v1099 = vshrl.u32 2475754826, %v1096
        %v1100 = vor.u32 %v1098, %v1099
        %v1101 = vshll.u32 2475754826, %v1095
        %v1102 = vshrl.u32 2131351028, %v1096
        %v1103 = vor.u32 %v1101, %v1102
        %v1104 = vshll.u32 2131351028, %v1095
        %v1105 = vshrl.u32 2102212464, %v1096
        %v1106 = vor.u32 %v1104, %v1105
        %v1107 = vshll.u32 2102212464, %v1095
        %v1108 = vshrl.u32 920167782, %v1096
        %v1109 = vor.u32 %v1107, %v1108
        %v1110 = vshll.u32 920167782, %v1095
        %v1111 = vshrl.u32 1326507024, %v1096
        %v1112 = vor.u32 %v1110, %v1111
        %vm1113 = vcmp.lt.s32.totalorder %v1094, 1
        %vm1114 = vcmp.lt.s32.totalorder %v1094, 2
        %vm1115 = vcmp.lt.s32.totalorder %v1094, 3
        %vm1116 = vcmp.lt.s32.totalorder %v1094, 4
        %v1117 = vsel %vm1113, %v1097, %v1100
        %v1118 = vsel %vm1116, %v1106, 2102212464
        %v1119 = vsel %vm1115, %v1103, %v1118
        %v1120 = vsel %vm1114, %v1117, %v1119
        %v1121 = vsel %vm1113, %v1100, %v1103
        %v1122 = vsel %vm1116, %v1109, 920167782
        %v1123 = vsel %vm1115, %v1106, %v1122
        %v1124 = vsel %vm1114, %v1121, %v1123
        %v1125 = vsel %vm1113, %v1103, %v1106
        %v1126 = vsel %vm1116, %v1112, 1326507024
        %v1127 = vsel %vm1115, %v1109, %v1126
        %v1128 = vsel %vm1114, %v1125, %v1127
        %v1129 = vshll.u32 %v1089, 8
        %v1130 = vmul.u32.u64.compose %v1129, %v1128
        %v1131 = vextract.low.u32 %v1130
        %v1132 = vextract.high.u32 %v1130
        %v1133 = vmul.u32.u64.compose %v1129, %v1124
        %v1134 = vextract.low.u32 %v1133
        %v1135 = vextract.high.u32 %v1133
        %v1136 = vmul.u32 %v1129, %v1120
        %v1137 = vadd.s32 %v1132, %v1134
        %vm1138 = vc.u32 %v1132, %v1134
        %v1139 = vadd.s32 %v1135, 1
        %v1140 = vsel %vm1138, %v1139, %v1135
        %v1141 = vadd.s32 %v1136, %v1140
        %v1142 = vadd.s32 %v1141, 536870912
        %v1143 = vshrl.u32 %v1142, 30
        %v1144 = vshll.u32 %v1143, 30
        %v1145 = vsub.s32 %v1141, %v1144
        %vm1146 = vcmp.lt.s32.totalorder %v1145, 0
        %v1147 = vsub.s32 0, %v1145
        %v1148 = vsel %vm1146, %v1147, %v1145
        %v1149 = vclz %v1148
        %v1150 = vsub.s32 %v1149, 2
        %vm1151 = vcmp.gt.s32.totalorder 0, %v1150
        %v1152 = vsel %vm1151, 0, %v1150
        %v1153 = vsub.s32 32, %v1152
        %v1154 = vshll.u32 %v1145, %v1152
        %v1155 = vshrl.u32 %v1137, %v1153
        %v1156 = vor.u32 %v1154, %v1155
        %v1157 = vsub.s32 4294967266, %v1152
        %v1158 = vadd.s32 %v1157, 127
        %v1159 = vshll.u32 %v1158, 23
        %v1160 = vor.u32 4788187, %v1159
        %v1161 = vand.u32 2147483647, %v1160
        %v1163 = vcvt.s32.f32 %v1156
        %v1164 = vmul.f32 %v1163, %v1161
        %v1165 = vxor.u32 %v1164, 2147483648
        %v1166 = vsel %vm1083, %v1165, %v1164
        %v1167 = vsub.s32 4, %v1143
        %v1168 = vsel %vm1083, %v1167, %v1143
        %v1169 = vsel %vm1082, %v559, %v1166
        %v1170 = vsel %vm1082, 0, %v1168
        %v1171 = vcosq.f32.pop %v1169
        %v1172 = vsinq.f32.pop %v1169
        %vm1173 = vweird.f32 %v559
        %v1174 = vand.u32 %v1170, 3
        %vm1175 = vcmp.lt.s32.totalorder %v1174, 2
        %vm1176 = vcmp.eq.s32.totalorder %v1174, 0
        %v1177 = vxor.u32 %v1172, 2147483648
        %v1178 = vsel %vm1176, %v1171, %v1177
        %vm1179 = vcmp.eq.s32.totalorder %v1174, 2
        %v1180 = vxor.u32 %v1171, 2147483648
        %v1181 = vsel %vm1179, %v1180, %v1172
        %v1182 = vsel %vm1175, %v1178, %v1181
        %v1183 = vsel %vm1173, nan, %v1182
        %v1184 = vand.u32 2147483647, %v560
        %vm1185 = vcmp.le.f32.partialorder %v1184, 0.7853982
        %vm1186 = vcmp.lt.s32.totalorder %v560, 0
        %v1187 = vand.u32 %v560, 2139095040
        %v1188 = vshrl.u32 %v1187, 23
        %v1189 = vsub.s32 %v1188, 127
        %v1190 = vand.u32 2147483647, %v560
        %v1191 = vand.u32 %v1190, 8388607
        %v1192 = vor.u32 %v1191, 8388608
        %v1193 = vsub.s32 0, %v1192
        %v1194 = vadd.s32 %v1189, 1
        %vm1195 = vcmp.gt.s32.totalorder %v1194, 0
        %v1196 = vsel %vm1195, %v1194, 0
        %v1197 = vshrl.u32 %v1196, 5
        %v1198 = vand.u32 %v1196, 31
        %v1199 = vsub.s32 32, %v1198
        %v1200 = vshrl.u32 683565275, %v1199
        %v1201 = vshll.u32 683565275, %v1198
        %v1202 = vshrl.u32 2475754826, %v1199
        %v1203 = vor.u32 %v1201, %v1202
        %v1204 = vshll.u32 2475754826, %v1198
        %v1205 = vshrl.u32 2131351028, %v1199
        %v1206 = vor.u32 %v1204, %v1205
        %v1207 = vshll.u32 2131351028, %v1198
        %v1208 = vshrl.u32 2102212464, %v1199
        %v1209 = vor.u32 %v1207, %v1208
        %v1210 = vshll.u32 2102212464, %v1198
        %v1211 = vshrl.u32 920167782, %v1199
        %v1212 = vor.u32 %v1210, %v1211
        %v1213 = vshll.u32 920167782, %v1198
        %v1214 = vshrl.u32 1326507024, %v1199
        %v1215 = vor.u32 %v1213, %v1214
        %vm1216 = vcmp.lt.s32.totalorder %v1197, 1
        %vm1217 = vcmp.lt.s32.totalorder %v1197, 2
        %vm1218 = vcmp.lt.s32.totalorder %v1197, 3
        %vm1219 = vcmp.lt.s32.totalorder %v1197, 4
        %v1220 = vsel %vm1216, %v1200, %v1203
        %v1221 = vsel %vm1219, %v1209, 2102212464
        %v1222 = vsel %vm1218, %v1206, %v1221
        %v1223 = vsel %vm1217, %v1220, %v1222
        %v1224 = vsel %vm1216, %v1203, %v1206
        %v1225 = vsel %vm1219, %v1212, 920167782
        %v1226 = vsel %vm1218, %v1209, %v1225
        %v1227 = vsel %vm1217, %v1224, %v1226
        %v1228 = vsel %vm1216, %v1206, %v1209
        %v1229 = vsel %vm1219, %v1215, 1326507024
        %v1230 = vsel %vm1218, %v1212, %v1229
        %v1231 = vsel %vm1217, %v1228, %v1230
        %v1232 = vshll.u32 %v1192, 8
        %v1233 = vmul.u32.u64.compose %v1232, %v1231
        %v1234 = vextract.low.u32 %v1233
        %v1235 = vextract.high.u32 %v1233
        %v1236 = vmul.u32.u64.compose %v1232, %v1227
        %v1237 = vextract.low.u32 %v1236
        %v1238 = vextract.high.u32 %v1236
        %v1239 = vmul.u32 %v1232, %v1223
        %v1240 = vadd.s32 %v1235, %v1237
        %vm1241 = vc.u32 %v1235, %v1237
        %v1242 = vadd.s32 %v1238, 1
        %v1243 = vsel %vm1241, %v1242, %v1238
        %v1244 = vadd.s32 %v1239, %v1243
        %v1245 = vadd.s32 %v1244, 536870912
        %v1246 = vshrl.u32 %v1245, 30
        %v1247 = vshll.u32 %v1246, 30
        %v1248 = vsub.s32 %v1244, %v1247
        %vm1249 = vcmp.lt.s32.totalorder %v1248, 0
        %v1250 = vsub.s32 0, %v1248
        %v1251 = vsel %vm1249, %v1250, %v1248
        %v1252 = vclz %v1251
        %v1253 = vsub.s32 %v1252, 2
        %vm1254 = vcmp.gt.s32.totalorder 0, %v1253
        %v1255 = vsel %vm1254, 0, %v1253
        %v1256 = vsub.s32 32, %v1255
        %v1257 = vshll.u32 %v1248, %v1255
        %v1258 = vshrl.u32 %v1240, %v1256
        %v1259 = vor.u32 %v1257, %v1258
        %v1260 = vsub.s32 4294967266, %v1255
        %v1261 = vadd.s32 %v1260, 127
        %v1262 = vshll.u32 %v1261, 23
        %v1263 = vor.u32 4788187, %v1262
        %v1264 = vand.u32 2147483647, %v1263
        %v1266 = vcvt.s32.f32 %v1259
        %v1267 = vmul.f32 %v1266, %v1264
        %v1268 = vxor.u32 %v1267, 2147483648
        %v1269 = vsel %vm1186, %v1268, %v1267
        %v1270 = vsub.s32 4, %v1246
        %v1271 = vsel %vm1186, %v1270, %v1246
        %v1272 = vsel %vm1185, %v560, %v1269
        %v1273 = vsel %vm1185, 0, %v1271
        %v1274 = vcosq.f32.pop %v1272
        %v1275 = vsinq.f32.pop %v1272
        %vm1276 = vweird.f32 %v560
        %v1277 = vand.u32 %v1273, 3
        %vm1278 = vcmp.lt.s32.totalorder %v1277, 2
        %vm1279 = vcmp.eq.s32.totalorder %v1277, 0
        %v1280 = vxor.u32 %v1275, 2147483648
        %v1281 = vsel %vm1279, %v1274, %v1280
        %vm1282 = vcmp.eq.s32.totalorder %v1277, 2
        %v1283 = vxor.u32 %v1274, 2147483648
        %v1284 = vsel %vm1282, %v1283, %v1275
        %v1285 = vsel %vm1278, %v1281, %v1284
        %v1286 = vsel %vm1276, nan, %v1285
        %v1287 = vand.u32 2147483647, %v561
        %vm1288 = vcmp.le.f32.partialorder %v1287, 0.7853982
        %vm1289 = vcmp.lt.s32.totalorder %v561, 0
        %v1290 = vand.u32 %v561, 2139095040
        %v1291 = vshrl.u32 %v1290, 23
        %v1292 = vsub.s32 %v1291, 127
        %v1293 = vand.u32 2147483647, %v561
        %v1294 = vand.u32 %v1293, 8388607
        %v1295 = vor.u32 %v1294, 8388608
        %v1296 = vsub.s32 0, %v1295
        %v1297 = vadd.s32 %v1292, 1
        %vm1298 = vcmp.gt.s32.totalorder %v1297, 0
        %v1299 = vsel %vm1298, %v1297, 0
        %v1300 = vshrl.u32 %v1299, 5
        %v1301 = vand.u32 %v1299, 31
        %v1302 = vsub.s32 32, %v1301
        %v1303 = vshrl.u32 683565275, %v1302
        %v1304 = vshll.u32 683565275, %v1301
        %v1305 = vshrl.u32 2475754826, %v1302
        %v1306 = vor.u32 %v1304, %v1305
        %v1307 = vshll.u32 2475754826, %v1301
        %v1308 = vshrl.u32 2131351028, %v1302
        %v1309 = vor.u32 %v1307, %v1308
        %v1310 = vshll.u32 2131351028, %v1301
        %v1311 = vshrl.u32 2102212464, %v1302
        %v1312 = vor.u32 %v1310, %v1311
        %v1313 = vshll.u32 2102212464, %v1301
        %v1314 = vshrl.u32 920167782, %v1302
        %v1315 = vor.u32 %v1313, %v1314
        %v1316 = vshll.u32 920167782, %v1301
        %v1317 = vshrl.u32 1326507024, %v1302
        %v1318 = vor.u32 %v1316, %v1317
        %vm1319 = vcmp.lt.s32.totalorder %v1300, 1
        %vm1320 = vcmp.lt.s32.totalorder %v1300, 2
        %vm1321 = vcmp.lt.s32.totalorder %v1300, 3
        %vm1322 = vcmp.lt.s32.totalorder %v1300, 4
        %v1323 = vsel %vm1319, %v1303, %v1306
        %v1324 = vsel %vm1322, %v1312, 2102212464
        %v1325 = vsel %vm1321, %v1309, %v1324
        %v1326 = vsel %vm1320, %v1323, %v1325
        %v1327 = vsel %vm1319, %v1306, %v1309
        %v1328 = vsel %vm1322, %v1315, 920167782
        %v1329 = vsel %vm1321, %v1312, %v1328
        %v1330 = vsel %vm1320, %v1327, %v1329
        %v1331 = vsel %vm1319, %v1309, %v1312
        %v1332 = vsel %vm1322, %v1318, 1326507024
        %v1333 = vsel %vm1321, %v1315, %v1332
        %v1334 = vsel %vm1320, %v1331, %v1333
        %v1335 = vshll.u32 %v1295, 8
        %v1336 = vmul.u32.u64.compose %v1335, %v1334
        %v1337 = vextract.low.u32 %v1336
        %v1338 = vextract.high.u32 %v1336
        %v1339 = vmul.u32.u64.compose %v1335, %v1330
        %v1340 = vextract.low.u32 %v1339
        %v1341 = vextract.high.u32 %v1339
        %v1342 = vmul.u32 %v1335, %v1326
        %v1343 = vadd.s32 %v1338, %v1340
        %vm1344 = vc.u32 %v1338, %v1340
        %v1345 = vadd.s32 %v1341, 1
        %v1346 = vsel %vm1344, %v1345, %v1341
        %v1347 = vadd.s32 %v1342, %v1346
        %v1348 = vadd.s32 %v1347, 536870912
        %v1349 = vshrl.u32 %v1348, 30
        %v1350 = vshll.u32 %v1349, 30
        %v1351 = vsub.s32 %v1347, %v1350
        %vm1352 = vcmp.lt.s32.totalorder %v1351, 0
        %v1353 = vsub.s32 0, %v1351
        %v1354 = vsel %vm1352, %v1353, %v1351
        %v1355 = vclz %v1354
        %v1356 = vsub.s32 %v1355, 2
        %vm1357 = vcmp.gt.s32.totalorder 0, %v1356
        %v1358 = vsel %vm1357, 0, %v1356
        %v1359 = vsub.s32 32, %v1358
        %v1360 = vshll.u32 %v1351, %v1358
        %v1361 = vshrl.u32 %v1343, %v1359
        %v1362 = vor.u32 %v1360, %v1361
        %v1363 = vsub.s32 4294967266, %v1358
        %v1364 = vadd.s32 %v1363, 127
        %v1365 = vshll.u32 %v1364, 23
        %v1366 = vor.u32 4788187, %v1365
        %v1367 = vand.u32 2147483647, %v1366
        %v1369 = vcvt.s32.f32 %v1362
        %v1370 = vmul.f32 %v1369, %v1367
        %v1371 = vxor.u32 %v1370, 2147483648
        %v1372 = vsel %vm1289, %v1371, %v1370
        %v1373 = vsub.s32 4, %v1349
        %v1374 = vsel %vm1289, %v1373, %v1349
        %v1375 = vsel %vm1288, %v561, %v1372
        %v1376 = vsel %vm1288, 0, %v1374
        %v1377 = vcosq.f32.pop %v1375
        %v1378 = vsinq.f32.pop %v1375
        %vm1379 = vweird.f32 %v561
        %v1380 = vand.u32 %v1376, 3
        %vm1381 = vcmp.lt.s32.totalorder %v1380, 2
        %vm1382 = vcmp.eq.s32.totalorder %v1380, 0
        %v1383 = vxor.u32 %v1378, 2147483648
        %v1384 = vsel %vm1382, %v1377, %v1383
        %vm1385 = vcmp.eq.s32.totalorder %v1380, 2
        %v1386 = vxor.u32 %v1377, 2147483648
        %v1387 = vsel %vm1385, %v1386, %v1378
        %v1388 = vsel %vm1381, %v1384, %v1387
        %v1389 = vsel %vm1379, nan, %v1388
        %v1390 = vmul.f32 %v665, %v1080
        %v1391 = vmul.f32 %v769, %v1183
        %v1392 = vmul.f32 %v873, %v1286
        %v1393 = vmul.f32 %v977, %v1389
        %v1394 = vmul.f32 %v1390, 2.0
        %v1395 = vmul.f32 %v1391, 2.0
        %v1396 = vmul.f32 %v1392, 2.0
        %v1397 = vmul.f32 %v1393, 2.0
        %v1398 = vmul.f32 %v665, %v665
        %v1399 = vmul.f32 %v769, %v769
        %v1400 = vmul.f32 %v873, %v873
        %v1401 = vmul.f32 %v977, %v977
        %v1402 = vmul.f32 %v1398, 2.0
        %v1403 = vmul.f32 %v1399, 2.0
        %v1404 = vmul.f32 %v1400, 2.0
        %v1405 = vmul.f32 %v1401, 2.0
        %v1406 = vsub.f32 1.0, %v1402
        %v1407 = vsub.f32 1.0, %v1403
        %v1408 = vsub.f32 1.0, %v1404
        %v1409 = vsub.f32 1.0, %v1405
        %v1410 = vpack.c.bf16 %v665, %v558
        %v1411 = vpack.c.bf16 %v769, %v559
        %v1412 = vpack.c.bf16 %v873, %v560
        %v1413 = vpack.c.bf16 %v977, %v561
        %v1414 = vpack.c.bf16 %v1394, %v1080
        %v1415 = vpack.c.bf16 %v1395, %v1183
        %v1416 = vpack.c.bf16 %v1396, %v1286
        %v1417 = vpack.c.bf16 %v1397, %v1389
        %v1418 = vpack.c.bf16 %v1406, %v1406
        %v1419 = vpack.c.bf16 %v1407, %v1407
        %v1420 = vpack.c.bf16 %v1408, %v1408
        %v1421 = vpack.c.bf16 %v1409, %v1409
        %v1422 = vld [vmem:[%s1] sm:$0xf]
        %v1423 = vld [vmem:[%s1 + $0x4] sm:$0xf]
        %v1424 = vld [vmem:[%s1 + $0x8] sm:$0xf]
        %v1425 = vld [vmem:[%s1 + $0xc] sm:$0xf]
        %v1426 = vld [vmem:[%s1 + $0x10] sm:$0xf]
        %v1427 = vld [vmem:[%s1 + $0x14] sm:$0xf]
        %v1428 = vld [vmem:[%s1 + $0x18] sm:$0xf]
        %v1429 = vld [vmem:[%s1 + $0x1c] sm:$0xf]
        %v1438 = vunpack.c.l.b16 %v1422
        %v1439 = vunpack.c.l.b16 %v1423
        %v1440 = vunpack.c.l.b16 %v1424
        %v1441 = vunpack.c.l.b16 %v1425
        %v1442 = vunpack.c.l.b16 %v1426
        %v1443 = vunpack.c.l.b16 %v1427
        %v1444 = vunpack.c.l.b16 %v1428
        %v1445 = vunpack.c.l.b16 %v1429
        %v1446 = vpack.c.b16 %v1439, %v1438
        %v1447 = vpack.c.b16 %v1441, %v1440
        %v1448 = vpack.c.b16 %v1443, %v1442
        %v1449 = vpack.c.b16 %v1445, %v1444
        %vm1450 = vcmask 326656
        %v1452 = vsel %vm1450, %v1446, 0
        %v1455 = vsel %vm1450, %v1447, 0
        %v1458 = vsel %vm1450, %v1448, 0
        %v1461 = vsel %vm1450, %v1449, 0
        %v1464 = vsel %vm542, %v1418, 0
        %v1467 = vsel %vm542, %v1419, 0
        %v1470 = vsel %vm542, %v1420, 0
        %v1473 = vsel %vm542, %v1421, 0
        %1475 = vmatprep.subr.bf16.mxu0 0
        %1476 = vmatpush1.bf16.msra.mxu0 0
        %1477 = vmatprep.subr.bf16.mxu0 0
        %1478 = vmatpush1.bf16.msra.mxu0 0
        %1479 = vmatprep.subr.bf16.mxu0 0
        %1480 = vmatpush1.bf16.msra.mxu0 0
        %1481 = vmatprep.subr.bf16.mxu0 0
        %1482 = vmatpush1.bf16.msra.mxu0 0
        %1483 = vmatprep.subr.bf16.mxu0 0
        %1484 = vmatpush1.bf16.msra.mxu0 0
        %1485 = vmatprep.subr.bf16.mxu0 %v1467
        %1486 = vmatpush1.bf16.msra.mxu0 %v1464
        %1487 = vmatprep.subr.bf16.mxu0 %v1415
        %1488 = vmatpush1.bf16.msra.mxu0 %v1414
        %1489 = vmatprep.subr.bf16.mxu0 %v1411
        %1490 = vmatpush1.bf16.msra.mxu0 %v1410
        %1491 = vmatprep.subr.bf16.mxu0 0
        %1492 = vmatpush2.bf16.msra.mxu0 0
        %1493 = vmatprep.subr.bf16.mxu0 0
        %1494 = vmatpush2.bf16.msra.mxu0 0
        %1495 = vmatprep.subr.bf16.mxu0 0
        %1496 = vmatpush2.bf16.msra.mxu0 0
        %1497 = vmatprep.subr.bf16.mxu0 0
        %1498 = vmatpush2.bf16.msra.mxu0 0
        %1499 = vmatprep.subr.bf16.mxu0 0
        %1500 = vmatpush2.bf16.msra.mxu0 0
        %1501 = vmatprep.subr.bf16.mxu0 0
        %1502 = vmatpush2.bf16.msra.mxu0 0
        %1503 = vmatprep.subr.bf16.mxu0 0
        %1504 = vmatpush2.bf16.msra.mxu0 0
        %1505 = vmatprep.subr.bf16.mxu0 0
        %1506 = vmatpush2.bf16.msra.mxu0 0
        %1507 = vmatprep.mubr.bf16.mxu0 0
        %1508 = vmatmul.mubr.bf16.gmra.mxu0 %v1452
        %v1509 = vpop.f32.mrf.mxu0
        %v1510 = vadd.f32 0.0, %v1509
        %v1511 = vpop.f32.mrf.mxu0
        %v1512 = vadd.f32 0.0, %v1511
        %v1513 = vpop.f32.mrf.mxu0
        %v1514 = vadd.f32 0.0, %v1513
        %v1515 = vpop.f32.mrf.mxu0
        %v1516 = vadd.f32 0.0, %v1515
        %1517 = vmatprep.mubr.bf16.mxu0 0
        %1518 = vmatmul.mubr.bf16.gmra.mxu0 %v1455
        %v1519 = vpop.f32.mrf.mxu0
        %v1520 = vadd.f32 0.0, %v1519
        %v1521 = vpop.f32.mrf.mxu0
        %v1522 = vadd.f32 0.0, %v1521
        %v1523 = vpop.f32.mrf.mxu0
        %v1524 = vadd.f32 0.0, %v1523
        %v1525 = vpop.f32.mrf.mxu0
        %v1526 = vadd.f32 0.0, %v1525
        %1527 = vmatprep.mubr.bf16.mxu0 0
        %1528 = vmatmul.mubr.bf16.gmra.mxu0 %v1458
        %v1529 = vpop.f32.mrf.mxu0
        %v1530 = vadd.f32 0.0, %v1529
        %v1531 = vpop.f32.mrf.mxu0
        %v1532 = vadd.f32 0.0, %v1531
        %v1533 = vpop.f32.mrf.mxu0
        %v1534 = vadd.f32 0.0, %v1533
        %v1535 = vpop.f32.mrf.mxu0
        %v1536 = vadd.f32 0.0, %v1535
        %1537 = vmatprep.mubr.bf16.mxu0 0
        %1538 = vmatmul.mubr.bf16.gmra.mxu0 %v1461
        %v1539 = vpop.f32.mrf.mxu0
        %v1540 = vadd.f32 0.0, %v1539
        %v1541 = vpop.f32.mrf.mxu0
        %v1542 = vadd.f32 0.0, %v1541
        %v1543 = vpop.f32.mrf.mxu0
        %v1544 = vadd.f32 0.0, %v1543
        %v1545 = vpop.f32.mrf.mxu0
        %v1546 = vadd.f32 0.0, %v1545
        %1547 = vdwg.mxu0
        %1548 = vmatprep.subr.bf16.mxu0 0
        %1549 = vmatpush1.bf16.msra.mxu0 0
        %1550 = vmatprep.subr.bf16.mxu0 0
        %1551 = vmatpush1.bf16.msra.mxu0 0
        %1552 = vmatprep.subr.bf16.mxu0 0
        %1553 = vmatpush1.bf16.msra.mxu0 0
        %1554 = vmatprep.subr.bf16.mxu0 0
        %1555 = vmatpush1.bf16.msra.mxu0 0
        %1556 = vmatprep.subr.bf16.mxu0 0
        %1557 = vmatpush1.bf16.msra.mxu0 0
        %1558 = vmatprep.subr.bf16.mxu0 %v1473
        %1559 = vmatpush1.bf16.msra.mxu0 %v1470
        %1560 = vmatprep.subr.bf16.mxu0 %v1417
        %1561 = vmatpush1.bf16.msra.mxu0 %v1416
        %1562 = vmatprep.subr.bf16.mxu0 %v1413
        %1563 = vmatpush1.bf16.msra.mxu0 %v1412
        %1564 = vmatprep.subr.bf16.mxu0 0
        %1565 = vmatpush2.bf16.msra.mxu0 0
        %1566 = vmatprep.subr.bf16.mxu0 0
        %1567 = vmatpush2.bf16.msra.mxu0 0
        %1568 = vmatprep.subr.bf16.mxu0 0
        %1569 = vmatpush2.bf16.msra.mxu0 0
        %1570 = vmatprep.subr.bf16.mxu0 0
        %1571 = vmatpush2.bf16.msra.mxu0 0
        %1572 = vmatprep.subr.bf16.mxu0 0
        %1573 = vmatpush2.bf16.msra.mxu0 0
        %1574 = vmatprep.subr.bf16.mxu0 0
        %1575 = vmatpush2.bf16.msra.mxu0 0
        %1576 = vmatprep.subr.bf16.mxu0 0
        %1577 = vmatpush2.bf16.msra.mxu0 0
        %1578 = vmatprep.subr.bf16.mxu0 0
        %1579 = vmatpush2.bf16.msra.mxu0 0
        %1580 = vmatprep.mubr.bf16.mxu0 0
        %1581 = vmatmul.mubr.bf16.gmra.mxu0 %v1452
        %v1582 = vpop.f32.mrf.mxu0
        %v1583 = vadd.f32 0.0, %v1582
        %v1584 = vpop.f32.mrf.mxu0
        %v1585 = vadd.f32 0.0, %v1584
        %v1586 = vpop.f32.mrf.mxu0
        %v1587 = vadd.f32 0.0, %v1586
        %v1588 = vpop.f32.mrf.mxu0
        %v1589 = vadd.f32 0.0, %v1588
        %1590 = vmatprep.mubr.bf16.mxu0 0
        %1591 = vmatmul.mubr.bf16.gmra.mxu0 %v1455
        %v1592 = vpop.f32.mrf.mxu0
        %v1593 = vadd.f32 0.0, %v1592
        %v1594 = vpop.f32.mrf.mxu0
        %v1595 = vadd.f32 0.0, %v1594
        %v1596 = vpop.f32.mrf.mxu0
        %v1597 = vadd.f32 0.0, %v1596
        %v1598 = vpop.f32.mrf.mxu0
        %v1599 = vadd.f32 0.0, %v1598
        %1600 = vmatprep.mubr.bf16.mxu0 0
        %1601 = vmatmul.mubr.bf16.gmra.mxu0 %v1458
        %v1602 = vpop.f32.mrf.mxu0
        %v1603 = vadd.f32 0.0, %v1602
        %v1604 = vpop.f32.mrf.mxu0
        %v1605 = vadd.f32 0.0, %v1604
        %v1606 = vpop.f32.mrf.mxu0
        %v1607 = vadd.f32 0.0, %v1606
        %v1608 = vpop.f32.mrf.mxu0
        %v1609 = vadd.f32 0.0, %v1608
        %1610 = vmatprep.mubr.bf16.mxu0 0
        %1611 = vmatmul.mubr.bf16.gmra.mxu0 %v1461
        %v1612 = vpop.f32.mrf.mxu0
        %v1613 = vadd.f32 0.0, %v1612
        %v1614 = vpop.f32.mrf.mxu0
        %v1615 = vadd.f32 0.0, %v1614
        %v1616 = vpop.f32.mrf.mxu0
        %v1617 = vadd.f32 0.0, %v1616
        %v1618 = vpop.f32.mrf.mxu0
        %v1619 = vadd.f32 0.0, %v1618
        %1620 = vdwg.mxu0
        %v1621 = vmax.f32 %v1510, 0.0
        %v1622 = vmax.f32 %v1512, 0.0
        %v1623 = vmax.f32 %v1583, 0.0
        %v1624 = vmax.f32 %v1585, 0.0
        %v1625 = vmax.f32 %v1514, 0.0
        %v1626 = vmax.f32 %v1516, 0.0
        %v1627 = vmax.f32 %v1587, 0.0
        %v1628 = vmax.f32 %v1589, 0.0
        %v1629 = vmax.f32 %v1520, 0.0
        %v1630 = vmax.f32 %v1522, 0.0
        %v1631 = vmax.f32 %v1593, 0.0
        %v1632 = vmax.f32 %v1595, 0.0
        %v1633 = vmax.f32 %v1524, 0.0
        %v1634 = vmax.f32 %v1526, 0.0
        %v1635 = vmax.f32 %v1597, 0.0
        %v1636 = vmax.f32 %v1599, 0.0
        %v1637 = vmax.f32 %v1530, 0.0
        %v1638 = vmax.f32 %v1532, 0.0
        %v1639 = vmax.f32 %v1603, 0.0
        %v1640 = vmax.f32 %v1605, 0.0
        %v1641 = vmax.f32 %v1534, 0.0
        %v1642 = vmax.f32 %v1536, 0.0
        %v1643 = vmax.f32 %v1607, 0.0
        %v1644 = vmax.f32 %v1609, 0.0
        %v1645 = vmax.f32 %v1540, 0.0
        %v1646 = vmax.f32 %v1542, 0.0
        %v1647 = vmax.f32 %v1613, 0.0
        %v1648 = vmax.f32 %v1615, 0.0
        %v1649 = vmax.f32 %v1544, 0.0
        %v1650 = vmax.f32 %v1546, 0.0
        %v1651 = vmax.f32 %v1617, 0.0
        %v1652 = vmax.f32 %v1619, 0.0
        %v1653 = vpack.c.bf16 %v1625, %v1621
        %v1654 = vpack.c.bf16 %v1626, %v1622
        %v1655 = vpack.c.bf16 %v1627, %v1623
        %v1656 = vpack.c.bf16 %v1628, %v1624
        %v1657 = vpack.c.bf16 %v1633, %v1629
        %v1658 = vpack.c.bf16 %v1634, %v1630
        %v1659 = vpack.c.bf16 %v1635, %v1631
        %v1660 = vpack.c.bf16 %v1636, %v1632
        %v1661 = vpack.c.bf16 %v1641, %v1637
        %v1662 = vpack.c.bf16 %v1642, %v1638
        %v1663 = vpack.c.bf16 %v1643, %v1639
        %v1664 = vpack.c.bf16 %v1644, %v1640
        %v1665 = vpack.c.bf16 %v1649, %v1645
        %v1666 = vpack.c.bf16 %v1650, %v1646
        %v1667 = vpack.c.bf16 %v1651, %v1647
        %v1668 = vpack.c.bf16 %v1652, %v1648
        %v1669 = vld [vmem:[%s2] sm:$0xf]
        %v1670 = vld [vmem:[%s2 + $0x4] sm:$0xf]
        %v1671 = vld [vmem:[%s2 + $0x8] sm:$0xf]
        %v1672 = vld [vmem:[%s2 + $0xc] sm:$0xf]
        %v1677 = vunpack.c.l.b16 %v1669
        %v1678 = vunpack.c.l.b16 %v1670
        %v1679 = vunpack.c.l.b16 %v1671
        %v1680 = vunpack.c.l.b16 %v1672
        %v1681 = vpack.c.b16 %v1678, %v1677
        %v1682 = vpack.c.b16 %v1680, %v1679
        %vm1683 = vcmask 588800
        %v1685 = vsel %vm1683, %v1681, 0
        %v1688 = vsel %vm1683, %v1682, 0
        %v1691 = vsel %vm542, %v262, 0
        %1693 = vmatprep.subr.bf16.mxu0 0
        %1694 = vmatpush1.bf16.msra.mxu0 0
        %1695 = vmatprep.subr.bf16.mxu0 0
        %1696 = vmatpush1.bf16.msra.mxu0 0
        %1697 = vmatprep.subr.bf16.mxu0 0
        %1698 = vmatpush1.bf16.msra.mxu0 0
        %1699 = vmatprep.subr.bf16.mxu0 %v1691
        %1700 = vmatpush1.bf16.msra.mxu0 %v1691
        %1701 = vmatprep.subr.bf16.mxu0 %v1666
        %1702 = vmatpush1.bf16.msra.mxu0 %v1665
        %1703 = vmatprep.subr.bf16.mxu0 %v1662
        %1704 = vmatpush1.bf16.msra.mxu0 %v1661
        %1705 = vmatprep.subr.bf16.mxu0 %v1658
        %1706 = vmatpush1.bf16.msra.mxu0 %v1657
        %1707 = vmatprep.subr.bf16.mxu0 %v1654
        %1708 = vmatpush1.bf16.msra.mxu0 %v1653
        %1709 = vmatprep.subr.bf16.mxu0 0
        %1710 = vmatpush2.bf16.msra.mxu0 0
        %1711 = vmatprep.subr.bf16.mxu0 0
        %1712 = vmatpush2.bf16.msra.mxu0 0
        %1713 = vmatprep.subr.bf16.mxu0 0
        %1714 = vmatpush2.bf16.msra.mxu0 0
        %1715 = vmatprep.subr.bf16.mxu0 0
        %1716 = vmatpush2.bf16.msra.mxu0 0
        %1717 = vmatprep.subr.bf16.mxu0 0
        %1718 = vmatpush2.bf16.msra.mxu0 0
        %1719 = vmatprep.subr.bf16.mxu0 0
        %1720 = vmatpush2.bf16.msra.mxu0 0
        %1721 = vmatprep.subr.bf16.mxu0 0
        %1722 = vmatpush2.bf16.msra.mxu0 0
        %1723 = vmatprep.subr.bf16.mxu0 0
        %1724 = vmatpush2.bf16.msra.mxu0 0
        %1725 = vmatprep.mubr.bf16.mxu0 0
        %1726 = vmatmul.mubr.bf16.gmra.mxu0 %v1685
        %v1727 = vpop.f32.mrf.mxu0
        %v1728 = vadd.f32 0.0, %v1727
        %v1729 = vpop.f32.mrf.mxu0
        %v1730 = vadd.f32 0.0, %v1729
        %v1731 = vpop.f32.mrf.mxu0
        %v1732 = vadd.f32 0.0, %v1731
        %v1733 = vpop.f32.mrf.mxu0
        %v1734 = vadd.f32 0.0, %v1733
        %1735 = vmatprep.mubr.bf16.mxu0 0
        %1736 = vmatmul.mubr.bf16.gmra.mxu0 %v1688
        %v1737 = vpop.f32.mrf.mxu0
        %v1738 = vadd.f32 0.0, %v1737
        %v1739 = vpop.f32.mrf.mxu0
        %v1740 = vadd.f32 0.0, %v1739
        %v1741 = vpop.f32.mrf.mxu0
        %v1742 = vadd.f32 0.0, %v1741
        %v1743 = vpop.f32.mrf.mxu0
        %v1744 = vadd.f32 0.0, %v1743
        %1745 = vdwg.mxu0
        %1746 = vmatprep.subr.bf16.mxu0 0
        %1747 = vmatpush1.bf16.msra.mxu0 0
        %1748 = vmatprep.subr.bf16.mxu0 0
        %1749 = vmatpush1.bf16.msra.mxu0 0
        %1750 = vmatprep.subr.bf16.mxu0 0
        %1751 = vmatpush1.bf16.msra.mxu0 0
        %1752 = vmatprep.subr.bf16.mxu0 %v1691
        %1753 = vmatpush1.bf16.msra.mxu0 %v1691
        %1754 = vmatprep.subr.bf16.mxu0 %v1668
        %1755 = vmatpush1.bf16.msra.mxu0 %v1667
        %1756 = vmatprep.subr.bf16.mxu0 %v1664
        %1757 = vmatpush1.bf16.msra.mxu0 %v1663
        %1758 = vmatprep.subr.bf16.mxu0 %v1660
        %1759 = vmatpush1.bf16.msra.mxu0 %v1659
        %1760 = vmatprep.subr.bf16.mxu0 %v1656
        %1761 = vmatpush1.bf16.msra.mxu0 %v1655
        %1762 = vmatprep.subr.bf16.mxu0 0
        %1763 = vmatpush2.bf16.msra.mxu0 0
        %1764 = vmatprep.subr.bf16.mxu0 0
        %1765 = vmatpush2.bf16.msra.mxu0 0
        %1766 = vmatprep.subr.bf16.mxu0 0
        %1767 = vmatpush2.bf16.msra.mxu0 0
        %1768 = vmatprep.subr.bf16.mxu0 0
        %1769 = vmatpush2.bf16.msra.mxu0 0
        %1770 = vmatprep.subr.bf16.mxu0 0
        %1771 = vmatpush2.bf16.msra.mxu0 0
        %1772 = vmatprep.subr.bf16.mxu0 0
        %1773 = vmatpush2.bf16.msra.mxu0 0
        %1774 = vmatprep.subr.bf16.mxu0 0
        %1775 = vmatpush2.bf16.msra.mxu0 0
        %1776 = vmatprep.subr.bf16.mxu0 0
        %1777 = vmatpush2.bf16.msra.mxu0 0
        %1778 = vmatprep.mubr.bf16.mxu0 0
        %1779 = vmatmul.mubr.bf16.gmra.mxu0 %v1685
        %v1780 = vpop.f32.mrf.mxu0
        %v1781 = vadd.f32 0.0, %v1780
        %v1782 = vpop.f32.mrf.mxu0
        %v1783 = vadd.f32 0.0, %v1782
        %v1784 = vpop.f32.mrf.mxu0
        %v1785 = vadd.f32 0.0, %v1784
        %v1786 = vpop.f32.mrf.mxu0
        %v1787 = vadd.f32 0.0, %v1786
        %1788 = vmatprep.mubr.bf16.mxu0 0
        %1789 = vmatmul.mubr.bf16.gmra.mxu0 %v1688
        %v1790 = vpop.f32.mrf.mxu0
        %v1791 = vadd.f32 0.0, %v1790
        %v1792 = vpop.f32.mrf.mxu0
        %v1793 = vadd.f32 0.0, %v1792
        %v1794 = vpop.f32.mrf.mxu0
        %v1795 = vadd.f32 0.0, %v1794
        %v1796 = vpop.f32.mrf.mxu0
        %v1797 = vadd.f32 0.0, %v1796
        %1798 = vdwg.mxu0
        %v1799 = vand.u32 2147483647, %v1728
        %vm1800 = vcmp.le.f32.partialorder %v1799, 0.7853982
        %vm1801 = vcmp.lt.s32.totalorder %v1728, 0
        %v1802 = vand.u32 %v1728, 2139095040
        %v1803 = vshrl.u32 %v1802, 23
        %v1804 = vsub.s32 %v1803, 127
        %v1805 = vand.u32 2147483647, %v1728
        %v1806 = vand.u32 %v1805, 8388607
        %v1807 = vor.u32 %v1806, 8388608
        %v1808 = vsub.s32 0, %v1807
        %v1809 = vadd.s32 %v1804, 1
        %vm1810 = vcmp.gt.s32.totalorder %v1809, 0
        %v1811 = vsel %vm1810, %v1809, 0
        %v1812 = vshrl.u32 %v1811, 5
        %v1813 = vand.u32 %v1811, 31
        %v1814 = vsub.s32 32, %v1813
        %v1815 = vshrl.u32 683565275, %v1814
        %v1816 = vshll.u32 683565275, %v1813
        %v1817 = vshrl.u32 2475754826, %v1814
        %v1818 = vor.u32 %v1816, %v1817
        %v1819 = vshll.u32 2475754826, %v1813
        %v1820 = vshrl.u32 2131351028, %v1814
        %v1821 = vor.u32 %v1819, %v1820
        %v1822 = vshll.u32 2131351028, %v1813
        %v1823 = vshrl.u32 2102212464, %v1814
        %v1824 = vor.u32 %v1822, %v1823
        %v1825 = vshll.u32 2102212464, %v1813
        %v1826 = vshrl.u32 920167782, %v1814
        %v1827 = vor.u32 %v1825, %v1826
        %v1828 = vshll.u32 920167782, %v1813
        %v1829 = vshrl.u32 1326507024, %v1814
        %v1830 = vor.u32 %v1828, %v1829
        %vm1831 = vcmp.lt.s32.totalorder %v1812, 1
        %vm1832 = vcmp.lt.s32.totalorder %v1812, 2
        %vm1833 = vcmp.lt.s32.totalorder %v1812, 3
        %vm1834 = vcmp.lt.s32.totalorder %v1812, 4
        %v1835 = vsel %vm1831, %v1815, %v1818
        %v1836 = vsel %vm1834, %v1824, 2102212464
        %v1837 = vsel %vm1833, %v1821, %v1836
        %v1838 = vsel %vm1832, %v1835, %v1837
        %v1839 = vsel %vm1831, %v1818, %v1821
        %v1840 = vsel %vm1834, %v1827, 920167782
        %v1841 = vsel %vm1833, %v1824, %v1840
        %v1842 = vsel %vm1832, %v1839, %v1841
        %v1843 = vsel %vm1831, %v1821, %v1824
        %v1844 = vsel %vm1834, %v1830, 1326507024
        %v1845 = vsel %vm1833, %v1827, %v1844
        %v1846 = vsel %vm1832, %v1843, %v1845
        %v1847 = vshll.u32 %v1807, 8
        %v1848 = vmul.u32.u64.compose %v1847, %v1846
        %v1849 = vextract.low.u32 %v1848
        %v1850 = vextract.high.u32 %v1848
        %v1851 = vmul.u32.u64.compose %v1847, %v1842
        %v1852 = vextract.low.u32 %v1851
        %v1853 = vextract.high.u32 %v1851
        %v1854 = vmul.u32 %v1847, %v1838
        %v1855 = vadd.s32 %v1850, %v1852
        %vm1856 = vc.u32 %v1850, %v1852
        %v1857 = vadd.s32 %v1853, 1
        %v1858 = vsel %vm1856, %v1857, %v1853
        %v1859 = vadd.s32 %v1854, %v1858
        %v1860 = vadd.s32 %v1859, 536870912
        %v1861 = vshrl.u32 %v1860, 30
        %v1862 = vshll.u32 %v1861, 30
        %v1863 = vsub.s32 %v1859, %v1862
        %vm1864 = vcmp.lt.s32.totalorder %v1863, 0
        %v1865 = vsub.s32 0, %v1863
        %v1866 = vsel %vm1864, %v1865, %v1863
        %v1867 = vclz %v1866
        %v1868 = vsub.s32 %v1867, 2
        %vm1869 = vcmp.gt.s32.totalorder 0, %v1868
        %v1870 = vsel %vm1869, 0, %v1868
        %v1871 = vsub.s32 32, %v1870
        %v1872 = vshll.u32 %v1863, %v1870
        %v1873 = vshrl.u32 %v1855, %v1871
        %v1874 = vor.u32 %v1872, %v1873
        %v1875 = vsub.s32 4294967266, %v1870
        %v1876 = vadd.s32 %v1875, 127
        %v1877 = vshll.u32 %v1876, 23
        %v1878 = vor.u32 4788187, %v1877
        %v1879 = vand.u32 2147483647, %v1878
        %v1881 = vcvt.s32.f32 %v1874
        %v1882 = vmul.f32 %v1881, %v1879
        %v1883 = vxor.u32 %v1882, 2147483648
        %v1884 = vsel %vm1801, %v1883, %v1882
        %v1885 = vsub.s32 4, %v1861
        %v1886 = vsel %vm1801, %v1885, %v1861
        %v1887 = vsel %vm1800, %v1728, %v1884
        %v1888 = vsel %vm1800, 0, %v1886
        %v1889 = vcosq.f32.pop %v1887
        %v1890 = vsinq.f32.pop %v1887
        %vm1891 = vweird.f32 %v1728
        %v1892 = vadd.s32 %v1888, 3
        %v1893 = vand.u32 %v1892, 3
        %vm1894 = vcmp.lt.s32.totalorder %v1893, 2
        %vm1895 = vcmp.eq.s32.totalorder %v1893, 0
        %v1896 = vxor.u32 %v1890, 2147483648
        %v1897 = vsel %vm1895, %v1889, %v1896
        %vm1898 = vcmp.eq.s32.totalorder %v1893, 2
        %v1899 = vxor.u32 %v1889, 2147483648
        %v1900 = vsel %vm1898, %v1899, %v1890
        %v1901 = vsel %vm1894, %v1897, %v1900
        %v1902 = vsel %vm1891, nan, %v1901
        %v1903 = vand.u32 2147483647, %v1730
        %vm1904 = vcmp.le.f32.partialorder %v1903, 0.7853982
        %vm1905 = vcmp.lt.s32.totalorder %v1730, 0
        %v1906 = vand.u32 %v1730, 2139095040
        %v1907 = vshrl.u32 %v1906, 23
        %v1908 = vsub.s32 %v1907, 127
        %v1909 = vand.u32 2147483647, %v1730
        %v1910 = vand.u32 %v1909, 8388607
        %v1911 = vor.u32 %v1910, 8388608
        %v1912 = vsub.s32 0, %v1911
        %v1913 = vadd.s32 %v1908, 1
        %vm1914 = vcmp.gt.s32.totalorder %v1913, 0
        %v1915 = vsel %vm1914, %v1913, 0
        %v1916 = vshrl.u32 %v1915, 5
        %v1917 = vand.u32 %v1915, 31
        %v1918 = vsub.s32 32, %v1917
        %v1919 = vshrl.u32 683565275, %v1918
        %v1920 = vshll.u32 683565275, %v1917
        %v1921 = vshrl.u32 2475754826, %v1918
        %v1922 = vor.u32 %v1920, %v1921
        %v1923 = vshll.u32 2475754826, %v1917
        %v1924 = vshrl.u32 2131351028, %v1918
        %v1925 = vor.u32 %v1923, %v1924
        %v1926 = vshll.u32 2131351028, %v1917
        %v1927 = vshrl.u32 2102212464, %v1918
        %v1928 = vor.u32 %v1926, %v1927
        %v1929 = vshll.u32 2102212464, %v1917
        %v1930 = vshrl.u32 920167782, %v1918
        %v1931 = vor.u32 %v1929, %v1930
        %v1932 = vshll.u32 920167782, %v1917
        %v1933 = vshrl.u32 1326507024, %v1918
        %v1934 = vor.u32 %v1932, %v1933
        %vm1935 = vcmp.lt.s32.totalorder %v1916, 1
        %vm1936 = vcmp.lt.s32.totalorder %v1916, 2
        %vm1937 = vcmp.lt.s32.totalorder %v1916, 3
        %vm1938 = vcmp.lt.s32.totalorder %v1916, 4
        %v1939 = vsel %vm1935, %v1919, %v1922
        %v1940 = vsel %vm1938, %v1928, 2102212464
        %v1941 = vsel %vm1937, %v1925, %v1940
        %v1942 = vsel %vm1936, %v1939, %v1941
        %v1943 = vsel %vm1935, %v1922, %v1925
        %v1944 = vsel %vm1938, %v1931, 920167782
        %v1945 = vsel %vm1937, %v1928, %v1944
        %v1946 = vsel %vm1936, %v1943, %v1945
        %v1947 = vsel %vm1935, %v1925, %v1928
        %v1948 = vsel %vm1938, %v1934, 1326507024
        %v1949 = vsel %vm1937, %v1931, %v1948
        %v1950 = vsel %vm1936, %v1947, %v1949
        %v1951 = vshll.u32 %v1911, 8
        %v1952 = vmul.u32.u64.compose %v1951, %v1950
        %v1953 = vextract.low.u32 %v1952
        %v1954 = vextract.high.u32 %v1952
        %v1955 = vmul.u32.u64.compose %v1951, %v1946
        %v1956 = vextract.low.u32 %v1955
        %v1957 = vextract.high.u32 %v1955
        %v1958 = vmul.u32 %v1951, %v1942
        %v1959 = vadd.s32 %v1954, %v1956
        %vm1960 = vc.u32 %v1954, %v1956
        %v1961 = vadd.s32 %v1957, 1
        %v1962 = vsel %vm1960, %v1961, %v1957
        %v1963 = vadd.s32 %v1958, %v1962
        %v1964 = vadd.s32 %v1963, 536870912
        %v1965 = vshrl.u32 %v1964, 30
        %v1966 = vshll.u32 %v1965, 30
        %v1967 = vsub.s32 %v1963, %v1966
        %vm1968 = vcmp.lt.s32.totalorder %v1967, 0
        %v1969 = vsub.s32 0, %v1967
        %v1970 = vsel %vm1968, %v1969, %v1967
        %v1971 = vclz %v1970
        %v1972 = vsub.s32 %v1971, 2
        %vm1973 = vcmp.gt.s32.totalorder 0, %v1972
        %v1974 = vsel %vm1973, 0, %v1972
        %v1975 = vsub.s32 32, %v1974
        %v1976 = vshll.u32 %v1967, %v1974
        %v1977 = vshrl.u32 %v1959, %v1975
        %v1978 = vor.u32 %v1976, %v1977
        %v1979 = vsub.s32 4294967266, %v1974
        %v1980 = vadd.s32 %v1979, 127
        %v1981 = vshll.u32 %v1980, 23
        %v1982 = vor.u32 4788187, %v1981
        %v1983 = vand.u32 2147483647, %v1982
        %v1985 = vcvt.s32.f32 %v1978
        %v1986 = vmul.f32 %v1985, %v1983
        %v1987 = vxor.u32 %v1986, 2147483648
        %v1988 = vsel %vm1905, %v1987, %v1986
        %v1989 = vsub.s32 4, %v1965
        %v1990 = vsel %vm1905, %v1989, %v1965
        %v1991 = vsel %vm1904, %v1730, %v1988
        %v1992 = vsel %vm1904, 0, %v1990
        %v1993 = vcosq.f32.pop %v1991
        %v1994 = vsinq.f32.pop %v1991
        %vm1995 = vweird.f32 %v1730
        %v1996 = vadd.s32 %v1992, 3
        %v1997 = vand.u32 %v1996, 3
        %vm1998 = vcmp.lt.s32.totalorder %v1997, 2
        %vm1999 = vcmp.eq.s32.totalorder %v1997, 0
        %v2000 = vxor.u32 %v1994, 2147483648
        %v2001 = vsel %vm1999, %v1993, %v2000
        %vm2002 = vcmp.eq.s32.totalorder %v1997, 2
        %v2003 = vxor.u32 %v1993, 2147483648
        %v2004 = vsel %vm2002, %v2003, %v1994
        %v2005 = vsel %vm1998, %v2001, %v2004
        %v2006 = vsel %vm1995, nan, %v2005
        %v2007 = vand.u32 2147483647, %v1781
        %vm2008 = vcmp.le.f32.partialorder %v2007, 0.7853982
        %vm2009 = vcmp.lt.s32.totalorder %v1781, 0
        %v2010 = vand.u32 %v1781, 2139095040
        %v2011 = vshrl.u32 %v2010, 23
        %v2012 = vsub.s32 %v2011, 127
        %v2013 = vand.u32 2147483647, %v1781
        %v2014 = vand.u32 %v2013, 8388607
        %v2015 = vor.u32 %v2014, 8388608
        %v2016 = vsub.s32 0, %v2015
        %v2017 = vadd.s32 %v2012, 1
        %vm2018 = vcmp.gt.s32.totalorder %v2017, 0
        %v2019 = vsel %vm2018, %v2017, 0
        %v2020 = vshrl.u32 %v2019, 5
        %v2021 = vand.u32 %v2019, 31
        %v2022 = vsub.s32 32, %v2021
        %v2023 = vshrl.u32 683565275, %v2022
        %v2024 = vshll.u32 683565275, %v2021
        %v2025 = vshrl.u32 2475754826, %v2022
        %v2026 = vor.u32 %v2024, %v2025
        %v2027 = vshll.u32 2475754826, %v2021
        %v2028 = vshrl.u32 2131351028, %v2022
        %v2029 = vor.u32 %v2027, %v2028
        %v2030 = vshll.u32 2131351028, %v2021
        %v2031 = vshrl.u32 2102212464, %v2022
        %v2032 = vor.u32 %v2030, %v2031
        %v2033 = vshll.u32 2102212464, %v2021
        %v2034 = vshrl.u32 920167782, %v2022
        %v2035 = vor.u32 %v2033, %v2034
        %v2036 = vshll.u32 920167782, %v2021
        %v2037 = vshrl.u32 1326507024, %v2022
        %v2038 = vor.u32 %v2036, %v2037
        %vm2039 = vcmp.lt.s32.totalorder %v2020, 1
        %vm2040 = vcmp.lt.s32.totalorder %v2020, 2
        %vm2041 = vcmp.lt.s32.totalorder %v2020, 3
        %vm2042 = vcmp.lt.s32.totalorder %v2020, 4
        %v2043 = vsel %vm2039, %v2023, %v2026
        %v2044 = vsel %vm2042, %v2032, 2102212464
        %v2045 = vsel %vm2041, %v2029, %v2044
        %v2046 = vsel %vm2040, %v2043, %v2045
        %v2047 = vsel %vm2039, %v2026, %v2029
        %v2048 = vsel %vm2042, %v2035, 920167782
        %v2049 = vsel %vm2041, %v2032, %v2048
        %v2050 = vsel %vm2040, %v2047, %v2049
        %v2051 = vsel %vm2039, %v2029, %v2032
        %v2052 = vsel %vm2042, %v2038, 1326507024
        %v2053 = vsel %vm2041, %v2035, %v2052
        %v2054 = vsel %vm2040, %v2051, %v2053
        %v2055 = vshll.u32 %v2015, 8
        %v2056 = vmul.u32.u64.compose %v2055, %v2054
        %v2057 = vextract.low.u32 %v2056
        %v2058 = vextract.high.u32 %v2056
        %v2059 = vmul.u32.u64.compose %v2055, %v2050
        %v2060 = vextract.low.u32 %v2059
        %v2061 = vextract.high.u32 %v2059
        %v2062 = vmul.u32 %v2055, %v2046
        %v2063 = vadd.s32 %v2058, %v2060
        %vm2064 = vc.u32 %v2058, %v2060
        %v2065 = vadd.s32 %v2061, 1
        %v2066 = vsel %vm2064, %v2065, %v2061
        %v2067 = vadd.s32 %v2062, %v2066
        %v2068 = vadd.s32 %v2067, 536870912
        %v2069 = vshrl.u32 %v2068, 30
        %v2070 = vshll.u32 %v2069, 30
        %v2071 = vsub.s32 %v2067, %v2070
        %vm2072 = vcmp.lt.s32.totalorder %v2071, 0
        %v2073 = vsub.s32 0, %v2071
        %v2074 = vsel %vm2072, %v2073, %v2071
        %v2075 = vclz %v2074
        %v2076 = vsub.s32 %v2075, 2
        %vm2077 = vcmp.gt.s32.totalorder 0, %v2076
        %v2078 = vsel %vm2077, 0, %v2076
        %v2079 = vsub.s32 32, %v2078
        %v2080 = vshll.u32 %v2071, %v2078
        %v2081 = vshrl.u32 %v2063, %v2079
        %v2082 = vor.u32 %v2080, %v2081
        %v2083 = vsub.s32 4294967266, %v2078
        %v2084 = vadd.s32 %v2083, 127
        %v2085 = vshll.u32 %v2084, 23
        %v2086 = vor.u32 4788187, %v2085
        %v2087 = vand.u32 2147483647, %v2086
        %v2089 = vcvt.s32.f32 %v2082
        %v2090 = vmul.f32 %v2089, %v2087
        %v2091 = vxor.u32 %v2090, 2147483648
        %v2092 = vsel %vm2009, %v2091, %v2090
        %v2093 = vsub.s32 4, %v2069
        %v2094 = vsel %vm2009, %v2093, %v2069
        %v2095 = vsel %vm2008, %v1781, %v2092
        %v2096 = vsel %vm2008, 0, %v2094
        %v2097 = vcosq.f32.pop %v2095
        %v2098 = vsinq.f32.pop %v2095
        %vm2099 = vweird.f32 %v1781
        %v2100 = vadd.s32 %v2096, 3
        %v2101 = vand.u32 %v2100, 3
        %vm2102 = vcmp.lt.s32.totalorder %v2101, 2
        %vm2103 = vcmp.eq.s32.totalorder %v2101, 0
        %v2104 = vxor.u32 %v2098, 2147483648
        %v2105 = vsel %vm2103, %v2097, %v2104
        %vm2106 = vcmp.eq.s32.totalorder %v2101, 2
        %v2107 = vxor.u32 %v2097, 2147483648
        %v2108 = vsel %vm2106, %v2107, %v2098
        %v2109 = vsel %vm2102, %v2105, %v2108
        %v2110 = vsel %vm2099, nan, %v2109
        %v2111 = vand.u32 2147483647, %v1783
        %vm2112 = vcmp.le.f32.partialorder %v2111, 0.7853982
        %vm2113 = vcmp.lt.s32.totalorder %v1783, 0
        %v2114 = vand.u32 %v1783, 2139095040
        %v2115 = vshrl.u32 %v2114, 23
        %v2116 = vsub.s32 %v2115, 127
        %v2117 = vand.u32 2147483647, %v1783
        %v2118 = vand.u32 %v2117, 8388607
        %v2119 = vor.u32 %v2118, 8388608
        %v2120 = vsub.s32 0, %v2119
        %v2121 = vadd.s32 %v2116, 1
        %vm2122 = vcmp.gt.s32.totalorder %v2121, 0
        %v2123 = vsel %vm2122, %v2121, 0
        %v2124 = vshrl.u32 %v2123, 5
        %v2125 = vand.u32 %v2123, 31
        %v2126 = vsub.s32 32, %v2125
        %v2127 = vshrl.u32 683565275, %v2126
        %v2128 = vshll.u32 683565275, %v2125
        %v2129 = vshrl.u32 2475754826, %v2126
        %v2130 = vor.u32 %v2128, %v2129
        %v2131 = vshll.u32 2475754826, %v2125
        %v2132 = vshrl.u32 2131351028, %v2126
        %v2133 = vor.u32 %v2131, %v2132
        %v2134 = vshll.u32 2131351028, %v2125
        %v2135 = vshrl.u32 2102212464, %v2126
        %v2136 = vor.u32 %v2134, %v2135
        %v2137 = vshll.u32 2102212464, %v2125
        %v2138 = vshrl.u32 920167782, %v2126
        %v2139 = vor.u32 %v2137, %v2138
        %v2140 = vshll.u32 920167782, %v2125
        %v2141 = vshrl.u32 1326507024, %v2126
        %v2142 = vor.u32 %v2140, %v2141
        %vm2143 = vcmp.lt.s32.totalorder %v2124, 1
        %vm2144 = vcmp.lt.s32.totalorder %v2124, 2
        %vm2145 = vcmp.lt.s32.totalorder %v2124, 3
        %vm2146 = vcmp.lt.s32.totalorder %v2124, 4
        %v2147 = vsel %vm2143, %v2127, %v2130
        %v2148 = vsel %vm2146, %v2136, 2102212464
        %v2149 = vsel %vm2145, %v2133, %v2148
        %v2150 = vsel %vm2144, %v2147, %v2149
        %v2151 = vsel %vm2143, %v2130, %v2133
        %v2152 = vsel %vm2146, %v2139, 920167782
        %v2153 = vsel %vm2145, %v2136, %v2152
        %v2154 = vsel %vm2144, %v2151, %v2153
        %v2155 = vsel %vm2143, %v2133, %v2136
        %v2156 = vsel %vm2146, %v2142, 1326507024
        %v2157 = vsel %vm2145, %v2139, %v2156
        %v2158 = vsel %vm2144, %v2155, %v2157
        %v2159 = vshll.u32 %v2119, 8
        %v2160 = vmul.u32.u64.compose %v2159, %v2158
        %v2161 = vextract.low.u32 %v2160
        %v2162 = vextract.high.u32 %v2160
        %v2163 = vmul.u32.u64.compose %v2159, %v2154
        %v2164 = vextract.low.u32 %v2163
        %v2165 = vextract.high.u32 %v2163
        %v2166 = vmul.u32 %v2159, %v2150
        %v2167 = vadd.s32 %v2162, %v2164
        %vm2168 = vc.u32 %v2162, %v2164
        %v2169 = vadd.s32 %v2165, 1
        %v2170 = vsel %vm2168, %v2169, %v2165
        %v2171 = vadd.s32 %v2166, %v2170
        %v2172 = vadd.s32 %v2171, 536870912
        %v2173 = vshrl.u32 %v2172, 30
        %v2174 = vshll.u32 %v2173, 30
        %v2175 = vsub.s32 %v2171, %v2174
        %vm2176 = vcmp.lt.s32.totalorder %v2175, 0
        %v2177 = vsub.s32 0, %v2175
        %v2178 = vsel %vm2176, %v2177, %v2175
        %v2179 = vclz %v2178
        %v2180 = vsub.s32 %v2179, 2
        %vm2181 = vcmp.gt.s32.totalorder 0, %v2180
        %v2182 = vsel %vm2181, 0, %v2180
        %v2183 = vsub.s32 32, %v2182
        %v2184 = vshll.u32 %v2175, %v2182
        %v2185 = vshrl.u32 %v2167, %v2183
        %v2186 = vor.u32 %v2184, %v2185
        %v2187 = vsub.s32 4294967266, %v2182
        %v2188 = vadd.s32 %v2187, 127
        %v2189 = vshll.u32 %v2188, 23
        %v2190 = vor.u32 4788187, %v2189
        %v2191 = vand.u32 2147483647, %v2190
        %v2193 = vcvt.s32.f32 %v2186
        %v2194 = vmul.f32 %v2193, %v2191
        %v2195 = vxor.u32 %v2194, 2147483648
        %v2196 = vsel %vm2113, %v2195, %v2194
        %v2197 = vsub.s32 4, %v2173
        %v2198 = vsel %vm2113, %v2197, %v2173
        %v2199 = vsel %vm2112, %v1783, %v2196
        %v2200 = vsel %vm2112, 0, %v2198
        %v2201 = vcosq.f32.pop %v2199
        %v2202 = vsinq.f32.pop %v2199
        %vm2203 = vweird.f32 %v1783
        %v2204 = vadd.s32 %v2200, 3
        %v2205 = vand.u32 %v2204, 3
        %vm2206 = vcmp.lt.s32.totalorder %v2205, 2
        %vm2207 = vcmp.eq.s32.totalorder %v2205, 0
        %v2208 = vxor.u32 %v2202, 2147483648
        %v2209 = vsel %vm2207, %v2201, %v2208
        %vm2210 = vcmp.eq.s32.totalorder %v2205, 2
        %v2211 = vxor.u32 %v2201, 2147483648
        %v2212 = vsel %vm2210, %v2211, %v2202
        %v2213 = vsel %vm2206, %v2209, %v2212
        %v2214 = vsel %vm2203, nan, %v2213
        %v2215 = vand.u32 2147483647, %v1732
        %vm2216 = vcmp.le.f32.partialorder %v2215, 0.7853982
        %vm2217 = vcmp.lt.s32.totalorder %v1732, 0
        %v2218 = vand.u32 %v1732, 2139095040
        %v2219 = vshrl.u32 %v2218, 23
        %v2220 = vsub.s32 %v2219, 127
        %v2221 = vand.u32 2147483647, %v1732
        %v2222 = vand.u32 %v2221, 8388607
        %v2223 = vor.u32 %v2222, 8388608
        %v2224 = vsub.s32 0, %v2223
        %v2225 = vadd.s32 %v2220, 1
        %vm2226 = vcmp.gt.s32.totalorder %v2225, 0
        %v2227 = vsel %vm2226, %v2225, 0
        %v2228 = vshrl.u32 %v2227, 5
        %v2229 = vand.u32 %v2227, 31
        %v2230 = vsub.s32 32, %v2229
        %v2231 = vshrl.u32 683565275, %v2230
        %v2232 = vshll.u32 683565275, %v2229
        %v2233 = vshrl.u32 2475754826, %v2230
        %v2234 = vor.u32 %v2232, %v2233
        %v2235 = vshll.u32 2475754826, %v2229
        %v2236 = vshrl.u32 2131351028, %v2230
        %v2237 = vor.u32 %v2235, %v2236
        %v2238 = vshll.u32 2131351028, %v2229
        %v2239 = vshrl.u32 2102212464, %v2230
        %v2240 = vor.u32 %v2238, %v2239
        %v2241 = vshll.u32 2102212464, %v2229
        %v2242 = vshrl.u32 920167782, %v2230
        %v2243 = vor.u32 %v2241, %v2242
        %v2244 = vshll.u32 920167782, %v2229
        %v2245 = vshrl.u32 1326507024, %v2230
        %v2246 = vor.u32 %v2244, %v2245
        %vm2247 = vcmp.lt.s32.totalorder %v2228, 1
        %vm2248 = vcmp.lt.s32.totalorder %v2228, 2
        %vm2249 = vcmp.lt.s32.totalorder %v2228, 3
        %vm2250 = vcmp.lt.s32.totalorder %v2228, 4
        %v2251 = vsel %vm2247, %v2231, %v2234
        %v2252 = vsel %vm2250, %v2240, 2102212464
        %v2253 = vsel %vm2249, %v2237, %v2252
        %v2254 = vsel %vm2248, %v2251, %v2253
        %v2255 = vsel %vm2247, %v2234, %v2237
        %v2256 = vsel %vm2250, %v2243, 920167782
        %v2257 = vsel %vm2249, %v2240, %v2256
        %v2258 = vsel %vm2248, %v2255, %v2257
        %v2259 = vsel %vm2247, %v2237, %v2240
        %v2260 = vsel %vm2250, %v2246, 1326507024
        %v2261 = vsel %vm2249, %v2243, %v2260
        %v2262 = vsel %vm2248, %v2259, %v2261
        %v2263 = vshll.u32 %v2223, 8
        %v2264 = vmul.u32.u64.compose %v2263, %v2262
        %v2265 = vextract.low.u32 %v2264
        %v2266 = vextract.high.u32 %v2264
        %v2267 = vmul.u32.u64.compose %v2263, %v2258
        %v2268 = vextract.low.u32 %v2267
        %v2269 = vextract.high.u32 %v2267
        %v2270 = vmul.u32 %v2263, %v2254
        %v2271 = vadd.s32 %v2266, %v2268
        %vm2272 = vc.u32 %v2266, %v2268
        %v2273 = vadd.s32 %v2269, 1
        %v2274 = vsel %vm2272, %v2273, %v2269
        %v2275 = vadd.s32 %v2270, %v2274
        %v2276 = vadd.s32 %v2275, 536870912
        %v2277 = vshrl.u32 %v2276, 30
        %v2278 = vshll.u32 %v2277, 30
        %v2279 = vsub.s32 %v2275, %v2278
        %vm2280 = vcmp.lt.s32.totalorder %v2279, 0
        %v2281 = vsub.s32 0, %v2279
        %v2282 = vsel %vm2280, %v2281, %v2279
        %v2283 = vclz %v2282
        %v2284 = vsub.s32 %v2283, 2
        %vm2285 = vcmp.gt.s32.totalorder 0, %v2284
        %v2286 = vsel %vm2285, 0, %v2284
        %v2287 = vsub.s32 32, %v2286
        %v2288 = vshll.u32 %v2279, %v2286
        %v2289 = vshrl.u32 %v2271, %v2287
        %v2290 = vor.u32 %v2288, %v2289
        %v2291 = vsub.s32 4294967266, %v2286
        %v2292 = vadd.s32 %v2291, 127
        %v2293 = vshll.u32 %v2292, 23
        %v2294 = vor.u32 4788187, %v2293
        %v2295 = vand.u32 2147483647, %v2294
        %v2297 = vcvt.s32.f32 %v2290
        %v2298 = vmul.f32 %v2297, %v2295
        %v2299 = vxor.u32 %v2298, 2147483648
        %v2300 = vsel %vm2217, %v2299, %v2298
        %v2301 = vsub.s32 4, %v2277
        %v2302 = vsel %vm2217, %v2301, %v2277
        %v2303 = vsel %vm2216, %v1732, %v2300
        %v2304 = vsel %vm2216, 0, %v2302
        %v2305 = vcosq.f32.pop %v2303
        %v2306 = vsinq.f32.pop %v2303
        %vm2307 = vweird.f32 %v1732
        %v2308 = vadd.s32 %v2304, 3
        %v2309 = vand.u32 %v2308, 3
        %vm2310 = vcmp.lt.s32.totalorder %v2309, 2
        %vm2311 = vcmp.eq.s32.totalorder %v2309, 0
        %v2312 = vxor.u32 %v2306, 2147483648
        %v2313 = vsel %vm2311, %v2305, %v2312
        %vm2314 = vcmp.eq.s32.totalorder %v2309, 2
        %v2315 = vxor.u32 %v2305, 2147483648
        %v2316 = vsel %vm2314, %v2315, %v2306
        %v2317 = vsel %vm2310, %v2313, %v2316
        %v2318 = vsel %vm2307, nan, %v2317
        %v2319 = vand.u32 2147483647, %v1734
        %vm2320 = vcmp.le.f32.partialorder %v2319, 0.7853982
        %vm2321 = vcmp.lt.s32.totalorder %v1734, 0
        %v2322 = vand.u32 %v1734, 2139095040
        %v2323 = vshrl.u32 %v2322, 23
        %v2324 = vsub.s32 %v2323, 127
        %v2325 = vand.u32 2147483647, %v1734
        %v2326 = vand.u32 %v2325, 8388607
        %v2327 = vor.u32 %v2326, 8388608
        %v2328 = vsub.s32 0, %v2327
        %v2329 = vadd.s32 %v2324, 1
        %vm2330 = vcmp.gt.s32.totalorder %v2329, 0
        %v2331 = vsel %vm2330, %v2329, 0
        %v2332 = vshrl.u32 %v2331, 5
        %v2333 = vand.u32 %v2331, 31
        %v2334 = vsub.s32 32, %v2333
        %v2335 = vshrl.u32 683565275, %v2334
        %v2336 = vshll.u32 683565275, %v2333
        %v2337 = vshrl.u32 2475754826, %v2334
        %v2338 = vor.u32 %v2336, %v2337
        %v2339 = vshll.u32 2475754826, %v2333
        %v2340 = vshrl.u32 2131351028, %v2334
        %v2341 = vor.u32 %v2339, %v2340
        %v2342 = vshll.u32 2131351028, %v2333
        %v2343 = vshrl.u32 2102212464, %v2334
        %v2344 = vor.u32 %v2342, %v2343
        %v2345 = vshll.u32 2102212464, %v2333
        %v2346 = vshrl.u32 920167782, %v2334
        %v2347 = vor.u32 %v2345, %v2346
        %v2348 = vshll.u32 920167782, %v2333
        %v2349 = vshrl.u32 1326507024, %v2334
        %v2350 = vor.u32 %v2348, %v2349
        %vm2351 = vcmp.lt.s32.totalorder %v2332, 1
        %vm2352 = vcmp.lt.s32.totalorder %v2332, 2
        %vm2353 = vcmp.lt.s32.totalorder %v2332, 3
        %vm2354 = vcmp.lt.s32.totalorder %v2332, 4
        %v2355 = vsel %vm2351, %v2335, %v2338
        %v2356 = vsel %vm2354, %v2344, 2102212464
        %v2357 = vsel %vm2353, %v2341, %v2356
        %v2358 = vsel %vm2352, %v2355, %v2357
        %v2359 = vsel %vm2351, %v2338, %v2341
        %v2360 = vsel %vm2354, %v2347, 920167782
        %v2361 = vsel %vm2353, %v2344, %v2360
        %v2362 = vsel %vm2352, %v2359, %v2361
        %v2363 = vsel %vm2351, %v2341, %v2344
        %v2364 = vsel %vm2354, %v2350, 1326507024
        %v2365 = vsel %vm2353, %v2347, %v2364
        %v2366 = vsel %vm2352, %v2363, %v2365
        %v2367 = vshll.u32 %v2327, 8
        %v2368 = vmul.u32.u64.compose %v2367, %v2366
        %v2369 = vextract.low.u32 %v2368
        %v2370 = vextract.high.u32 %v2368
        %v2371 = vmul.u32.u64.compose %v2367, %v2362
        %v2372 = vextract.low.u32 %v2371
        %v2373 = vextract.high.u32 %v2371
        %v2374 = vmul.u32 %v2367, %v2358
        %v2375 = vadd.s32 %v2370, %v2372
        %vm2376 = vc.u32 %v2370, %v2372
        %v2377 = vadd.s32 %v2373, 1
        %v2378 = vsel %vm2376, %v2377, %v2373
        %v2379 = vadd.s32 %v2374, %v2378
        %v2380 = vadd.s32 %v2379, 536870912
        %v2381 = vshrl.u32 %v2380, 30
        %v2382 = vshll.u32 %v2381, 30
        %v2383 = vsub.s32 %v2379, %v2382
        %vm2384 = vcmp.lt.s32.totalorder %v2383, 0
        %v2385 = vsub.s32 0, %v2383
        %v2386 = vsel %vm2384, %v2385, %v2383
        %v2387 = vclz %v2386
        %v2388 = vsub.s32 %v2387, 2
        %vm2389 = vcmp.gt.s32.totalorder 0, %v2388
        %v2390 = vsel %vm2389, 0, %v2388
        %v2391 = vsub.s32 32, %v2390
        %v2392 = vshll.u32 %v2383, %v2390
        %v2393 = vshrl.u32 %v2375, %v2391
        %v2394 = vor.u32 %v2392, %v2393
        %v2395 = vsub.s32 4294967266, %v2390
        %v2396 = vadd.s32 %v2395, 127
        %v2397 = vshll.u32 %v2396, 23
        %v2398 = vor.u32 4788187, %v2397
        %v2399 = vand.u32 2147483647, %v2398
        %v2401 = vcvt.s32.f32 %v2394
        %v2402 = vmul.f32 %v2401, %v2399
        %v2403 = vxor.u32 %v2402, 2147483648
        %v2404 = vsel %vm2321, %v2403, %v2402
        %v2405 = vsub.s32 4, %v2381
        %v2406 = vsel %vm2321, %v2405, %v2381
        %v2407 = vsel %vm2320, %v1734, %v2404
        %v2408 = vsel %vm2320, 0, %v2406
        %v2409 = vcosq.f32.pop %v2407
        %v2410 = vsinq.f32.pop %v2407
        %vm2411 = vweird.f32 %v1734
        %v2412 = vadd.s32 %v2408, 3
        %v2413 = vand.u32 %v2412, 3
        %vm2414 = vcmp.lt.s32.totalorder %v2413, 2
        %vm2415 = vcmp.eq.s32.totalorder %v2413, 0
        %v2416 = vxor.u32 %v2410, 2147483648
        %v2417 = vsel %vm2415, %v2409, %v2416
        %vm2418 = vcmp.eq.s32.totalorder %v2413, 2
        %v2419 = vxor.u32 %v2409, 2147483648
        %v2420 = vsel %vm2418, %v2419, %v2410
        %v2421 = vsel %vm2414, %v2417, %v2420
        %v2422 = vsel %vm2411, nan, %v2421
        %v2423 = vand.u32 2147483647, %v1785
        %vm2424 = vcmp.le.f32.partialorder %v2423, 0.7853982
        %vm2425 = vcmp.lt.s32.totalorder %v1785, 0
        %v2426 = vand.u32 %v1785, 2139095040
        %v2427 = vshrl.u32 %v2426, 23
        %v2428 = vsub.s32 %v2427, 127
        %v2429 = vand.u32 2147483647, %v1785
        %v2430 = vand.u32 %v2429, 8388607
        %v2431 = vor.u32 %v2430, 8388608
        %v2432 = vsub.s32 0, %v2431
        %v2433 = vadd.s32 %v2428, 1
        %vm2434 = vcmp.gt.s32.totalorder %v2433, 0
        %v2435 = vsel %vm2434, %v2433, 0
        %v2436 = vshrl.u32 %v2435, 5
        %v2437 = vand.u32 %v2435, 31
        %v2438 = vsub.s32 32, %v2437
        %v2439 = vshrl.u32 683565275, %v2438
        %v2440 = vshll.u32 683565275, %v2437
        %v2441 = vshrl.u32 2475754826, %v2438
        %v2442 = vor.u32 %v2440, %v2441
        %v2443 = vshll.u32 2475754826, %v2437
        %v2444 = vshrl.u32 2131351028, %v2438
        %v2445 = vor.u32 %v2443, %v2444
        %v2446 = vshll.u32 2131351028, %v2437
        %v2447 = vshrl.u32 2102212464, %v2438
        %v2448 = vor.u32 %v2446, %v2447
        %v2449 = vshll.u32 2102212464, %v2437
        %v2450 = vshrl.u32 920167782, %v2438
        %v2451 = vor.u32 %v2449, %v2450
        %v2452 = vshll.u32 920167782, %v2437
        %v2453 = vshrl.u32 1326507024, %v2438
        %v2454 = vor.u32 %v2452, %v2453
        %vm2455 = vcmp.lt.s32.totalorder %v2436, 1
        %vm2456 = vcmp.lt.s32.totalorder %v2436, 2
        %vm2457 = vcmp.lt.s32.totalorder %v2436, 3
        %vm2458 = vcmp.lt.s32.totalorder %v2436, 4
        %v2459 = vsel %vm2455, %v2439, %v2442
        %v2460 = vsel %vm2458, %v2448, 2102212464
        %v2461 = vsel %vm2457, %v2445, %v2460
        %v2462 = vsel %vm2456, %v2459, %v2461
        %v2463 = vsel %vm2455, %v2442, %v2445
        %v2464 = vsel %vm2458, %v2451, 920167782
        %v2465 = vsel %vm2457, %v2448, %v2464
        %v2466 = vsel %vm2456, %v2463, %v2465
        %v2467 = vsel %vm2455, %v2445, %v2448
        %v2468 = vsel %vm2458, %v2454, 1326507024
        %v2469 = vsel %vm2457, %v2451, %v2468
        %v2470 = vsel %vm2456, %v2467, %v2469
        %v2471 = vshll.u32 %v2431, 8
        %v2472 = vmul.u32.u64.compose %v2471, %v2470
        %v2473 = vextract.low.u32 %v2472
        %v2474 = vextract.high.u32 %v2472
        %v2475 = vmul.u32.u64.compose %v2471, %v2466
        %v2476 = vextract.low.u32 %v2475
        %v2477 = vextract.high.u32 %v2475
        %v2478 = vmul.u32 %v2471, %v2462
        %v2479 = vadd.s32 %v2474, %v2476
        %vm2480 = vc.u32 %v2474, %v2476
        %v2481 = vadd.s32 %v2477, 1
        %v2482 = vsel %vm2480, %v2481, %v2477
        %v2483 = vadd.s32 %v2478, %v2482
        %v2484 = vadd.s32 %v2483, 536870912
        %v2485 = vshrl.u32 %v2484, 30
        %v2486 = vshll.u32 %v2485, 30
        %v2487 = vsub.s32 %v2483, %v2486
        %vm2488 = vcmp.lt.s32.totalorder %v2487, 0
        %v2489 = vsub.s32 0, %v2487
        %v2490 = vsel %vm2488, %v2489, %v2487
        %v2491 = vclz %v2490
        %v2492 = vsub.s32 %v2491, 2
        %vm2493 = vcmp.gt.s32.totalorder 0, %v2492
        %v2494 = vsel %vm2493, 0, %v2492
        %v2495 = vsub.s32 32, %v2494
        %v2496 = vshll.u32 %v2487, %v2494
        %v2497 = vshrl.u32 %v2479, %v2495
        %v2498 = vor.u32 %v2496, %v2497
        %v2499 = vsub.s32 4294967266, %v2494
        %v2500 = vadd.s32 %v2499, 127
        %v2501 = vshll.u32 %v2500, 23
        %v2502 = vor.u32 4788187, %v2501
        %v2503 = vand.u32 2147483647, %v2502
        %v2505 = vcvt.s32.f32 %v2498
        %v2506 = vmul.f32 %v2505, %v2503
        %v2507 = vxor.u32 %v2506, 2147483648
        %v2508 = vsel %vm2425, %v2507, %v2506
        %v2509 = vsub.s32 4, %v2485
        %v2510 = vsel %vm2425, %v2509, %v2485
        %v2511 = vsel %vm2424, %v1785, %v2508
        %v2512 = vsel %vm2424, 0, %v2510
        %v2513 = vcosq.f32.pop %v2511
        %v2514 = vsinq.f32.pop %v2511
        %vm2515 = vweird.f32 %v1785
        %v2516 = vadd.s32 %v2512, 3
        %v2517 = vand.u32 %v2516, 3
        %vm2518 = vcmp.lt.s32.totalorder %v2517, 2
        %vm2519 = vcmp.eq.s32.totalorder %v2517, 0
        %v2520 = vxor.u32 %v2514, 2147483648
        %v2521 = vsel %vm2519, %v2513, %v2520
        %vm2522 = vcmp.eq.s32.totalorder %v2517, 2
        %v2523 = vxor.u32 %v2513, 2147483648
        %v2524 = vsel %vm2522, %v2523, %v2514
        %v2525 = vsel %vm2518, %v2521, %v2524
        %v2526 = vsel %vm2515, nan, %v2525
        %v2527 = vand.u32 2147483647, %v1787
        %vm2528 = vcmp.le.f32.partialorder %v2527, 0.7853982
        %vm2529 = vcmp.lt.s32.totalorder %v1787, 0
        %v2530 = vand.u32 %v1787, 2139095040
        %v2531 = vshrl.u32 %v2530, 23
        %v2532 = vsub.s32 %v2531, 127
        %v2533 = vand.u32 2147483647, %v1787
        %v2534 = vand.u32 %v2533, 8388607
        %v2535 = vor.u32 %v2534, 8388608
        %v2536 = vsub.s32 0, %v2535
        %v2537 = vadd.s32 %v2532, 1
        %vm2538 = vcmp.gt.s32.totalorder %v2537, 0
        %v2539 = vsel %vm2538, %v2537, 0
        %v2540 = vshrl.u32 %v2539, 5
        %v2541 = vand.u32 %v2539, 31
        %v2542 = vsub.s32 32, %v2541
        %v2543 = vshrl.u32 683565275, %v2542
        %v2544 = vshll.u32 683565275, %v2541
        %v2545 = vshrl.u32 2475754826, %v2542
        %v2546 = vor.u32 %v2544, %v2545
        %v2547 = vshll.u32 2475754826, %v2541
        %v2548 = vshrl.u32 2131351028, %v2542
        %v2549 = vor.u32 %v2547, %v2548
        %v2550 = vshll.u32 2131351028, %v2541
        %v2551 = vshrl.u32 2102212464, %v2542
        %v2552 = vor.u32 %v2550, %v2551
        %v2553 = vshll.u32 2102212464, %v2541
        %v2554 = vshrl.u32 920167782, %v2542
        %v2555 = vor.u32 %v2553, %v2554
        %v2556 = vshll.u32 920167782, %v2541
        %v2557 = vshrl.u32 1326507024, %v2542
        %v2558 = vor.u32 %v2556, %v2557
        %vm2559 = vcmp.lt.s32.totalorder %v2540, 1
        %vm2560 = vcmp.lt.s32.totalorder %v2540, 2
        %vm2561 = vcmp.lt.s32.totalorder %v2540, 3
        %vm2562 = vcmp.lt.s32.totalorder %v2540, 4
        %v2563 = vsel %vm2559, %v2543, %v2546
        %v2564 = vsel %vm2562, %v2552, 2102212464
        %v2565 = vsel %vm2561, %v2549, %v2564
        %v2566 = vsel %vm2560, %v2563, %v2565
        %v2567 = vsel %vm2559, %v2546, %v2549
        %v2568 = vsel %vm2562, %v2555, 920167782
        %v2569 = vsel %vm2561, %v2552, %v2568
        %v2570 = vsel %vm2560, %v2567, %v2569
        %v2571 = vsel %vm2559, %v2549, %v2552
        %v2572 = vsel %vm2562, %v2558, 1326507024
        %v2573 = vsel %vm2561, %v2555, %v2572
        %v2574 = vsel %vm2560, %v2571, %v2573
        %v2575 = vshll.u32 %v2535, 8
        %v2576 = vmul.u32.u64.compose %v2575, %v2574
        %v2577 = vextract.low.u32 %v2576
        %v2578 = vextract.high.u32 %v2576
        %v2579 = vmul.u32.u64.compose %v2575, %v2570
        %v2580 = vextract.low.u32 %v2579
        %v2581 = vextract.high.u32 %v2579
        %v2582 = vmul.u32 %v2575, %v2566
        %v2583 = vadd.s32 %v2578, %v2580
        %vm2584 = vc.u32 %v2578, %v2580
        %v2585 = vadd.s32 %v2581, 1
        %v2586 = vsel %vm2584, %v2585, %v2581
        %v2587 = vadd.s32 %v2582, %v2586
        %v2588 = vadd.s32 %v2587, 536870912
        %v2589 = vshrl.u32 %v2588, 30
        %v2590 = vshll.u32 %v2589, 30
        %v2591 = vsub.s32 %v2587, %v2590
        %vm2592 = vcmp.lt.s32.totalorder %v2591, 0
        %v2593 = vsub.s32 0, %v2591
        %v2594 = vsel %vm2592, %v2593, %v2591
        %v2595 = vclz %v2594
        %v2596 = vsub.s32 %v2595, 2
        %vm2597 = vcmp.gt.s32.totalorder 0, %v2596
        %v2598 = vsel %vm2597, 0, %v2596
        %v2599 = vsub.s32 32, %v2598
        %v2600 = vshll.u32 %v2591, %v2598
        %v2601 = vshrl.u32 %v2583, %v2599
        %v2602 = vor.u32 %v2600, %v2601
        %v2603 = vsub.s32 4294967266, %v2598
        %v2604 = vadd.s32 %v2603, 127
        %v2605 = vshll.u32 %v2604, 23
        %v2606 = vor.u32 4788187, %v2605
        %v2607 = vand.u32 2147483647, %v2606
        %v2609 = vcvt.s32.f32 %v2602
        %v2610 = vmul.f32 %v2609, %v2607
        %v2611 = vxor.u32 %v2610, 2147483648
        %v2612 = vsel %vm2529, %v2611, %v2610
        %v2613 = vsub.s32 4, %v2589
        %v2614 = vsel %vm2529, %v2613, %v2589
        %v2615 = vsel %vm2528, %v1787, %v2612
        %v2616 = vsel %vm2528, 0, %v2614
        %v2617 = vcosq.f32.pop %v2615
        %v2618 = vsinq.f32.pop %v2615
        %vm2619 = vweird.f32 %v1787
        %v2620 = vadd.s32 %v2616, 3
        %v2621 = vand.u32 %v2620, 3
        %vm2622 = vcmp.lt.s32.totalorder %v2621, 2
        %vm2623 = vcmp.eq.s32.totalorder %v2621, 0
        %v2624 = vxor.u32 %v2618, 2147483648
        %v2625 = vsel %vm2623, %v2617, %v2624
        %vm2626 = vcmp.eq.s32.totalorder %v2621, 2
        %v2627 = vxor.u32 %v2617, 2147483648
        %v2628 = vsel %vm2626, %v2627, %v2618
        %v2629 = vsel %vm2622, %v2625, %v2628
        %v2630 = vsel %vm2619, nan, %v2629
        %v2631 = vand.u32 2147483647, %v1738
        %vm2632 = vcmp.le.f32.partialorder %v2631, 0.7853982
        %vm2633 = vcmp.lt.s32.totalorder %v1738, 0
        %v2634 = vand.u32 %v1738, 2139095040
        %v2635 = vshrl.u32 %v2634, 23
        %v2636 = vsub.s32 %v2635, 127
        %v2637 = vand.u32 2147483647, %v1738
        %v2638 = vand.u32 %v2637, 8388607
        %v2639 = vor.u32 %v2638, 8388608
        %v2640 = vsub.s32 0, %v2639
        %v2641 = vadd.s32 %v2636, 1
        %vm2642 = vcmp.gt.s32.totalorder %v2641, 0
        %v2643 = vsel %vm2642, %v2641, 0
        %v2644 = vshrl.u32 %v2643, 5
        %v2645 = vand.u32 %v2643, 31
        %v2646 = vsub.s32 32, %v2645
        %v2647 = vshrl.u32 683565275, %v2646
        %v2648 = vshll.u32 683565275, %v2645
        %v2649 = vshrl.u32 2475754826, %v2646
        %v2650 = vor.u32 %v2648, %v2649
        %v2651 = vshll.u32 2475754826, %v2645
        %v2652 = vshrl.u32 2131351028, %v2646
        %v2653 = vor.u32 %v2651, %v2652
        %v2654 = vshll.u32 2131351028, %v2645
        %v2655 = vshrl.u32 2102212464, %v2646
        %v2656 = vor.u32 %v2654, %v2655
        %v2657 = vshll.u32 2102212464, %v2645
        %v2658 = vshrl.u32 920167782, %v2646
        %v2659 = vor.u32 %v2657, %v2658
        %v2660 = vshll.u32 920167782, %v2645
        %v2661 = vshrl.u32 1326507024, %v2646
        %v2662 = vor.u32 %v2660, %v2661
        %vm2663 = vcmp.lt.s32.totalorder %v2644, 1
        %vm2664 = vcmp.lt.s32.totalorder %v2644, 2
        %vm2665 = vcmp.lt.s32.totalorder %v2644, 3
        %vm2666 = vcmp.lt.s32.totalorder %v2644, 4
        %v2667 = vsel %vm2663, %v2647, %v2650
        %v2668 = vsel %vm2666, %v2656, 2102212464
        %v2669 = vsel %vm2665, %v2653, %v2668
        %v2670 = vsel %vm2664, %v2667, %v2669
        %v2671 = vsel %vm2663, %v2650, %v2653
        %v2672 = vsel %vm2666, %v2659, 920167782
        %v2673 = vsel %vm2665, %v2656, %v2672
        %v2674 = vsel %vm2664, %v2671, %v2673
        %v2675 = vsel %vm2663, %v2653, %v2656
        %v2676 = vsel %vm2666, %v2662, 1326507024
        %v2677 = vsel %vm2665, %v2659, %v2676
        %v2678 = vsel %vm2664, %v2675, %v2677
        %v2679 = vshll.u32 %v2639, 8
        %v2680 = vmul.u32.u64.compose %v2679, %v2678
        %v2681 = vextract.low.u32 %v2680
        %v2682 = vextract.high.u32 %v2680
        %v2683 = vmul.u32.u64.compose %v2679, %v2674
        %v2684 = vextract.low.u32 %v2683
        %v2685 = vextract.high.u32 %v2683
        %v2686 = vmul.u32 %v2679, %v2670
        %v2687 = vadd.s32 %v2682, %v2684
        %vm2688 = vc.u32 %v2682, %v2684
        %v2689 = vadd.s32 %v2685, 1
        %v2690 = vsel %vm2688, %v2689, %v2685
        %v2691 = vadd.s32 %v2686, %v2690
        %v2692 = vadd.s32 %v2691, 536870912
        %v2693 = vshrl.u32 %v2692, 30
        %v2694 = vshll.u32 %v2693, 30
        %v2695 = vsub.s32 %v2691, %v2694
        %vm2696 = vcmp.lt.s32.totalorder %v2695, 0
        %v2697 = vsub.s32 0, %v2695
        %v2698 = vsel %vm2696, %v2697, %v2695
        %v2699 = vclz %v2698
        %v2700 = vsub.s32 %v2699, 2
        %vm2701 = vcmp.gt.s32.totalorder 0, %v2700
        %v2702 = vsel %vm2701, 0, %v2700
        %v2703 = vsub.s32 32, %v2702
        %v2704 = vshll.u32 %v2695, %v2702
        %v2705 = vshrl.u32 %v2687, %v2703
        %v2706 = vor.u32 %v2704, %v2705
        %v2707 = vsub.s32 4294967266, %v2702
        %v2708 = vadd.s32 %v2707, 127
        %v2709 = vshll.u32 %v2708, 23
        %v2710 = vor.u32 4788187, %v2709
        %v2711 = vand.u32 2147483647, %v2710
        %v2713 = vcvt.s32.f32 %v2706
        %v2714 = vmul.f32 %v2713, %v2711
        %v2715 = vxor.u32 %v2714, 2147483648
        %v2716 = vsel %vm2633, %v2715, %v2714
        %v2717 = vsub.s32 4, %v2693
        %v2718 = vsel %vm2633, %v2717, %v2693
        %v2719 = vsel %vm2632, %v1738, %v2716
        %v2720 = vsel %vm2632, 0, %v2718
        %v2721 = vcosq.f32.pop %v2719
        %v2722 = vsinq.f32.pop %v2719
        %vm2723 = vweird.f32 %v1738
        %v2724 = vadd.s32 %v2720, 3
        %v2725 = vand.u32 %v2724, 3
        %vm2726 = vcmp.lt.s32.totalorder %v2725, 2
        %vm2727 = vcmp.eq.s32.totalorder %v2725, 0
        %v2728 = vxor.u32 %v2722, 2147483648
        %v2729 = vsel %vm2727, %v2721, %v2728
        %vm2730 = vcmp.eq.s32.totalorder %v2725, 2
        %v2731 = vxor.u32 %v2721, 2147483648
        %v2732 = vsel %vm2730, %v2731, %v2722
        %v2733 = vsel %vm2726, %v2729, %v2732
        %v2734 = vsel %vm2723, nan, %v2733
        %v2735 = vand.u32 2147483647, %v1740
        %vm2736 = vcmp.le.f32.partialorder %v2735, 0.7853982
        %vm2737 = vcmp.lt.s32.totalorder %v1740, 0
        %v2738 = vand.u32 %v1740, 2139095040
        %v2739 = vshrl.u32 %v2738, 23
        %v2740 = vsub.s32 %v2739, 127
        %v2741 = vand.u32 2147483647, %v1740
        %v2742 = vand.u32 %v2741, 8388607
        %v2743 = vor.u32 %v2742, 8388608
        %v2744 = vsub.s32 0, %v2743
        %v2745 = vadd.s32 %v2740, 1
        %vm2746 = vcmp.gt.s32.totalorder %v2745, 0
        %v2747 = vsel %vm2746, %v2745, 0
        %v2748 = vshrl.u32 %v2747, 5
        %v2749 = vand.u32 %v2747, 31
        %v2750 = vsub.s32 32, %v2749
        %v2751 = vshrl.u32 683565275, %v2750
        %v2752 = vshll.u32 683565275, %v2749
        %v2753 = vshrl.u32 2475754826, %v2750
        %v2754 = vor.u32 %v2752, %v2753
        %v2755 = vshll.u32 2475754826, %v2749
        %v2756 = vshrl.u32 2131351028, %v2750
        %v2757 = vor.u32 %v2755, %v2756
        %v2758 = vshll.u32 2131351028, %v2749
        %v2759 = vshrl.u32 2102212464, %v2750
        %v2760 = vor.u32 %v2758, %v2759
        %v2761 = vshll.u32 2102212464, %v2749
        %v2762 = vshrl.u32 920167782, %v2750
        %v2763 = vor.u32 %v2761, %v2762
        %v2764 = vshll.u32 920167782, %v2749
        %v2765 = vshrl.u32 1326507024, %v2750
        %v2766 = vor.u32 %v2764, %v2765
        %vm2767 = vcmp.lt.s32.totalorder %v2748, 1
        %vm2768 = vcmp.lt.s32.totalorder %v2748, 2
        %vm2769 = vcmp.lt.s32.totalorder %v2748, 3
        %vm2770 = vcmp.lt.s32.totalorder %v2748, 4
        %v2771 = vsel %vm2767, %v2751, %v2754
        %v2772 = vsel %vm2770, %v2760, 2102212464
        %v2773 = vsel %vm2769, %v2757, %v2772
        %v2774 = vsel %vm2768, %v2771, %v2773
        %v2775 = vsel %vm2767, %v2754, %v2757
        %v2776 = vsel %vm2770, %v2763, 920167782
        %v2777 = vsel %vm2769, %v2760, %v2776
        %v2778 = vsel %vm2768, %v2775, %v2777
        %v2779 = vsel %vm2767, %v2757, %v2760
        %v2780 = vsel %vm2770, %v2766, 1326507024
        %v2781 = vsel %vm2769, %v2763, %v2780
        %v2782 = vsel %vm2768, %v2779, %v2781
        %v2783 = vshll.u32 %v2743, 8
        %v2784 = vmul.u32.u64.compose %v2783, %v2782
        %v2785 = vextract.low.u32 %v2784
        %v2786 = vextract.high.u32 %v2784
        %v2787 = vmul.u32.u64.compose %v2783, %v2778
        %v2788 = vextract.low.u32 %v2787
        %v2789 = vextract.high.u32 %v2787
        %v2790 = vmul.u32 %v2783, %v2774
        %v2791 = vadd.s32 %v2786, %v2788
        %vm2792 = vc.u32 %v2786, %v2788
        %v2793 = vadd.s32 %v2789, 1
        %v2794 = vsel %vm2792, %v2793, %v2789
        %v2795 = vadd.s32 %v2790, %v2794
        %v2796 = vadd.s32 %v2795, 536870912
        %v2797 = vshrl.u32 %v2796, 30
        %v2798 = vshll.u32 %v2797, 30
        %v2799 = vsub.s32 %v2795, %v2798
        %vm2800 = vcmp.lt.s32.totalorder %v2799, 0
        %v2801 = vsub.s32 0, %v2799
        %v2802 = vsel %vm2800, %v2801, %v2799
        %v2803 = vclz %v2802
        %v2804 = vsub.s32 %v2803, 2
        %vm2805 = vcmp.gt.s32.totalorder 0, %v2804
        %v2806 = vsel %vm2805, 0, %v2804
        %v2807 = vsub.s32 32, %v2806
        %v2808 = vshll.u32 %v2799, %v2806
        %v2809 = vshrl.u32 %v2791, %v2807
        %v2810 = vor.u32 %v2808, %v2809
        %v2811 = vsub.s32 4294967266, %v2806
        %v2812 = vadd.s32 %v2811, 127
        %v2813 = vshll.u32 %v2812, 23
        %v2814 = vor.u32 4788187, %v2813
        %v2815 = vand.u32 2147483647, %v2814
        %v2817 = vcvt.s32.f32 %v2810
        %v2818 = vmul.f32 %v2817, %v2815
        %v2819 = vxor.u32 %v2818, 2147483648
        %v2820 = vsel %vm2737, %v2819, %v2818
        %v2821 = vsub.s32 4, %v2797
        %v2822 = vsel %vm2737, %v2821, %v2797
        %v2823 = vsel %vm2736, %v1740, %v2820
        %v2824 = vsel %vm2736, 0, %v2822
        %v2825 = vcosq.f32.pop %v2823
        %v2826 = vsinq.f32.pop %v2823
        %vm2827 = vweird.f32 %v1740
        %v2828 = vadd.s32 %v2824, 3
        %v2829 = vand.u32 %v2828, 3
        %vm2830 = vcmp.lt.s32.totalorder %v2829, 2
        %vm2831 = vcmp.eq.s32.totalorder %v2829, 0
        %v2832 = vxor.u32 %v2826, 2147483648
        %v2833 = vsel %vm2831, %v2825, %v2832
        %vm2834 = vcmp.eq.s32.totalorder %v2829, 2
        %v2835 = vxor.u32 %v2825, 2147483648
        %v2836 = vsel %vm2834, %v2835, %v2826
        %v2837 = vsel %vm2830, %v2833, %v2836
        %v2838 = vsel %vm2827, nan, %v2837
        %v2839 = vand.u32 2147483647, %v1791
        %vm2840 = vcmp.le.f32.partialorder %v2839, 0.7853982
        %vm2841 = vcmp.lt.s32.totalorder %v1791, 0
        %v2842 = vand.u32 %v1791, 2139095040
        %v2843 = vshrl.u32 %v2842, 23
        %v2844 = vsub.s32 %v2843, 127
        %v2845 = vand.u32 2147483647, %v1791
        %v2846 = vand.u32 %v2845, 8388607
        %v2847 = vor.u32 %v2846, 8388608
        %v2848 = vsub.s32 0, %v2847
        %v2849 = vadd.s32 %v2844, 1
        %vm2850 = vcmp.gt.s32.totalorder %v2849, 0
        %v2851 = vsel %vm2850, %v2849, 0
        %v2852 = vshrl.u32 %v2851, 5
        %v2853 = vand.u32 %v2851, 31
        %v2854 = vsub.s32 32, %v2853
        %v2855 = vshrl.u32 683565275, %v2854
        %v2856 = vshll.u32 683565275, %v2853
        %v2857 = vshrl.u32 2475754826, %v2854
        %v2858 = vor.u32 %v2856, %v2857
        %v2859 = vshll.u32 2475754826, %v2853
        %v2860 = vshrl.u32 2131351028, %v2854
        %v2861 = vor.u32 %v2859, %v2860
        %v2862 = vshll.u32 2131351028, %v2853
        %v2863 = vshrl.u32 2102212464, %v2854
        %v2864 = vor.u32 %v2862, %v2863
        %v2865 = vshll.u32 2102212464, %v2853
        %v2866 = vshrl.u32 920167782, %v2854
        %v2867 = vor.u32 %v2865, %v2866
        %v2868 = vshll.u32 920167782, %v2853
        %v2869 = vshrl.u32 1326507024, %v2854
        %v2870 = vor.u32 %v2868, %v2869
        %vm2871 = vcmp.lt.s32.totalorder %v2852, 1
        %vm2872 = vcmp.lt.s32.totalorder %v2852, 2
        %vm2873 = vcmp.lt.s32.totalorder %v2852, 3
        %vm2874 = vcmp.lt.s32.totalorder %v2852, 4
        %v2875 = vsel %vm2871, %v2855, %v2858
        %v2876 = vsel %vm2874, %v2864, 2102212464
        %v2877 = vsel %vm2873, %v2861, %v2876
        %v2878 = vsel %vm2872, %v2875, %v2877
        %v2879 = vsel %vm2871, %v2858, %v2861
        %v2880 = vsel %vm2874, %v2867, 920167782
        %v2881 = vsel %vm2873, %v2864, %v2880
        %v2882 = vsel %vm2872, %v2879, %v2881
        %v2883 = vsel %vm2871, %v2861, %v2864
        %v2884 = vsel %vm2874, %v2870, 1326507024
        %v2885 = vsel %vm2873, %v2867, %v2884
        %v2886 = vsel %vm2872, %v2883, %v2885
        %v2887 = vshll.u32 %v2847, 8
        %v2888 = vmul.u32.u64.compose %v2887, %v2886
        %v2889 = vextract.low.u32 %v2888
        %v2890 = vextract.high.u32 %v2888
        %v2891 = vmul.u32.u64.compose %v2887, %v2882
        %v2892 = vextract.low.u32 %v2891
        %v2893 = vextract.high.u32 %v2891
        %v2894 = vmul.u32 %v2887, %v2878
        %v2895 = vadd.s32 %v2890, %v2892
        %vm2896 = vc.u32 %v2890, %v2892
        %v2897 = vadd.s32 %v2893, 1
        %v2898 = vsel %vm2896, %v2897, %v2893
        %v2899 = vadd.s32 %v2894, %v2898
        %v2900 = vadd.s32 %v2899, 536870912
        %v2901 = vshrl.u32 %v2900, 30
        %v2902 = vshll.u32 %v2901, 30
        %v2903 = vsub.s32 %v2899, %v2902
        %vm2904 = vcmp.lt.s32.totalorder %v2903, 0
        %v2905 = vsub.s32 0, %v2903
        %v2906 = vsel %vm2904, %v2905, %v2903
        %v2907 = vclz %v2906
        %v2908 = vsub.s32 %v2907, 2
        %vm2909 = vcmp.gt.s32.totalorder 0, %v2908
        %v2910 = vsel %vm2909, 0, %v2908
        %v2911 = vsub.s32 32, %v2910
        %v2912 = vshll.u32 %v2903, %v2910
        %v2913 = vshrl.u32 %v2895, %v2911
        %v2914 = vor.u32 %v2912, %v2913
        %v2915 = vsub.s32 4294967266, %v2910
        %v2916 = vadd.s32 %v2915, 127
        %v2917 = vshll.u32 %v2916, 23
        %v2918 = vor.u32 4788187, %v2917
        %v2919 = vand.u32 2147483647, %v2918
        %v2921 = vcvt.s32.f32 %v2914
        %v2922 = vmul.f32 %v2921, %v2919
        %v2923 = vxor.u32 %v2922, 2147483648
        %v2924 = vsel %vm2841, %v2923, %v2922
        %v2925 = vsub.s32 4, %v2901
        %v2926 = vsel %vm2841, %v2925, %v2901
        %v2927 = vsel %vm2840, %v1791, %v2924
        %v2928 = vsel %vm2840, 0, %v2926
        %v2929 = vcosq.f32.pop %v2927
        %v2930 = vsinq.f32.pop %v2927
        %vm2931 = vweird.f32 %v1791
        %v2932 = vadd.s32 %v2928, 3
        %v2933 = vand.u32 %v2932, 3
        %vm2934 = vcmp.lt.s32.totalorder %v2933, 2
        %vm2935 = vcmp.eq.s32.totalorder %v2933, 0
        %v2936 = vxor.u32 %v2930, 2147483648
        %v2937 = vsel %vm2935, %v2929, %v2936
        %vm2938 = vcmp.eq.s32.totalorder %v2933, 2
        %v2939 = vxor.u32 %v2929, 2147483648
        %v2940 = vsel %vm2938, %v2939, %v2930
        %v2941 = vsel %vm2934, %v2937, %v2940
        %v2942 = vsel %vm2931, nan, %v2941
        %v2943 = vand.u32 2147483647, %v1793
        %vm2944 = vcmp.le.f32.partialorder %v2943, 0.7853982
        %vm2945 = vcmp.lt.s32.totalorder %v1793, 0
        %v2946 = vand.u32 %v1793, 2139095040
        %v2947 = vshrl.u32 %v2946, 23
        %v2948 = vsub.s32 %v2947, 127
        %v2949 = vand.u32 2147483647, %v1793
        %v2950 = vand.u32 %v2949, 8388607
        %v2951 = vor.u32 %v2950, 8388608
        %v2952 = vsub.s32 0, %v2951
        %v2953 = vadd.s32 %v2948, 1
        %vm2954 = vcmp.gt.s32.totalorder %v2953, 0
        %v2955 = vsel %vm2954, %v2953, 0
        %v2956 = vshrl.u32 %v2955, 5
        %v2957 = vand.u32 %v2955, 31
        %v2958 = vsub.s32 32, %v2957
        %v2959 = vshrl.u32 683565275, %v2958
        %v2960 = vshll.u32 683565275, %v2957
        %v2961 = vshrl.u32 2475754826, %v2958
        %v2962 = vor.u32 %v2960, %v2961
        %v2963 = vshll.u32 2475754826, %v2957
        %v2964 = vshrl.u32 2131351028, %v2958
        %v2965 = vor.u32 %v2963, %v2964
        %v2966 = vshll.u32 2131351028, %v2957
        %v2967 = vshrl.u32 2102212464, %v2958
        %v2968 = vor.u32 %v2966, %v2967
        %v2969 = vshll.u32 2102212464, %v2957
        %v2970 = vshrl.u32 920167782, %v2958
        %v2971 = vor.u32 %v2969, %v2970
        %v2972 = vshll.u32 920167782, %v2957
        %v2973 = vshrl.u32 1326507024, %v2958
        %v2974 = vor.u32 %v2972, %v2973
        %vm2975 = vcmp.lt.s32.totalorder %v2956, 1
        %vm2976 = vcmp.lt.s32.totalorder %v2956, 2
        %vm2977 = vcmp.lt.s32.totalorder %v2956, 3
        %vm2978 = vcmp.lt.s32.totalorder %v2956, 4
        %v2979 = vsel %vm2975, %v2959, %v2962
        %v2980 = vsel %vm2978, %v2968, 2102212464
        %v2981 = vsel %vm2977, %v2965, %v2980
        %v2982 = vsel %vm2976, %v2979, %v2981
        %v2983 = vsel %vm2975, %v2962, %v2965
        %v2984 = vsel %vm2978, %v2971, 920167782
        %v2985 = vsel %vm2977, %v2968, %v2984
        %v2986 = vsel %vm2976, %v2983, %v2985
        %v2987 = vsel %vm2975, %v2965, %v2968
        %v2988 = vsel %vm2978, %v2974, 1326507024
        %v2989 = vsel %vm2977, %v2971, %v2988
        %v2990 = vsel %vm2976, %v2987, %v2989
        %v2991 = vshll.u32 %v2951, 8
        %v2992 = vmul.u32.u64.compose %v2991, %v2990
        %v2993 = vextract.low.u32 %v2992
        %v2994 = vextract.high.u32 %v2992
        %v2995 = vmul.u32.u64.compose %v2991, %v2986
        %v2996 = vextract.low.u32 %v2995
        %v2997 = vextract.high.u32 %v2995
        %v2998 = vmul.u32 %v2991, %v2982
        %v2999 = vadd.s32 %v2994, %v2996
        %vm3000 = vc.u32 %v2994, %v2996
        %v3001 = vadd.s32 %v2997, 1
        %v3002 = vsel %vm3000, %v3001, %v2997
        %v3003 = vadd.s32 %v2998, %v3002
        %v3004 = vadd.s32 %v3003, 536870912
        %v3005 = vshrl.u32 %v3004, 30
        %v3006 = vshll.u32 %v3005, 30
        %v3007 = vsub.s32 %v3003, %v3006
        %vm3008 = vcmp.lt.s32.totalorder %v3007, 0
        %v3009 = vsub.s32 0, %v3007
        %v3010 = vsel %vm3008, %v3009, %v3007
        %v3011 = vclz %v3010
        %v3012 = vsub.s32 %v3011, 2
        %vm3013 = vcmp.gt.s32.totalorder 0, %v3012
        %v3014 = vsel %vm3013, 0, %v3012
        %v3015 = vsub.s32 32, %v3014
        %v3016 = vshll.u32 %v3007, %v3014
        %v3017 = vshrl.u32 %v2999, %v3015
        %v3018 = vor.u32 %v3016, %v3017
        %v3019 = vsub.s32 4294967266, %v3014
        %v3020 = vadd.s32 %v3019, 127
        %v3021 = vshll.u32 %v3020, 23
        %v3022 = vor.u32 4788187, %v3021
        %v3023 = vand.u32 2147483647, %v3022
        %v3025 = vcvt.s32.f32 %v3018
        %v3026 = vmul.f32 %v3025, %v3023
        %v3027 = vxor.u32 %v3026, 2147483648
        %v3028 = vsel %vm2945, %v3027, %v3026
        %v3029 = vsub.s32 4, %v3005
        %v3030 = vsel %vm2945, %v3029, %v3005
        %v3031 = vsel %vm2944, %v1793, %v3028
        %v3032 = vsel %vm2944, 0, %v3030
        %v3033 = vcosq.f32.pop %v3031
        %v3034 = vsinq.f32.pop %v3031
        %vm3035 = vweird.f32 %v1793
        %v3036 = vadd.s32 %v3032, 3
        %v3037 = vand.u32 %v3036, 3
        %vm3038 = vcmp.lt.s32.totalorder %v3037, 2
        %vm3039 = vcmp.eq.s32.totalorder %v3037, 0
        %v3040 = vxor.u32 %v3034, 2147483648
        %v3041 = vsel %vm3039, %v3033, %v3040
        %vm3042 = vcmp.eq.s32.totalorder %v3037, 2
        %v3043 = vxor.u32 %v3033, 2147483648
        %v3044 = vsel %vm3042, %v3043, %v3034
        %v3045 = vsel %vm3038, %v3041, %v3044
        %v3046 = vsel %vm3035, nan, %v3045
        %v3047 = vand.u32 2147483647, %v1742
        %vm3048 = vcmp.le.f32.partialorder %v3047, 0.7853982
        %vm3049 = vcmp.lt.s32.totalorder %v1742, 0
        %v3050 = vand.u32 %v1742, 2139095040
        %v3051 = vshrl.u32 %v3050, 23
        %v3052 = vsub.s32 %v3051, 127
        %v3053 = vand.u32 2147483647, %v1742
        %v3054 = vand.u32 %v3053, 8388607
        %v3055 = vor.u32 %v3054, 8388608
        %v3056 = vsub.s32 0, %v3055
        %v3057 = vadd.s32 %v3052, 1
        %vm3058 = vcmp.gt.s32.totalorder %v3057, 0
        %v3059 = vsel %vm3058, %v3057, 0
        %v3060 = vshrl.u32 %v3059, 5
        %v3061 = vand.u32 %v3059, 31
        %v3062 = vsub.s32 32, %v3061
        %v3063 = vshrl.u32 683565275, %v3062
        %v3064 = vshll.u32 683565275, %v3061
        %v3065 = vshrl.u32 2475754826, %v3062
        %v3066 = vor.u32 %v3064, %v3065
        %v3067 = vshll.u32 2475754826, %v3061
        %v3068 = vshrl.u32 2131351028, %v3062
        %v3069 = vor.u32 %v3067, %v3068
        %v3070 = vshll.u32 2131351028, %v3061
        %v3071 = vshrl.u32 2102212464, %v3062
        %v3072 = vor.u32 %v3070, %v3071
        %v3073 = vshll.u32 2102212464, %v3061
        %v3074 = vshrl.u32 920167782, %v3062
        %v3075 = vor.u32 %v3073, %v3074
        %v3076 = vshll.u32 920167782, %v3061
        %v3077 = vshrl.u32 1326507024, %v3062
        %v3078 = vor.u32 %v3076, %v3077
        %vm3079 = vcmp.lt.s32.totalorder %v3060, 1
        %vm3080 = vcmp.lt.s32.totalorder %v3060, 2
        %vm3081 = vcmp.lt.s32.totalorder %v3060, 3
        %vm3082 = vcmp.lt.s32.totalorder %v3060, 4
        %v3083 = vsel %vm3079, %v3063, %v3066
        %v3084 = vsel %vm3082, %v3072, 2102212464
        %v3085 = vsel %vm3081, %v3069, %v3084
        %v3086 = vsel %vm3080, %v3083, %v3085
        %v3087 = vsel %vm3079, %v3066, %v3069
        %v3088 = vsel %vm3082, %v3075, 920167782
        %v3089 = vsel %vm3081, %v3072, %v3088
        %v3090 = vsel %vm3080, %v3087, %v3089
        %v3091 = vsel %vm3079, %v3069, %v3072
        %v3092 = vsel %vm3082, %v3078, 1326507024
        %v3093 = vsel %vm3081, %v3075, %v3092
        %v3094 = vsel %vm3080, %v3091, %v3093
        %v3095 = vshll.u32 %v3055, 8
        %v3096 = vmul.u32.u64.compose %v3095, %v3094
        %v3097 = vextract.low.u32 %v3096
        %v3098 = vextract.high.u32 %v3096
        %v3099 = vmul.u32.u64.compose %v3095, %v3090
        %v3100 = vextract.low.u32 %v3099
        %v3101 = vextract.high.u32 %v3099
        %v3102 = vmul.u32 %v3095, %v3086
        %v3103 = vadd.s32 %v3098, %v3100
        %vm3104 = vc.u32 %v3098, %v3100
        %v3105 = vadd.s32 %v3101, 1
        %v3106 = vsel %vm3104, %v3105, %v3101
        %v3107 = vadd.s32 %v3102, %v3106
        %v3108 = vadd.s32 %v3107, 536870912
        %v3109 = vshrl.u32 %v3108, 30
        %v3110 = vshll.u32 %v3109, 30
        %v3111 = vsub.s32 %v3107, %v3110
        %vm3112 = vcmp.lt.s32.totalorder %v3111, 0
        %v3113 = vsub.s32 0, %v3111
        %v3114 = vsel %vm3112, %v3113, %v3111
        %v3115 = vclz %v3114
        %v3116 = vsub.s32 %v3115, 2
        %vm3117 = vcmp.gt.s32.totalorder 0, %v3116
        %v3118 = vsel %vm3117, 0, %v3116
        %v3119 = vsub.s32 32, %v3118
        %v3120 = vshll.u32 %v3111, %v3118
        %v3121 = vshrl.u32 %v3103, %v3119
        %v3122 = vor.u32 %v3120, %v3121
        %v3123 = vsub.s32 4294967266, %v3118
        %v3124 = vadd.s32 %v3123, 127
        %v3125 = vshll.u32 %v3124, 23
        %v3126 = vor.u32 4788187, %v3125
        %v3127 = vand.u32 2147483647, %v3126
        %v3129 = vcvt.s32.f32 %v3122
        %v3130 = vmul.f32 %v3129, %v3127
        %v3131 = vxor.u32 %v3130, 2147483648
        %v3132 = vsel %vm3049, %v3131, %v3130
        %v3133 = vsub.s32 4, %v3109
        %v3134 = vsel %vm3049, %v3133, %v3109
        %v3135 = vsel %vm3048, %v1742, %v3132
        %v3136 = vsel %vm3048, 0, %v3134
        %v3137 = vcosq.f32.pop %v3135
        %v3138 = vsinq.f32.pop %v3135
        %vm3139 = vweird.f32 %v1742
        %v3140 = vadd.s32 %v3136, 3
        %v3141 = vand.u32 %v3140, 3
        %vm3142 = vcmp.lt.s32.totalorder %v3141, 2
        %vm3143 = vcmp.eq.s32.totalorder %v3141, 0
        %v3144 = vxor.u32 %v3138, 2147483648
        %v3145 = vsel %vm3143, %v3137, %v3144
        %vm3146 = vcmp.eq.s32.totalorder %v3141, 2
        %v3147 = vxor.u32 %v3137, 2147483648
        %v3148 = vsel %vm3146, %v3147, %v3138
        %v3149 = vsel %vm3142, %v3145, %v3148
        %v3150 = vsel %vm3139, nan, %v3149
        %v3151 = vand.u32 2147483647, %v1744
        %vm3152 = vcmp.le.f32.partialorder %v3151, 0.7853982
        %vm3153 = vcmp.lt.s32.totalorder %v1744, 0
        %v3154 = vand.u32 %v1744, 2139095040
        %v3155 = vshrl.u32 %v3154, 23
        %v3156 = vsub.s32 %v3155, 127
        %v3157 = vand.u32 2147483647, %v1744
        %v3158 = vand.u32 %v3157, 8388607
        %v3159 = vor.u32 %v3158, 8388608
        %v3160 = vsub.s32 0, %v3159
        %v3161 = vadd.s32 %v3156, 1
        %vm3162 = vcmp.gt.s32.totalorder %v3161, 0
        %v3163 = vsel %vm3162, %v3161, 0
        %v3164 = vshrl.u32 %v3163, 5
        %v3165 = vand.u32 %v3163, 31
        %v3166 = vsub.s32 32, %v3165
        %v3167 = vshrl.u32 683565275, %v3166
        %v3168 = vshll.u32 683565275, %v3165
        %v3169 = vshrl.u32 2475754826, %v3166
        %v3170 = vor.u32 %v3168, %v3169
        %v3171 = vshll.u32 2475754826, %v3165
        %v3172 = vshrl.u32 2131351028, %v3166
        %v3173 = vor.u32 %v3171, %v3172
        %v3174 = vshll.u32 2131351028, %v3165
        %v3175 = vshrl.u32 2102212464, %v3166
        %v3176 = vor.u32 %v3174, %v3175
        %v3177 = vshll.u32 2102212464, %v3165
        %v3178 = vshrl.u32 920167782, %v3166
        %v3179 = vor.u32 %v3177, %v3178
        %v3180 = vshll.u32 920167782, %v3165
        %v3181 = vshrl.u32 1326507024, %v3166
        %v3182 = vor.u32 %v3180, %v3181
        %vm3183 = vcmp.lt.s32.totalorder %v3164, 1
        %vm3184 = vcmp.lt.s32.totalorder %v3164, 2
        %vm3185 = vcmp.lt.s32.totalorder %v3164, 3
        %vm3186 = vcmp.lt.s32.totalorder %v3164, 4
        %v3187 = vsel %vm3183, %v3167, %v3170
        %v3188 = vsel %vm3186, %v3176, 2102212464
        %v3189 = vsel %vm3185, %v3173, %v3188
        %v3190 = vsel %vm3184, %v3187, %v3189
        %v3191 = vsel %vm3183, %v3170, %v3173
        %v3192 = vsel %vm3186, %v3179, 920167782
        %v3193 = vsel %vm3185, %v3176, %v3192
        %v3194 = vsel %vm3184, %v3191, %v3193
        %v3195 = vsel %vm3183, %v3173, %v3176
        %v3196 = vsel %vm3186, %v3182, 1326507024
        %v3197 = vsel %vm3185, %v3179, %v3196
        %v3198 = vsel %vm3184, %v3195, %v3197
        %v3199 = vshll.u32 %v3159, 8
        %v3200 = vmul.u32.u64.compose %v3199, %v3198
        %v3201 = vextract.low.u32 %v3200
        %v3202 = vextract.high.u32 %v3200
        %v3203 = vmul.u32.u64.compose %v3199, %v3194
        %v3204 = vextract.low.u32 %v3203
        %v3205 = vextract.high.u32 %v3203
        %v3206 = vmul.u32 %v3199, %v3190
        %v3207 = vadd.s32 %v3202, %v3204
        %vm3208 = vc.u32 %v3202, %v3204
        %v3209 = vadd.s32 %v3205, 1
        %v3210 = vsel %vm3208, %v3209, %v3205
        %v3211 = vadd.s32 %v3206, %v3210
        %v3212 = vadd.s32 %v3211, 536870912
        %v3213 = vshrl.u32 %v3212, 30
        %v3214 = vshll.u32 %v3213, 30
        %v3215 = vsub.s32 %v3211, %v3214
        %vm3216 = vcmp.lt.s32.totalorder %v3215, 0
        %v3217 = vsub.s32 0, %v3215
        %v3218 = vsel %vm3216, %v3217, %v3215
        %v3219 = vclz %v3218
        %v3220 = vsub.s32 %v3219, 2
        %vm3221 = vcmp.gt.s32.totalorder 0, %v3220
        %v3222 = vsel %vm3221, 0, %v3220
        %v3223 = vsub.s32 32, %v3222
        %v3224 = vshll.u32 %v3215, %v3222
        %v3225 = vshrl.u32 %v3207, %v3223
        %v3226 = vor.u32 %v3224, %v3225
        %v3227 = vsub.s32 4294967266, %v3222
        %v3228 = vadd.s32 %v3227, 127
        %v3229 = vshll.u32 %v3228, 23
        %v3230 = vor.u32 4788187, %v3229
        %v3231 = vand.u32 2147483647, %v3230
        %v3233 = vcvt.s32.f32 %v3226
        %v3234 = vmul.f32 %v3233, %v3231
        %v3235 = vxor.u32 %v3234, 2147483648
        %v3236 = vsel %vm3153, %v3235, %v3234
        %v3237 = vsub.s32 4, %v3213
        %v3238 = vsel %vm3153, %v3237, %v3213
        %v3239 = vsel %vm3152, %v1744, %v3236
        %v3240 = vsel %vm3152, 0, %v3238
        %v3241 = vcosq.f32.pop %v3239
        %v3242 = vsinq.f32.pop %v3239
        %vm3243 = vweird.f32 %v1744
        %v3244 = vadd.s32 %v3240, 3
        %v3245 = vand.u32 %v3244, 3
        %vm3246 = vcmp.lt.s32.totalorder %v3245, 2
        %vm3247 = vcmp.eq.s32.totalorder %v3245, 0
        %v3248 = vxor.u32 %v3242, 2147483648
        %v3249 = vsel %vm3247, %v3241, %v3248
        %vm3250 = vcmp.eq.s32.totalorder %v3245, 2
        %v3251 = vxor.u32 %v3241, 2147483648
        %v3252 = vsel %vm3250, %v3251, %v3242
        %v3253 = vsel %vm3246, %v3249, %v3252
        %v3254 = vsel %vm3243, nan, %v3253
        %v3255 = vand.u32 2147483647, %v1795
        %vm3256 = vcmp.le.f32.partialorder %v3255, 0.7853982
        %vm3257 = vcmp.lt.s32.totalorder %v1795, 0
        %v3258 = vand.u32 %v1795, 2139095040
        %v3259 = vshrl.u32 %v3258, 23
        %v3260 = vsub.s32 %v3259, 127
        %v3261 = vand.u32 2147483647, %v1795
        %v3262 = vand.u32 %v3261, 8388607
        %v3263 = vor.u32 %v3262, 8388608
        %v3264 = vsub.s32 0, %v3263
        %v3265 = vadd.s32 %v3260, 1
        %vm3266 = vcmp.gt.s32.totalorder %v3265, 0
        %v3267 = vsel %vm3266, %v3265, 0
        %v3268 = vshrl.u32 %v3267, 5
        %v3269 = vand.u32 %v3267, 31
        %v3270 = vsub.s32 32, %v3269
        %v3271 = vshrl.u32 683565275, %v3270
        %v3272 = vshll.u32 683565275, %v3269
        %v3273 = vshrl.u32 2475754826, %v3270
        %v3274 = vor.u32 %v3272, %v3273
        %v3275 = vshll.u32 2475754826, %v3269
        %v3276 = vshrl.u32 2131351028, %v3270
        %v3277 = vor.u32 %v3275, %v3276
        %v3278 = vshll.u32 2131351028, %v3269
        %v3279 = vshrl.u32 2102212464, %v3270
        %v3280 = vor.u32 %v3278, %v3279
        %v3281 = vshll.u32 2102212464, %v3269
        %v3282 = vshrl.u32 920167782, %v3270
        %v3283 = vor.u32 %v3281, %v3282
        %v3284 = vshll.u32 920167782, %v3269
        %v3285 = vshrl.u32 1326507024, %v3270
        %v3286 = vor.u32 %v3284, %v3285
        %vm3287 = vcmp.lt.s32.totalorder %v3268, 1
        %vm3288 = vcmp.lt.s32.totalorder %v3268, 2
        %vm3289 = vcmp.lt.s32.totalorder %v3268, 3
        %vm3290 = vcmp.lt.s32.totalorder %v3268, 4
        %v3291 = vsel %vm3287, %v3271, %v3274
        %v3292 = vsel %vm3290, %v3280, 2102212464
        %v3293 = vsel %vm3289, %v3277, %v3292
        %v3294 = vsel %vm3288, %v3291, %v3293
        %v3295 = vsel %vm3287, %v3274, %v3277
        %v3296 = vsel %vm3290, %v3283, 920167782
        %v3297 = vsel %vm3289, %v3280, %v3296
        %v3298 = vsel %vm3288, %v3295, %v3297
        %v3299 = vsel %vm3287, %v3277, %v3280
        %v3300 = vsel %vm3290, %v3286, 1326507024
        %v3301 = vsel %vm3289, %v3283, %v3300
        %v3302 = vsel %vm3288, %v3299, %v3301
        %v3303 = vshll.u32 %v3263, 8
        %v3304 = vmul.u32.u64.compose %v3303, %v3302
        %v3305 = vextract.low.u32 %v3304
        %v3306 = vextract.high.u32 %v3304
        %v3307 = vmul.u32.u64.compose %v3303, %v3298
        %v3308 = vextract.low.u32 %v3307
        %v3309 = vextract.high.u32 %v3307
        %v3310 = vmul.u32 %v3303, %v3294
        %v3311 = vadd.s32 %v3306, %v3308
        %vm3312 = vc.u32 %v3306, %v3308
        %v3313 = vadd.s32 %v3309, 1
        %v3314 = vsel %vm3312, %v3313, %v3309
        %v3315 = vadd.s32 %v3310, %v3314
        %v3316 = vadd.s32 %v3315, 536870912
        %v3317 = vshrl.u32 %v3316, 30
        %v3318 = vshll.u32 %v3317, 30
        %v3319 = vsub.s32 %v3315, %v3318
        %vm3320 = vcmp.lt.s32.totalorder %v3319, 0
        %v3321 = vsub.s32 0, %v3319
        %v3322 = vsel %vm3320, %v3321, %v3319
        %v3323 = vclz %v3322
        %v3324 = vsub.s32 %v3323, 2
        %vm3325 = vcmp.gt.s32.totalorder 0, %v3324
        %v3326 = vsel %vm3325, 0, %v3324
        %v3327 = vsub.s32 32, %v3326
        %v3328 = vshll.u32 %v3319, %v3326
        %v3329 = vshrl.u32 %v3311, %v3327
        %v3330 = vor.u32 %v3328, %v3329
        %v3331 = vsub.s32 4294967266, %v3326
        %v3332 = vadd.s32 %v3331, 127
        %v3333 = vshll.u32 %v3332, 23
        %v3334 = vor.u32 4788187, %v3333
        %v3335 = vand.u32 2147483647, %v3334
        %v3337 = vcvt.s32.f32 %v3330
        %v3338 = vmul.f32 %v3337, %v3335
        %v3339 = vxor.u32 %v3338, 2147483648
        %v3340 = vsel %vm3257, %v3339, %v3338
        %v3341 = vsub.s32 4, %v3317
        %v3342 = vsel %vm3257, %v3341, %v3317
        %v3343 = vsel %vm3256, %v1795, %v3340
        %v3344 = vsel %vm3256, 0, %v3342
        %v3345 = vcosq.f32.pop %v3343
        %v3346 = vsinq.f32.pop %v3343
        %vm3347 = vweird.f32 %v1795
        %v3348 = vadd.s32 %v3344, 3
        %v3349 = vand.u32 %v3348, 3
        %vm3350 = vcmp.lt.s32.totalorder %v3349, 2
        %vm3351 = vcmp.eq.s32.totalorder %v3349, 0
        %v3352 = vxor.u32 %v3346, 2147483648
        %v3353 = vsel %vm3351, %v3345, %v3352
        %vm3354 = vcmp.eq.s32.totalorder %v3349, 2
        %v3355 = vxor.u32 %v3345, 2147483648
        %v3356 = vsel %vm3354, %v3355, %v3346
        %v3357 = vsel %vm3350, %v3353, %v3356
        %v3358 = vsel %vm3347, nan, %v3357
        %v3359 = vand.u32 2147483647, %v1797
        %vm3360 = vcmp.le.f32.partialorder %v3359, 0.7853982
        %vm3361 = vcmp.lt.s32.totalorder %v1797, 0
        %v3362 = vand.u32 %v1797, 2139095040
        %v3363 = vshrl.u32 %v3362, 23
        %v3364 = vsub.s32 %v3363, 127
        %v3365 = vand.u32 2147483647, %v1797
        %v3366 = vand.u32 %v3365, 8388607
        %v3367 = vor.u32 %v3366, 8388608
        %v3368 = vsub.s32 0, %v3367
        %v3369 = vadd.s32 %v3364, 1
        %vm3370 = vcmp.gt.s32.totalorder %v3369, 0
        %v3371 = vsel %vm3370, %v3369, 0
        %v3372 = vshrl.u32 %v3371, 5
        %v3373 = vand.u32 %v3371, 31
        %v3374 = vsub.s32 32, %v3373
        %v3375 = vshrl.u32 683565275, %v3374
        %v3376 = vshll.u32 683565275, %v3373
        %v3377 = vshrl.u32 2475754826, %v3374
        %v3378 = vor.u32 %v3376, %v3377
        %v3379 = vshll.u32 2475754826, %v3373
        %v3380 = vshrl.u32 2131351028, %v3374
        %v3381 = vor.u32 %v3379, %v3380
        %v3382 = vshll.u32 2131351028, %v3373
        %v3383 = vshrl.u32 2102212464, %v3374
        %v3384 = vor.u32 %v3382, %v3383
        %v3385 = vshll.u32 2102212464, %v3373
        %v3386 = vshrl.u32 920167782, %v3374
        %v3387 = vor.u32 %v3385, %v3386
        %v3388 = vshll.u32 920167782, %v3373
        %v3389 = vshrl.u32 1326507024, %v3374
        %v3390 = vor.u32 %v3388, %v3389
        %vm3391 = vcmp.lt.s32.totalorder %v3372, 1
        %vm3392 = vcmp.lt.s32.totalorder %v3372, 2
        %vm3393 = vcmp.lt.s32.totalorder %v3372, 3
        %vm3394 = vcmp.lt.s32.totalorder %v3372, 4
        %v3395 = vsel %vm3391, %v3375, %v3378
        %v3396 = vsel %vm3394, %v3384, 2102212464
        %v3397 = vsel %vm3393, %v3381, %v3396
        %v3398 = vsel %vm3392, %v3395, %v3397
        %v3399 = vsel %vm3391, %v3378, %v3381
        %v3400 = vsel %vm3394, %v3387, 920167782
        %v3401 = vsel %vm3393, %v3384, %v3400
        %v3402 = vsel %vm3392, %v3399, %v3401
        %v3403 = vsel %vm3391, %v3381, %v3384
        %v3404 = vsel %vm3394, %v3390, 1326507024
        %v3405 = vsel %vm3393, %v3387, %v3404
        %v3406 = vsel %vm3392, %v3403, %v3405
        %v3407 = vshll.u32 %v3367, 8
        %v3408 = vmul.u32.u64.compose %v3407, %v3406
        %v3409 = vextract.low.u32 %v3408
        %v3410 = vextract.high.u32 %v3408
        %v3411 = vmul.u32.u64.compose %v3407, %v3402
        %v3412 = vextract.low.u32 %v3411
        %v3413 = vextract.high.u32 %v3411
        %v3414 = vmul.u32 %v3407, %v3398
        %v3415 = vadd.s32 %v3410, %v3412
        %vm3416 = vc.u32 %v3410, %v3412
        %v3417 = vadd.s32 %v3413, 1
        %v3418 = vsel %vm3416, %v3417, %v3413
        %v3419 = vadd.s32 %v3414, %v3418
        %v3420 = vadd.s32 %v3419, 536870912
        %v3421 = vshrl.u32 %v3420, 30
        %v3422 = vshll.u32 %v3421, 30
        %v3423 = vsub.s32 %v3419, %v3422
        %vm3424 = vcmp.lt.s32.totalorder %v3423, 0
        %v3425 = vsub.s32 0, %v3423
        %v3426 = vsel %vm3424, %v3425, %v3423
        %v3427 = vclz %v3426
        %v3428 = vsub.s32 %v3427, 2
        %vm3429 = vcmp.gt.s32.totalorder 0, %v3428
        %v3430 = vsel %vm3429, 0, %v3428
        %v3431 = vsub.s32 32, %v3430
        %v3432 = vshll.u32 %v3423, %v3430
        %v3433 = vshrl.u32 %v3415, %v3431
        %v3434 = vor.u32 %v3432, %v3433
        %v3435 = vsub.s32 4294967266, %v3430
        %v3436 = vadd.s32 %v3435, 127
        %v3437 = vshll.u32 %v3436, 23
        %v3438 = vor.u32 4788187, %v3437
        %v3439 = vand.u32 2147483647, %v3438
        %v3441 = vcvt.s32.f32 %v3434
        %v3442 = vmul.f32 %v3441, %v3439
        %v3443 = vxor.u32 %v3442, 2147483648
        %v3444 = vsel %vm3361, %v3443, %v3442
        %v3445 = vsub.s32 4, %v3421
        %v3446 = vsel %vm3361, %v3445, %v3421
        %v3447 = vsel %vm3360, %v1797, %v3444
        %v3448 = vsel %vm3360, 0, %v3446
        %v3449 = vcosq.f32.pop %v3447
        %v3450 = vsinq.f32.pop %v3447
        %vm3451 = vweird.f32 %v1797
        %v3452 = vadd.s32 %v3448, 3
        %v3453 = vand.u32 %v3452, 3
        %vm3454 = vcmp.lt.s32.totalorder %v3453, 2
        %vm3455 = vcmp.eq.s32.totalorder %v3453, 0
        %v3456 = vxor.u32 %v3450, 2147483648
        %v3457 = vsel %vm3455, %v3449, %v3456
        %vm3458 = vcmp.eq.s32.totalorder %v3453, 2
        %v3459 = vxor.u32 %v3449, 2147483648
        %v3460 = vsel %vm3458, %v3459, %v3450
        %v3461 = vsel %vm3454, %v3457, %v3460
        %v3462 = vsel %vm3451, nan, %v3461
        %v3463 = vand.u32 2147483647, %v1728
        %vm3464 = vcmp.le.f32.partialorder %v3463, 0.7853982
        %vm3465 = vcmp.lt.s32.totalorder %v1728, 0
        %v3466 = vand.u32 %v1728, 2139095040
        %v3467 = vshrl.u32 %v3466, 23
        %v3468 = vsub.s32 %v3467, 127
        %v3469 = vand.u32 2147483647, %v1728
        %v3470 = vand.u32 %v3469, 8388607
        %v3471 = vor.u32 %v3470, 8388608
        %v3472 = vsub.s32 0, %v3471
        %v3473 = vadd.s32 %v3468, 1
        %vm3474 = vcmp.gt.s32.totalorder %v3473, 0
        %v3475 = vsel %vm3474, %v3473, 0
        %v3476 = vshrl.u32 %v3475, 5
        %v3477 = vand.u32 %v3475, 31
        %v3478 = vsub.s32 32, %v3477
        %v3479 = vshrl.u32 683565275, %v3478
        %v3480 = vshll.u32 683565275, %v3477
        %v3481 = vshrl.u32 2475754826, %v3478
        %v3482 = vor.u32 %v3480, %v3481
        %v3483 = vshll.u32 2475754826, %v3477
        %v3484 = vshrl.u32 2131351028, %v3478
        %v3485 = vor.u32 %v3483, %v3484
        %v3486 = vshll.u32 2131351028, %v3477
        %v3487 = vshrl.u32 2102212464, %v3478
        %v3488 = vor.u32 %v3486, %v3487
        %v3489 = vshll.u32 2102212464, %v3477
        %v3490 = vshrl.u32 920167782, %v3478
        %v3491 = vor.u32 %v3489, %v3490
        %v3492 = vshll.u32 920167782, %v3477
        %v3493 = vshrl.u32 1326507024, %v3478
        %v3494 = vor.u32 %v3492, %v3493
        %vm3495 = vcmp.lt.s32.totalorder %v3476, 1
        %vm3496 = vcmp.lt.s32.totalorder %v3476, 2
        %vm3497 = vcmp.lt.s32.totalorder %v3476, 3
        %vm3498 = vcmp.lt.s32.totalorder %v3476, 4
        %v3499 = vsel %vm3495, %v3479, %v3482
        %v3500 = vsel %vm3498, %v3488, 2102212464
        %v3501 = vsel %vm3497, %v3485, %v3500
        %v3502 = vsel %vm3496, %v3499, %v3501
        %v3503 = vsel %vm3495, %v3482, %v3485
        %v3504 = vsel %vm3498, %v3491, 920167782
        %v3505 = vsel %vm3497, %v3488, %v3504
        %v3506 = vsel %vm3496, %v3503, %v3505
        %v3507 = vsel %vm3495, %v3485, %v3488
        %v3508 = vsel %vm3498, %v3494, 1326507024
        %v3509 = vsel %vm3497, %v3491, %v3508
        %v3510 = vsel %vm3496, %v3507, %v3509
        %v3511 = vshll.u32 %v3471, 8
        %v3512 = vmul.u32.u64.compose %v3511, %v3510
        %v3513 = vextract.low.u32 %v3512
        %v3514 = vextract.high.u32 %v3512
        %v3515 = vmul.u32.u64.compose %v3511, %v3506
        %v3516 = vextract.low.u32 %v3515
        %v3517 = vextract.high.u32 %v3515
        %v3518 = vmul.u32 %v3511, %v3502
        %v3519 = vadd.s32 %v3514, %v3516
        %vm3520 = vc.u32 %v3514, %v3516
        %v3521 = vadd.s32 %v3517, 1
        %v3522 = vsel %vm3520, %v3521, %v3517
        %v3523 = vadd.s32 %v3518, %v3522
        %v3524 = vadd.s32 %v3523, 536870912
        %v3525 = vshrl.u32 %v3524, 30
        %v3526 = vshll.u32 %v3525, 30
        %v3527 = vsub.s32 %v3523, %v3526
        %vm3528 = vcmp.lt.s32.totalorder %v3527, 0
        %v3529 = vsub.s32 0, %v3527
        %v3530 = vsel %vm3528, %v3529, %v3527
        %v3531 = vclz %v3530
        %v3532 = vsub.s32 %v3531, 2
        %vm3533 = vcmp.gt.s32.totalorder 0, %v3532
        %v3534 = vsel %vm3533, 0, %v3532
        %v3535 = vsub.s32 32, %v3534
        %v3536 = vshll.u32 %v3527, %v3534
        %v3537 = vshrl.u32 %v3519, %v3535
        %v3538 = vor.u32 %v3536, %v3537
        %v3539 = vsub.s32 4294967266, %v3534
        %v3540 = vadd.s32 %v3539, 127
        %v3541 = vshll.u32 %v3540, 23
        %v3542 = vor.u32 4788187, %v3541
        %v3543 = vand.u32 2147483647, %v3542
        %v3545 = vcvt.s32.f32 %v3538
        %v3546 = vmul.f32 %v3545, %v3543
        %v3547 = vxor.u32 %v3546, 2147483648
        %v3548 = vsel %vm3465, %v3547, %v3546
        %v3549 = vsub.s32 4, %v3525
        %v3550 = vsel %vm3465, %v3549, %v3525
        %v3551 = vsel %vm3464, %v1728, %v3548
        %v3552 = vsel %vm3464, 0, %v3550
        %v3553 = vcosq.f32.pop %v3551
        %v3554 = vsinq.f32.pop %v3551
        %vm3555 = vweird.f32 %v1728
        %v3556 = vand.u32 %v3552, 3
        %vm3557 = vcmp.lt.s32.totalorder %v3556, 2
        %vm3558 = vcmp.eq.s32.totalorder %v3556, 0
        %v3559 = vxor.u32 %v3554, 2147483648
        %v3560 = vsel %vm3558, %v3553, %v3559
        %vm3561 = vcmp.eq.s32.totalorder %v3556, 2
        %v3562 = vxor.u32 %v3553, 2147483648
        %v3563 = vsel %vm3561, %v3562, %v3554
        %v3564 = vsel %vm3557, %v3560, %v3563
        %v3565 = vsel %vm3555, nan, %v3564
        %v3566 = vand.u32 2147483647, %v1730
        %vm3567 = vcmp.le.f32.partialorder %v3566, 0.7853982
        %vm3568 = vcmp.lt.s32.totalorder %v1730, 0
        %v3569 = vand.u32 %v1730, 2139095040
        %v3570 = vshrl.u32 %v3569, 23
        %v3571 = vsub.s32 %v3570, 127
        %v3572 = vand.u32 2147483647, %v1730
        %v3573 = vand.u32 %v3572, 8388607
        %v3574 = vor.u32 %v3573, 8388608
        %v3575 = vsub.s32 0, %v3574
        %v3576 = vadd.s32 %v3571, 1
        %vm3577 = vcmp.gt.s32.totalorder %v3576, 0
        %v3578 = vsel %vm3577, %v3576, 0
        %v3579 = vshrl.u32 %v3578, 5
        %v3580 = vand.u32 %v3578, 31
        %v3581 = vsub.s32 32, %v3580
        %v3582 = vshrl.u32 683565275, %v3581
        %v3583 = vshll.u32 683565275, %v3580
        %v3584 = vshrl.u32 2475754826, %v3581
        %v3585 = vor.u32 %v3583, %v3584
        %v3586 = vshll.u32 2475754826, %v3580
        %v3587 = vshrl.u32 2131351028, %v3581
        %v3588 = vor.u32 %v3586, %v3587
        %v3589 = vshll.u32 2131351028, %v3580
        %v3590 = vshrl.u32 2102212464, %v3581
        %v3591 = vor.u32 %v3589, %v3590
        %v3592 = vshll.u32 2102212464, %v3580
        %v3593 = vshrl.u32 920167782, %v3581
        %v3594 = vor.u32 %v3592, %v3593
        %v3595 = vshll.u32 920167782, %v3580
        %v3596 = vshrl.u32 1326507024, %v3581
        %v3597 = vor.u32 %v3595, %v3596
        %vm3598 = vcmp.lt.s32.totalorder %v3579, 1
        %vm3599 = vcmp.lt.s32.totalorder %v3579, 2
        %vm3600 = vcmp.lt.s32.totalorder %v3579, 3
        %vm3601 = vcmp.lt.s32.totalorder %v3579, 4
        %v3602 = vsel %vm3598, %v3582, %v3585
        %v3603 = vsel %vm3601, %v3591, 2102212464
        %v3604 = vsel %vm3600, %v3588, %v3603
        %v3605 = vsel %vm3599, %v3602, %v3604
        %v3606 = vsel %vm3598, %v3585, %v3588
        %v3607 = vsel %vm3601, %v3594, 920167782
        %v3608 = vsel %vm3600, %v3591, %v3607
        %v3609 = vsel %vm3599, %v3606, %v3608
        %v3610 = vsel %vm3598, %v3588, %v3591
        %v3611 = vsel %vm3601, %v3597, 1326507024
        %v3612 = vsel %vm3600, %v3594, %v3611
        %v3613 = vsel %vm3599, %v3610, %v3612
        %v3614 = vshll.u32 %v3574, 8
        %v3615 = vmul.u32.u64.compose %v3614, %v3613
        %v3616 = vextract.low.u32 %v3615
        %v3617 = vextract.high.u32 %v3615
        %v3618 = vmul.u32.u64.compose %v3614, %v3609
        %v3619 = vextract.low.u32 %v3618
        %v3620 = vextract.high.u32 %v3618
        %v3621 = vmul.u32 %v3614, %v3605
        %v3622 = vadd.s32 %v3617, %v3619
        %vm3623 = vc.u32 %v3617, %v3619
        %v3624 = vadd.s32 %v3620, 1
        %v3625 = vsel %vm3623, %v3624, %v3620
        %v3626 = vadd.s32 %v3621, %v3625
        %v3627 = vadd.s32 %v3626, 536870912
        %v3628 = vshrl.u32 %v3627, 30
        %v3629 = vshll.u32 %v3628, 30
        %v3630 = vsub.s32 %v3626, %v3629
        %vm3631 = vcmp.lt.s32.totalorder %v3630, 0
        %v3632 = vsub.s32 0, %v3630
        %v3633 = vsel %vm3631, %v3632, %v3630
        %v3634 = vclz %v3633
        %v3635 = vsub.s32 %v3634, 2
        %vm3636 = vcmp.gt.s32.totalorder 0, %v3635
        %v3637 = vsel %vm3636, 0, %v3635
        %v3638 = vsub.s32 32, %v3637
        %v3639 = vshll.u32 %v3630, %v3637
        %v3640 = vshrl.u32 %v3622, %v3638
        %v3641 = vor.u32 %v3639, %v3640
        %v3642 = vsub.s32 4294967266, %v3637
        %v3643 = vadd.s32 %v3642, 127
        %v3644 = vshll.u32 %v3643, 23
        %v3645 = vor.u32 4788187, %v3644
        %v3646 = vand.u32 2147483647, %v3645
        %v3648 = vcvt.s32.f32 %v3641
        %v3649 = vmul.f32 %v3648, %v3646
        %v3650 = vxor.u32 %v3649, 2147483648
        %v3651 = vsel %vm3568, %v3650, %v3649
        %v3652 = vsub.s32 4, %v3628
        %v3653 = vsel %vm3568, %v3652, %v3628
        %v3654 = vsel %vm3567, %v1730, %v3651
        %v3655 = vsel %vm3567, 0, %v3653
        %v3656 = vcosq.f32.pop %v3654
        %v3657 = vsinq.f32.pop %v3654
        %vm3658 = vweird.f32 %v1730
        %v3659 = vand.u32 %v3655, 3
        %vm3660 = vcmp.lt.s32.totalorder %v3659, 2
        %vm3661 = vcmp.eq.s32.totalorder %v3659, 0
        %v3662 = vxor.u32 %v3657, 2147483648
        %v3663 = vsel %vm3661, %v3656, %v3662
        %vm3664 = vcmp.eq.s32.totalorder %v3659, 2
        %v3665 = vxor.u32 %v3656, 2147483648
        %v3666 = vsel %vm3664, %v3665, %v3657
        %v3667 = vsel %vm3660, %v3663, %v3666
        %v3668 = vsel %vm3658, nan, %v3667
        %v3669 = vand.u32 2147483647, %v1781
        %vm3670 = vcmp.le.f32.partialorder %v3669, 0.7853982
        %vm3671 = vcmp.lt.s32.totalorder %v1781, 0
        %v3672 = vand.u32 %v1781, 2139095040
        %v3673 = vshrl.u32 %v3672, 23
        %v3674 = vsub.s32 %v3673, 127
        %v3675 = vand.u32 2147483647, %v1781
        %v3676 = vand.u32 %v3675, 8388607
        %v3677 = vor.u32 %v3676, 8388608
        %v3678 = vsub.s32 0, %v3677
        %v3679 = vadd.s32 %v3674, 1
        %vm3680 = vcmp.gt.s32.totalorder %v3679, 0
        %v3681 = vsel %vm3680, %v3679, 0
        %v3682 = vshrl.u32 %v3681, 5
        %v3683 = vand.u32 %v3681, 31
        %v3684 = vsub.s32 32, %v3683
        %v3685 = vshrl.u32 683565275, %v3684
        %v3686 = vshll.u32 683565275, %v3683
        %v3687 = vshrl.u32 2475754826, %v3684
        %v3688 = vor.u32 %v3686, %v3687
        %v3689 = vshll.u32 2475754826, %v3683
        %v3690 = vshrl.u32 2131351028, %v3684
        %v3691 = vor.u32 %v3689, %v3690
        %v3692 = vshll.u32 2131351028, %v3683
        %v3693 = vshrl.u32 2102212464, %v3684
        %v3694 = vor.u32 %v3692, %v3693
        %v3695 = vshll.u32 2102212464, %v3683
        %v3696 = vshrl.u32 920167782, %v3684
        %v3697 = vor.u32 %v3695, %v3696
        %v3698 = vshll.u32 920167782, %v3683
        %v3699 = vshrl.u32 1326507024, %v3684
        %v3700 = vor.u32 %v3698, %v3699
        %vm3701 = vcmp.lt.s32.totalorder %v3682, 1
        %vm3702 = vcmp.lt.s32.totalorder %v3682, 2
        %vm3703 = vcmp.lt.s32.totalorder %v3682, 3
        %vm3704 = vcmp.lt.s32.totalorder %v3682, 4
        %v3705 = vsel %vm3701, %v3685, %v3688
        %v3706 = vsel %vm3704, %v3694, 2102212464
        %v3707 = vsel %vm3703, %v3691, %v3706
        %v3708 = vsel %vm3702, %v3705, %v3707
        %v3709 = vsel %vm3701, %v3688, %v3691
        %v3710 = vsel %vm3704, %v3697, 920167782
        %v3711 = vsel %vm3703, %v3694, %v3710
        %v3712 = vsel %vm3702, %v3709, %v3711
        %v3713 = vsel %vm3701, %v3691, %v3694
        %v3714 = vsel %vm3704, %v3700, 1326507024
        %v3715 = vsel %vm3703, %v3697, %v3714
        %v3716 = vsel %vm3702, %v3713, %v3715
        %v3717 = vshll.u32 %v3677, 8
        %v3718 = vmul.u32.u64.compose %v3717, %v3716
        %v3719 = vextract.low.u32 %v3718
        %v3720 = vextract.high.u32 %v3718
        %v3721 = vmul.u32.u64.compose %v3717, %v3712
        %v3722 = vextract.low.u32 %v3721
        %v3723 = vextract.high.u32 %v3721
        %v3724 = vmul.u32 %v3717, %v3708
        %v3725 = vadd.s32 %v3720, %v3722
        %vm3726 = vc.u32 %v3720, %v3722
        %v3727 = vadd.s32 %v3723, 1
        %v3728 = vsel %vm3726, %v3727, %v3723
        %v3729 = vadd.s32 %v3724, %v3728
        %v3730 = vadd.s32 %v3729, 536870912
        %v3731 = vshrl.u32 %v3730, 30
        %v3732 = vshll.u32 %v3731, 30
        %v3733 = vsub.s32 %v3729, %v3732
        %vm3734 = vcmp.lt.s32.totalorder %v3733, 0
        %v3735 = vsub.s32 0, %v3733
        %v3736 = vsel %vm3734, %v3735, %v3733
        %v3737 = vclz %v3736
        %v3738 = vsub.s32 %v3737, 2
        %vm3739 = vcmp.gt.s32.totalorder 0, %v3738
        %v3740 = vsel %vm3739, 0, %v3738
        %v3741 = vsub.s32 32, %v3740
        %v3742 = vshll.u32 %v3733, %v3740
        %v3743 = vshrl.u32 %v3725, %v3741
        %v3744 = vor.u32 %v3742, %v3743
        %v3745 = vsub.s32 4294967266, %v3740
        %v3746 = vadd.s32 %v3745, 127
        %v3747 = vshll.u32 %v3746, 23
        %v3748 = vor.u32 4788187, %v3747
        %v3749 = vand.u32 2147483647, %v3748
        %v3751 = vcvt.s32.f32 %v3744
        %v3752 = vmul.f32 %v3751, %v3749
        %v3753 = vxor.u32 %v3752, 2147483648
        %v3754 = vsel %vm3671, %v3753, %v3752
        %v3755 = vsub.s32 4, %v3731
        %v3756 = vsel %vm3671, %v3755, %v3731
        %v3757 = vsel %vm3670, %v1781, %v3754
        %v3758 = vsel %vm3670, 0, %v3756
        %v3759 = vcosq.f32.pop %v3757
        %v3760 = vsinq.f32.pop %v3757
        %vm3761 = vweird.f32 %v1781
        %v3762 = vand.u32 %v3758, 3
        %vm3763 = vcmp.lt.s32.totalorder %v3762, 2
        %vm3764 = vcmp.eq.s32.totalorder %v3762, 0
        %v3765 = vxor.u32 %v3760, 2147483648
        %v3766 = vsel %vm3764, %v3759, %v3765
        %vm3767 = vcmp.eq.s32.totalorder %v3762, 2
        %v3768 = vxor.u32 %v3759, 2147483648
        %v3769 = vsel %vm3767, %v3768, %v3760
        %v3770 = vsel %vm3763, %v3766, %v3769
        %v3771 = vsel %vm3761, nan, %v3770
        %v3772 = vand.u32 2147483647, %v1783
        %vm3773 = vcmp.le.f32.partialorder %v3772, 0.7853982
        %vm3774 = vcmp.lt.s32.totalorder %v1783, 0
        %v3775 = vand.u32 %v1783, 2139095040
        %v3776 = vshrl.u32 %v3775, 23
        %v3777 = vsub.s32 %v3776, 127
        %v3778 = vand.u32 2147483647, %v1783
        %v3779 = vand.u32 %v3778, 8388607
        %v3780 = vor.u32 %v3779, 8388608
        %v3781 = vsub.s32 0, %v3780
        %v3782 = vadd.s32 %v3777, 1
        %vm3783 = vcmp.gt.s32.totalorder %v3782, 0
        %v3784 = vsel %vm3783, %v3782, 0
        %v3785 = vshrl.u32 %v3784, 5
        %v3786 = vand.u32 %v3784, 31
        %v3787 = vsub.s32 32, %v3786
        %v3788 = vshrl.u32 683565275, %v3787
        %v3789 = vshll.u32 683565275, %v3786
        %v3790 = vshrl.u32 2475754826, %v3787
        %v3791 = vor.u32 %v3789, %v3790
        %v3792 = vshll.u32 2475754826, %v3786
        %v3793 = vshrl.u32 2131351028, %v3787
        %v3794 = vor.u32 %v3792, %v3793
        %v3795 = vshll.u32 2131351028, %v3786
        %v3796 = vshrl.u32 2102212464, %v3787
        %v3797 = vor.u32 %v3795, %v3796
        %v3798 = vshll.u32 2102212464, %v3786
        %v3799 = vshrl.u32 920167782, %v3787
        %v3800 = vor.u32 %v3798, %v3799
        %v3801 = vshll.u32 920167782, %v3786
        %v3802 = vshrl.u32 1326507024, %v3787
        %v3803 = vor.u32 %v3801, %v3802
        %vm3804 = vcmp.lt.s32.totalorder %v3785, 1
        %vm3805 = vcmp.lt.s32.totalorder %v3785, 2
        %vm3806 = vcmp.lt.s32.totalorder %v3785, 3
        %vm3807 = vcmp.lt.s32.totalorder %v3785, 4
        %v3808 = vsel %vm3804, %v3788, %v3791
        %v3809 = vsel %vm3807, %v3797, 2102212464
        %v3810 = vsel %vm3806, %v3794, %v3809
        %v3811 = vsel %vm3805, %v3808, %v3810
        %v3812 = vsel %vm3804, %v3791, %v3794
        %v3813 = vsel %vm3807, %v3800, 920167782
        %v3814 = vsel %vm3806, %v3797, %v3813
        %v3815 = vsel %vm3805, %v3812, %v3814
        %v3816 = vsel %vm3804, %v3794, %v3797
        %v3817 = vsel %vm3807, %v3803, 1326507024
        %v3818 = vsel %vm3806, %v3800, %v3817
        %v3819 = vsel %vm3805, %v3816, %v3818
        %v3820 = vshll.u32 %v3780, 8
        %v3821 = vmul.u32.u64.compose %v3820, %v3819
        %v3822 = vextract.low.u32 %v3821
        %v3823 = vextract.high.u32 %v3821
        %v3824 = vmul.u32.u64.compose %v3820, %v3815
        %v3825 = vextract.low.u32 %v3824
        %v3826 = vextract.high.u32 %v3824
        %v3827 = vmul.u32 %v3820, %v3811
        %v3828 = vadd.s32 %v3823, %v3825
        %vm3829 = vc.u32 %v3823, %v3825
        %v3830 = vadd.s32 %v3826, 1
        %v3831 = vsel %vm3829, %v3830, %v3826
        %v3832 = vadd.s32 %v3827, %v3831
        %v3833 = vadd.s32 %v3832, 536870912
        %v3834 = vshrl.u32 %v3833, 30
        %v3835 = vshll.u32 %v3834, 30
        %v3836 = vsub.s32 %v3832, %v3835
        %vm3837 = vcmp.lt.s32.totalorder %v3836, 0
        %v3838 = vsub.s32 0, %v3836
        %v3839 = vsel %vm3837, %v3838, %v3836
        %v3840 = vclz %v3839
        %v3841 = vsub.s32 %v3840, 2
        %vm3842 = vcmp.gt.s32.totalorder 0, %v3841
        %v3843 = vsel %vm3842, 0, %v3841
        %v3844 = vsub.s32 32, %v3843
        %v3845 = vshll.u32 %v3836, %v3843
        %v3846 = vshrl.u32 %v3828, %v3844
        %v3847 = vor.u32 %v3845, %v3846
        %v3848 = vsub.s32 4294967266, %v3843
        %v3849 = vadd.s32 %v3848, 127
        %v3850 = vshll.u32 %v3849, 23
        %v3851 = vor.u32 4788187, %v3850
        %v3852 = vand.u32 2147483647, %v3851
        %v3854 = vcvt.s32.f32 %v3847
        %v3855 = vmul.f32 %v3854, %v3852
        %v3856 = vxor.u32 %v3855, 2147483648
        %v3857 = vsel %vm3774, %v3856, %v3855
        %v3858 = vsub.s32 4, %v3834
        %v3859 = vsel %vm3774, %v3858, %v3834
        %v3860 = vsel %vm3773, %v1783, %v3857
        %v3861 = vsel %vm3773, 0, %v3859
        %v3862 = vcosq.f32.pop %v3860
        %v3863 = vsinq.f32.pop %v3860
        %vm3864 = vweird.f32 %v1783
        %v3865 = vand.u32 %v3861, 3
        %vm3866 = vcmp.lt.s32.totalorder %v3865, 2
        %vm3867 = vcmp.eq.s32.totalorder %v3865, 0
        %v3868 = vxor.u32 %v3863, 2147483648
        %v3869 = vsel %vm3867, %v3862, %v3868
        %vm3870 = vcmp.eq.s32.totalorder %v3865, 2
        %v3871 = vxor.u32 %v3862, 2147483648
        %v3872 = vsel %vm3870, %v3871, %v3863
        %v3873 = vsel %vm3866, %v3869, %v3872
        %v3874 = vsel %vm3864, nan, %v3873
        %v3875 = vand.u32 2147483647, %v1732
        %vm3876 = vcmp.le.f32.partialorder %v3875, 0.7853982
        %vm3877 = vcmp.lt.s32.totalorder %v1732, 0
        %v3878 = vand.u32 %v1732, 2139095040
        %v3879 = vshrl.u32 %v3878, 23
        %v3880 = vsub.s32 %v3879, 127
        %v3881 = vand.u32 2147483647, %v1732
        %v3882 = vand.u32 %v3881, 8388607
        %v3883 = vor.u32 %v3882, 8388608
        %v3884 = vsub.s32 0, %v3883
        %v3885 = vadd.s32 %v3880, 1
        %vm3886 = vcmp.gt.s32.totalorder %v3885, 0
        %v3887 = vsel %vm3886, %v3885, 0
        %v3888 = vshrl.u32 %v3887, 5
        %v3889 = vand.u32 %v3887, 31
        %v3890 = vsub.s32 32, %v3889
        %v3891 = vshrl.u32 683565275, %v3890
        %v3892 = vshll.u32 683565275, %v3889
        %v3893 = vshrl.u32 2475754826, %v3890
        %v3894 = vor.u32 %v3892, %v3893
        %v3895 = vshll.u32 2475754826, %v3889
        %v3896 = vshrl.u32 2131351028, %v3890
        %v3897 = vor.u32 %v3895, %v3896
        %v3898 = vshll.u32 2131351028, %v3889
        %v3899 = vshrl.u32 2102212464, %v3890
        %v3900 = vor.u32 %v3898, %v3899
        %v3901 = vshll.u32 2102212464, %v3889
        %v3902 = vshrl.u32 920167782, %v3890
        %v3903 = vor.u32 %v3901, %v3902
        %v3904 = vshll.u32 920167782, %v3889
        %v3905 = vshrl.u32 1326507024, %v3890
        %v3906 = vor.u32 %v3904, %v3905
        %vm3907 = vcmp.lt.s32.totalorder %v3888, 1
        %vm3908 = vcmp.lt.s32.totalorder %v3888, 2
        %vm3909 = vcmp.lt.s32.totalorder %v3888, 3
        %vm3910 = vcmp.lt.s32.totalorder %v3888, 4
        %v3911 = vsel %vm3907, %v3891, %v3894
        %v3912 = vsel %vm3910, %v3900, 2102212464
        %v3913 = vsel %vm3909, %v3897, %v3912
        %v3914 = vsel %vm3908, %v3911, %v3913
        %v3915 = vsel %vm3907, %v3894, %v3897
        %v3916 = vsel %vm3910, %v3903, 920167782
        %v3917 = vsel %vm3909, %v3900, %v3916
        %v3918 = vsel %vm3908, %v3915, %v3917
        %v3919 = vsel %vm3907, %v3897, %v3900
        %v3920 = vsel %vm3910, %v3906, 1326507024
        %v3921 = vsel %vm3909, %v3903, %v3920
        %v3922 = vsel %vm3908, %v3919, %v3921
        %v3923 = vshll.u32 %v3883, 8
        %v3924 = vmul.u32.u64.compose %v3923, %v3922
        %v3925 = vextract.low.u32 %v3924
        %v3926 = vextract.high.u32 %v3924
        %v3927 = vmul.u32.u64.compose %v3923, %v3918
        %v3928 = vextract.low.u32 %v3927
        %v3929 = vextract.high.u32 %v3927
        %v3930 = vmul.u32 %v3923, %v3914
        %v3931 = vadd.s32 %v3926, %v3928
        %vm3932 = vc.u32 %v3926, %v3928
        %v3933 = vadd.s32 %v3929, 1
        %v3934 = vsel %vm3932, %v3933, %v3929
        %v3935 = vadd.s32 %v3930, %v3934
        %v3936 = vadd.s32 %v3935, 536870912
        %v3937 = vshrl.u32 %v3936, 30
        %v3938 = vshll.u32 %v3937, 30
        %v3939 = vsub.s32 %v3935, %v3938
        %vm3940 = vcmp.lt.s32.totalorder %v3939, 0
        %v3941 = vsub.s32 0, %v3939
        %v3942 = vsel %vm3940, %v3941, %v3939
        %v3943 = vclz %v3942
        %v3944 = vsub.s32 %v3943, 2
        %vm3945 = vcmp.gt.s32.totalorder 0, %v3944
        %v3946 = vsel %vm3945, 0, %v3944
        %v3947 = vsub.s32 32, %v3946
        %v3948 = vshll.u32 %v3939, %v3946
        %v3949 = vshrl.u32 %v3931, %v3947
        %v3950 = vor.u32 %v3948, %v3949
        %v3951 = vsub.s32 4294967266, %v3946
        %v3952 = vadd.s32 %v3951, 127
        %v3953 = vshll.u32 %v3952, 23
        %v3954 = vor.u32 4788187, %v3953
        %v3955 = vand.u32 2147483647, %v3954
        %v3957 = vcvt.s32.f32 %v3950
        %v3958 = vmul.f32 %v3957, %v3955
        %v3959 = vxor.u32 %v3958, 2147483648
        %v3960 = vsel %vm3877, %v3959, %v3958
        %v3961 = vsub.s32 4, %v3937
        %v3962 = vsel %vm3877, %v3961, %v3937
        %v3963 = vsel %vm3876, %v1732, %v3960
        %v3964 = vsel %vm3876, 0, %v3962
        %v3965 = vcosq.f32.pop %v3963
        %v3966 = vsinq.f32.pop %v3963
        %vm3967 = vweird.f32 %v1732
        %v3968 = vand.u32 %v3964, 3
        %vm3969 = vcmp.lt.s32.totalorder %v3968, 2
        %vm3970 = vcmp.eq.s32.totalorder %v3968, 0
        %v3971 = vxor.u32 %v3966, 2147483648
        %v3972 = vsel %vm3970, %v3965, %v3971
        %vm3973 = vcmp.eq.s32.totalorder %v3968, 2
        %v3974 = vxor.u32 %v3965, 2147483648
        %v3975 = vsel %vm3973, %v3974, %v3966
        %v3976 = vsel %vm3969, %v3972, %v3975
        %v3977 = vsel %vm3967, nan, %v3976
        %v3978 = vand.u32 2147483647, %v1734
        %vm3979 = vcmp.le.f32.partialorder %v3978, 0.7853982
        %vm3980 = vcmp.lt.s32.totalorder %v1734, 0
        %v3981 = vand.u32 %v1734, 2139095040
        %v3982 = vshrl.u32 %v3981, 23
        %v3983 = vsub.s32 %v3982, 127
        %v3984 = vand.u32 2147483647, %v1734
        %v3985 = vand.u32 %v3984, 8388607
        %v3986 = vor.u32 %v3985, 8388608
        %v3987 = vsub.s32 0, %v3986
        %v3988 = vadd.s32 %v3983, 1
        %vm3989 = vcmp.gt.s32.totalorder %v3988, 0
        %v3990 = vsel %vm3989, %v3988, 0
        %v3991 = vshrl.u32 %v3990, 5
        %v3992 = vand.u32 %v3990, 31
        %v3993 = vsub.s32 32, %v3992
        %v3994 = vshrl.u32 683565275, %v3993
        %v3995 = vshll.u32 683565275, %v3992
        %v3996 = vshrl.u32 2475754826, %v3993
        %v3997 = vor.u32 %v3995, %v3996
        %v3998 = vshll.u32 2475754826, %v3992
        %v3999 = vshrl.u32 2131351028, %v3993
        %v4000 = vor.u32 %v3998, %v3999
        %v4001 = vshll.u32 2131351028, %v3992
        %v4002 = vshrl.u32 2102212464, %v3993
        %v4003 = vor.u32 %v4001, %v4002
        %v4004 = vshll.u32 2102212464, %v3992
        %v4005 = vshrl.u32 920167782, %v3993
        %v4006 = vor.u32 %v4004, %v4005
        %v4007 = vshll.u32 920167782, %v3992
        %v4008 = vshrl.u32 1326507024, %v3993
        %v4009 = vor.u32 %v4007, %v4008
        %vm4010 = vcmp.lt.s32.totalorder %v3991, 1
        %vm4011 = vcmp.lt.s32.totalorder %v3991, 2
        %vm4012 = vcmp.lt.s32.totalorder %v3991, 3
        %vm4013 = vcmp.lt.s32.totalorder %v3991, 4
        %v4014 = vsel %vm4010, %v3994, %v3997
        %v4015 = vsel %vm4013, %v4003, 2102212464
        %v4016 = vsel %vm4012, %v4000, %v4015
        %v4017 = vsel %vm4011, %v4014, %v4016
        %v4018 = vsel %vm4010, %v3997, %v4000
        %v4019 = vsel %vm4013, %v4006, 920167782
        %v4020 = vsel %vm4012, %v4003, %v4019
        %v4021 = vsel %vm4011, %v4018, %v4020
        %v4022 = vsel %vm4010, %v4000, %v4003
        %v4023 = vsel %vm4013, %v4009, 1326507024
        %v4024 = vsel %vm4012, %v4006, %v4023
        %v4025 = vsel %vm4011, %v4022, %v4024
        %v4026 = vshll.u32 %v3986, 8
        %v4027 = vmul.u32.u64.compose %v4026, %v4025
        %v4028 = vextract.low.u32 %v4027
        %v4029 = vextract.high.u32 %v4027
        %v4030 = vmul.u32.u64.compose %v4026, %v4021
        %v4031 = vextract.low.u32 %v4030
        %v4032 = vextract.high.u32 %v4030
        %v4033 = vmul.u32 %v4026, %v4017
        %v4034 = vadd.s32 %v4029, %v4031
        %vm4035 = vc.u32 %v4029, %v4031
        %v4036 = vadd.s32 %v4032, 1
        %v4037 = vsel %vm4035, %v4036, %v4032
        %v4038 = vadd.s32 %v4033, %v4037
        %v4039 = vadd.s32 %v4038, 536870912
        %v4040 = vshrl.u32 %v4039, 30
        %v4041 = vshll.u32 %v4040, 30
        %v4042 = vsub.s32 %v4038, %v4041
        %vm4043 = vcmp.lt.s32.totalorder %v4042, 0
        %v4044 = vsub.s32 0, %v4042
        %v4045 = vsel %vm4043, %v4044, %v4042
        %v4046 = vclz %v4045
        %v4047 = vsub.s32 %v4046, 2
        %vm4048 = vcmp.gt.s32.totalorder 0, %v4047
        %v4049 = vsel %vm4048, 0, %v4047
        %v4050 = vsub.s32 32, %v4049
        %v4051 = vshll.u32 %v4042, %v4049
        %v4052 = vshrl.u32 %v4034, %v4050
        %v4053 = vor.u32 %v4051, %v4052
        %v4054 = vsub.s32 4294967266, %v4049
        %v4055 = vadd.s32 %v4054, 127
        %v4056 = vshll.u32 %v4055, 23
        %v4057 = vor.u32 4788187, %v4056
        %v4058 = vand.u32 2147483647, %v4057
        %v4060 = vcvt.s32.f32 %v4053
        %v4061 = vmul.f32 %v4060, %v4058
        %v4062 = vxor.u32 %v4061, 2147483648
        %v4063 = vsel %vm3980, %v4062, %v4061
        %v4064 = vsub.s32 4, %v4040
        %v4065 = vsel %vm3980, %v4064, %v4040
        %v4066 = vsel %vm3979, %v1734, %v4063
        %v4067 = vsel %vm3979, 0, %v4065
        %v4068 = vcosq.f32.pop %v4066
        %v4069 = vsinq.f32.pop %v4066
        %vm4070 = vweird.f32 %v1734
        %v4071 = vand.u32 %v4067, 3
        %vm4072 = vcmp.lt.s32.totalorder %v4071, 2
        %vm4073 = vcmp.eq.s32.totalorder %v4071, 0
        %v4074 = vxor.u32 %v4069, 2147483648
        %v4075 = vsel %vm4073, %v4068, %v4074
        %vm4076 = vcmp.eq.s32.totalorder %v4071, 2
        %v4077 = vxor.u32 %v4068, 2147483648
        %v4078 = vsel %vm4076, %v4077, %v4069
        %v4079 = vsel %vm4072, %v4075, %v4078
        %v4080 = vsel %vm4070, nan, %v4079
        %v4081 = vand.u32 2147483647, %v1785
        %vm4082 = vcmp.le.f32.partialorder %v4081, 0.7853982
        %vm4083 = vcmp.lt.s32.totalorder %v1785, 0
        %v4084 = vand.u32 %v1785, 2139095040
        %v4085 = vshrl.u32 %v4084, 23
        %v4086 = vsub.s32 %v4085, 127
        %v4087 = vand.u32 2147483647, %v1785
        %v4088 = vand.u32 %v4087, 8388607
        %v4089 = vor.u32 %v4088, 8388608
        %v4090 = vsub.s32 0, %v4089
        %v4091 = vadd.s32 %v4086, 1
        %vm4092 = vcmp.gt.s32.totalorder %v4091, 0
        %v4093 = vsel %vm4092, %v4091, 0
        %v4094 = vshrl.u32 %v4093, 5
        %v4095 = vand.u32 %v4093, 31
        %v4096 = vsub.s32 32, %v4095
        %v4097 = vshrl.u32 683565275, %v4096
        %v4098 = vshll.u32 683565275, %v4095
        %v4099 = vshrl.u32 2475754826, %v4096
        %v4100 = vor.u32 %v4098, %v4099
        %v4101 = vshll.u32 2475754826, %v4095
        %v4102 = vshrl.u32 2131351028, %v4096
        %v4103 = vor.u32 %v4101, %v4102
        %v4104 = vshll.u32 2131351028, %v4095
        %v4105 = vshrl.u32 2102212464, %v4096
        %v4106 = vor.u32 %v4104, %v4105
        %v4107 = vshll.u32 2102212464, %v4095
        %v4108 = vshrl.u32 920167782, %v4096
        %v4109 = vor.u32 %v4107, %v4108
        %v4110 = vshll.u32 920167782, %v4095
        %v4111 = vshrl.u32 1326507024, %v4096
        %v4112 = vor.u32 %v4110, %v4111
        %vm4113 = vcmp.lt.s32.totalorder %v4094, 1
        %vm4114 = vcmp.lt.s32.totalorder %v4094, 2
        %vm4115 = vcmp.lt.s32.totalorder %v4094, 3
        %vm4116 = vcmp.lt.s32.totalorder %v4094, 4
        %v4117 = vsel %vm4113, %v4097, %v4100
        %v4118 = vsel %vm4116, %v4106, 2102212464
        %v4119 = vsel %vm4115, %v4103, %v4118
        %v4120 = vsel %vm4114, %v4117, %v4119
        %v4121 = vsel %vm4113, %v4100, %v4103
        %v4122 = vsel %vm4116, %v4109, 920167782
        %v4123 = vsel %vm4115, %v4106, %v4122
        %v4124 = vsel %vm4114, %v4121, %v4123
        %v4125 = vsel %vm4113, %v4103, %v4106
        %v4126 = vsel %vm4116, %v4112, 1326507024
        %v4127 = vsel %vm4115, %v4109, %v4126
        %v4128 = vsel %vm4114, %v4125, %v4127
        %v4129 = vshll.u32 %v4089, 8
        %v4130 = vmul.u32.u64.compose %v4129, %v4128
        %v4131 = vextract.low.u32 %v4130
        %v4132 = vextract.high.u32 %v4130
        %v4133 = vmul.u32.u64.compose %v4129, %v4124
        %v4134 = vextract.low.u32 %v4133
        %v4135 = vextract.high.u32 %v4133
        %v4136 = vmul.u32 %v4129, %v4120
        %v4137 = vadd.s32 %v4132, %v4134
        %vm4138 = vc.u32 %v4132, %v4134
        %v4139 = vadd.s32 %v4135, 1
        %v4140 = vsel %vm4138, %v4139, %v4135
        %v4141 = vadd.s32 %v4136, %v4140
        %v4142 = vadd.s32 %v4141, 536870912
        %v4143 = vshrl.u32 %v4142, 30
        %v4144 = vshll.u32 %v4143, 30
        %v4145 = vsub.s32 %v4141, %v4144
        %vm4146 = vcmp.lt.s32.totalorder %v4145, 0
        %v4147 = vsub.s32 0, %v4145
        %v4148 = vsel %vm4146, %v4147, %v4145
        %v4149 = vclz %v4148
        %v4150 = vsub.s32 %v4149, 2
        %vm4151 = vcmp.gt.s32.totalorder 0, %v4150
        %v4152 = vsel %vm4151, 0, %v4150
        %v4153 = vsub.s32 32, %v4152
        %v4154 = vshll.u32 %v4145, %v4152
        %v4155 = vshrl.u32 %v4137, %v4153
        %v4156 = vor.u32 %v4154, %v4155
        %v4157 = vsub.s32 4294967266, %v4152
        %v4158 = vadd.s32 %v4157, 127
        %v4159 = vshll.u32 %v4158, 23
        %v4160 = vor.u32 4788187, %v4159
        %v4161 = vand.u32 2147483647, %v4160
        %v4163 = vcvt.s32.f32 %v4156
        %v4164 = vmul.f32 %v4163, %v4161
        %v4165 = vxor.u32 %v4164, 2147483648
        %v4166 = vsel %vm4083, %v4165, %v4164
        %v4167 = vsub.s32 4, %v4143
        %v4168 = vsel %vm4083, %v4167, %v4143
        %v4169 = vsel %vm4082, %v1785, %v4166
        %v4170 = vsel %vm4082, 0, %v4168
        %v4171 = vcosq.f32.pop %v4169
        %v4172 = vsinq.f32.pop %v4169
        %vm4173 = vweird.f32 %v1785
        %v4174 = vand.u32 %v4170, 3
        %vm4175 = vcmp.lt.s32.totalorder %v4174, 2
        %vm4176 = vcmp.eq.s32.totalorder %v4174, 0
        %v4177 = vxor.u32 %v4172, 2147483648
        %v4178 = vsel %vm4176, %v4171, %v4177
        %vm4179 = vcmp.eq.s32.totalorder %v4174, 2
        %v4180 = vxor.u32 %v4171, 2147483648
        %v4181 = vsel %vm4179, %v4180, %v4172
        %v4182 = vsel %vm4175, %v4178, %v4181
        %v4183 = vsel %vm4173, nan, %v4182
        %v4184 = vand.u32 2147483647, %v1787
        %vm4185 = vcmp.le.f32.partialorder %v4184, 0.7853982
        %vm4186 = vcmp.lt.s32.totalorder %v1787, 0
        %v4187 = vand.u32 %v1787, 2139095040
        %v4188 = vshrl.u32 %v4187, 23
        %v4189 = vsub.s32 %v4188, 127
        %v4190 = vand.u32 2147483647, %v1787
        %v4191 = vand.u32 %v4190, 8388607
        %v4192 = vor.u32 %v4191, 8388608
        %v4193 = vsub.s32 0, %v4192
        %v4194 = vadd.s32 %v4189, 1
        %vm4195 = vcmp.gt.s32.totalorder %v4194, 0
        %v4196 = vsel %vm4195, %v4194, 0
        %v4197 = vshrl.u32 %v4196, 5
        %v4198 = vand.u32 %v4196, 31
        %v4199 = vsub.s32 32, %v4198
        %v4200 = vshrl.u32 683565275, %v4199
        %v4201 = vshll.u32 683565275, %v4198
        %v4202 = vshrl.u32 2475754826, %v4199
        %v4203 = vor.u32 %v4201, %v4202
        %v4204 = vshll.u32 2475754826, %v4198
        %v4205 = vshrl.u32 2131351028, %v4199
        %v4206 = vor.u32 %v4204, %v4205
        %v4207 = vshll.u32 2131351028, %v4198
        %v4208 = vshrl.u32 2102212464, %v4199
        %v4209 = vor.u32 %v4207, %v4208
        %v4210 = vshll.u32 2102212464, %v4198
        %v4211 = vshrl.u32 920167782, %v4199
        %v4212 = vor.u32 %v4210, %v4211
        %v4213 = vshll.u32 920167782, %v4198
        %v4214 = vshrl.u32 1326507024, %v4199
        %v4215 = vor.u32 %v4213, %v4214
        %vm4216 = vcmp.lt.s32.totalorder %v4197, 1
        %vm4217 = vcmp.lt.s32.totalorder %v4197, 2
        %vm4218 = vcmp.lt.s32.totalorder %v4197, 3
        %vm4219 = vcmp.lt.s32.totalorder %v4197, 4
        %v4220 = vsel %vm4216, %v4200, %v4203
        %v4221 = vsel %vm4219, %v4209, 2102212464
        %v4222 = vsel %vm4218, %v4206, %v4221
        %v4223 = vsel %vm4217, %v4220, %v4222
        %v4224 = vsel %vm4216, %v4203, %v4206
        %v4225 = vsel %vm4219, %v4212, 920167782
        %v4226 = vsel %vm4218, %v4209, %v4225
        %v4227 = vsel %vm4217, %v4224, %v4226
        %v4228 = vsel %vm4216, %v4206, %v4209
        %v4229 = vsel %vm4219, %v4215, 1326507024
        %v4230 = vsel %vm4218, %v4212, %v4229
        %v4231 = vsel %vm4217, %v4228, %v4230
        %v4232 = vshll.u32 %v4192, 8
        %v4233 = vmul.u32.u64.compose %v4232, %v4231
        %v4234 = vextract.low.u32 %v4233
        %v4235 = vextract.high.u32 %v4233
        %v4236 = vmul.u32.u64.compose %v4232, %v4227
        %v4237 = vextract.low.u32 %v4236
        %v4238 = vextract.high.u32 %v4236
        %v4239 = vmul.u32 %v4232, %v4223
        %v4240 = vadd.s32 %v4235, %v4237
        %vm4241 = vc.u32 %v4235, %v4237
        %v4242 = vadd.s32 %v4238, 1
        %v4243 = vsel %vm4241, %v4242, %v4238
        %v4244 = vadd.s32 %v4239, %v4243
        %v4245 = vadd.s32 %v4244, 536870912
        %v4246 = vshrl.u32 %v4245, 30
        %v4247 = vshll.u32 %v4246, 30
        %v4248 = vsub.s32 %v4244, %v4247
        %vm4249 = vcmp.lt.s32.totalorder %v4248, 0
        %v4250 = vsub.s32 0, %v4248
        %v4251 = vsel %vm4249, %v4250, %v4248
        %v4252 = vclz %v4251
        %v4253 = vsub.s32 %v4252, 2
        %vm4254 = vcmp.gt.s32.totalorder 0, %v4253
        %v4255 = vsel %vm4254, 0, %v4253
        %v4256 = vsub.s32 32, %v4255
        %v4257 = vshll.u32 %v4248, %v4255
        %v4258 = vshrl.u32 %v4240, %v4256
        %v4259 = vor.u32 %v4257, %v4258
        %v4260 = vsub.s32 4294967266, %v4255
        %v4261 = vadd.s32 %v4260, 127
        %v4262 = vshll.u32 %v4261, 23
        %v4263 = vor.u32 4788187, %v4262
        %v4264 = vand.u32 2147483647, %v4263
        %v4266 = vcvt.s32.f32 %v4259
        %v4267 = vmul.f32 %v4266, %v4264
        %v4268 = vxor.u32 %v4267, 2147483648
        %v4269 = vsel %vm4186, %v4268, %v4267
        %v4270 = vsub.s32 4, %v4246
        %v4271 = vsel %vm4186, %v4270, %v4246
        %v4272 = vsel %vm4185, %v1787, %v4269
        %v4273 = vsel %vm4185, 0, %v4271
        %v4274 = vcosq.f32.pop %v4272
        %v4275 = vsinq.f32.pop %v4272
        %vm4276 = vweird.f32 %v1787
        %v4277 = vand.u32 %v4273, 3
        %vm4278 = vcmp.lt.s32.totalorder %v4277, 2
        %vm4279 = vcmp.eq.s32.totalorder %v4277, 0
        %v4280 = vxor.u32 %v4275, 2147483648
        %v4281 = vsel %vm4279, %v4274, %v4280
        %vm4282 = vcmp.eq.s32.totalorder %v4277, 2
        %v4283 = vxor.u32 %v4274, 2147483648
        %v4284 = vsel %vm4282, %v4283, %v4275
        %v4285 = vsel %vm4278, %v4281, %v4284
        %v4286 = vsel %vm4276, nan, %v4285
        %v4287 = vand.u32 2147483647, %v1738
        %vm4288 = vcmp.le.f32.partialorder %v4287, 0.7853982
        %vm4289 = vcmp.lt.s32.totalorder %v1738, 0
        %v4290 = vand.u32 %v1738, 2139095040
        %v4291 = vshrl.u32 %v4290, 23
        %v4292 = vsub.s32 %v4291, 127
        %v4293 = vand.u32 2147483647, %v1738
        %v4294 = vand.u32 %v4293, 8388607
        %v4295 = vor.u32 %v4294, 8388608
        %v4296 = vsub.s32 0, %v4295
        %v4297 = vadd.s32 %v4292, 1
        %vm4298 = vcmp.gt.s32.totalorder %v4297, 0
        %v4299 = vsel %vm4298, %v4297, 0
        %v4300 = vshrl.u32 %v4299, 5
        %v4301 = vand.u32 %v4299, 31
        %v4302 = vsub.s32 32, %v4301
        %v4303 = vshrl.u32 683565275, %v4302
        %v4304 = vshll.u32 683565275, %v4301
        %v4305 = vshrl.u32 2475754826, %v4302
        %v4306 = vor.u32 %v4304, %v4305
        %v4307 = vshll.u32 2475754826, %v4301
        %v4308 = vshrl.u32 2131351028, %v4302
        %v4309 = vor.u32 %v4307, %v4308
        %v4310 = vshll.u32 2131351028, %v4301
        %v4311 = vshrl.u32 2102212464, %v4302
        %v4312 = vor.u32 %v4310, %v4311
        %v4313 = vshll.u32 2102212464, %v4301
        %v4314 = vshrl.u32 920167782, %v4302
        %v4315 = vor.u32 %v4313, %v4314
        %v4316 = vshll.u32 920167782, %v4301
        %v4317 = vshrl.u32 1326507024, %v4302
        %v4318 = vor.u32 %v4316, %v4317
        %vm4319 = vcmp.lt.s32.totalorder %v4300, 1
        %vm4320 = vcmp.lt.s32.totalorder %v4300, 2
        %vm4321 = vcmp.lt.s32.totalorder %v4300, 3
        %vm4322 = vcmp.lt.s32.totalorder %v4300, 4
        %v4323 = vsel %vm4319, %v4303, %v4306
        %v4324 = vsel %vm4322, %v4312, 2102212464
        %v4325 = vsel %vm4321, %v4309, %v4324
        %v4326 = vsel %vm4320, %v4323, %v4325
        %v4327 = vsel %vm4319, %v4306, %v4309
        %v4328 = vsel %vm4322, %v4315, 920167782
        %v4329 = vsel %vm4321, %v4312, %v4328
        %v4330 = vsel %vm4320, %v4327, %v4329
        %v4331 = vsel %vm4319, %v4309, %v4312
        %v4332 = vsel %vm4322, %v4318, 1326507024
        %v4333 = vsel %vm4321, %v4315, %v4332
        %v4334 = vsel %vm4320, %v4331, %v4333
        %v4335 = vshll.u32 %v4295, 8
        %v4336 = vmul.u32.u64.compose %v4335, %v4334
        %v4337 = vextract.low.u32 %v4336
        %v4338 = vextract.high.u32 %v4336
        %v4339 = vmul.u32.u64.compose %v4335, %v4330
        %v4340 = vextract.low.u32 %v4339
        %v4341 = vextract.high.u32 %v4339
        %v4342 = vmul.u32 %v4335, %v4326
        %v4343 = vadd.s32 %v4338, %v4340
        %vm4344 = vc.u32 %v4338, %v4340
        %v4345 = vadd.s32 %v4341, 1
        %v4346 = vsel %vm4344, %v4345, %v4341
        %v4347 = vadd.s32 %v4342, %v4346
        %v4348 = vadd.s32 %v4347, 536870912
        %v4349 = vshrl.u32 %v4348, 30
        %v4350 = vshll.u32 %v4349, 30
        %v4351 = vsub.s32 %v4347, %v4350
        %vm4352 = vcmp.lt.s32.totalorder %v4351, 0
        %v4353 = vsub.s32 0, %v4351
        %v4354 = vsel %vm4352, %v4353, %v4351
        %v4355 = vclz %v4354
        %v4356 = vsub.s32 %v4355, 2
        %vm4357 = vcmp.gt.s32.totalorder 0, %v4356
        %v4358 = vsel %vm4357, 0, %v4356
        %v4359 = vsub.s32 32, %v4358
        %v4360 = vshll.u32 %v4351, %v4358
        %v4361 = vshrl.u32 %v4343, %v4359
        %v4362 = vor.u32 %v4360, %v4361
        %v4363 = vsub.s32 4294967266, %v4358
        %v4364 = vadd.s32 %v4363, 127
        %v4365 = vshll.u32 %v4364, 23
        %v4366 = vor.u32 4788187, %v4365
        %v4367 = vand.u32 2147483647, %v4366
        %v4369 = vcvt.s32.f32 %v4362
        %v4370 = vmul.f32 %v4369, %v4367
        %v4371 = vxor.u32 %v4370, 2147483648
        %v4372 = vsel %vm4289, %v4371, %v4370
        %v4373 = vsub.s32 4, %v4349
        %v4374 = vsel %vm4289, %v4373, %v4349
        %v4375 = vsel %vm4288, %v1738, %v4372
        %v4376 = vsel %vm4288, 0, %v4374
        %v4377 = vcosq.f32.pop %v4375
        %v4378 = vsinq.f32.pop %v4375
        %vm4379 = vweird.f32 %v1738
        %v4380 = vand.u32 %v4376, 3
        %vm4381 = vcmp.lt.s32.totalorder %v4380, 2
        %vm4382 = vcmp.eq.s32.totalorder %v4380, 0
        %v4383 = vxor.u32 %v4378, 2147483648
        %v4384 = vsel %vm4382, %v4377, %v4383
        %vm4385 = vcmp.eq.s32.totalorder %v4380, 2
        %v4386 = vxor.u32 %v4377, 2147483648
        %v4387 = vsel %vm4385, %v4386, %v4378
        %v4388 = vsel %vm4381, %v4384, %v4387
        %v4389 = vsel %vm4379, nan, %v4388
        %v4390 = vand.u32 2147483647, %v1740
        %vm4391 = vcmp.le.f32.partialorder %v4390, 0.7853982
        %vm4392 = vcmp.lt.s32.totalorder %v1740, 0
        %v4393 = vand.u32 %v1740, 2139095040
        %v4394 = vshrl.u32 %v4393, 23
        %v4395 = vsub.s32 %v4394, 127
        %v4396 = vand.u32 2147483647, %v1740
        %v4397 = vand.u32 %v4396, 8388607
        %v4398 = vor.u32 %v4397, 8388608
        %v4399 = vsub.s32 0, %v4398
        %v4400 = vadd.s32 %v4395, 1
        %vm4401 = vcmp.gt.s32.totalorder %v4400, 0
        %v4402 = vsel %vm4401, %v4400, 0
        %v4403 = vshrl.u32 %v4402, 5
        %v4404 = vand.u32 %v4402, 31
        %v4405 = vsub.s32 32, %v4404
        %v4406 = vshrl.u32 683565275, %v4405
        %v4407 = vshll.u32 683565275, %v4404
        %v4408 = vshrl.u32 2475754826, %v4405
        %v4409 = vor.u32 %v4407, %v4408
        %v4410 = vshll.u32 2475754826, %v4404
        %v4411 = vshrl.u32 2131351028, %v4405
        %v4412 = vor.u32 %v4410, %v4411
        %v4413 = vshll.u32 2131351028, %v4404
        %v4414 = vshrl.u32 2102212464, %v4405
        %v4415 = vor.u32 %v4413, %v4414
        %v4416 = vshll.u32 2102212464, %v4404
        %v4417 = vshrl.u32 920167782, %v4405
        %v4418 = vor.u32 %v4416, %v4417
        %v4419 = vshll.u32 920167782, %v4404
        %v4420 = vshrl.u32 1326507024, %v4405
        %v4421 = vor.u32 %v4419, %v4420
        %vm4422 = vcmp.lt.s32.totalorder %v4403, 1
        %vm4423 = vcmp.lt.s32.totalorder %v4403, 2
        %vm4424 = vcmp.lt.s32.totalorder %v4403, 3
        %vm4425 = vcmp.lt.s32.totalorder %v4403, 4
        %v4426 = vsel %vm4422, %v4406, %v4409
        %v4427 = vsel %vm4425, %v4415, 2102212464
        %v4428 = vsel %vm4424, %v4412, %v4427
        %v4429 = vsel %vm4423, %v4426, %v4428
        %v4430 = vsel %vm4422, %v4409, %v4412
        %v4431 = vsel %vm4425, %v4418, 920167782
        %v4432 = vsel %vm4424, %v4415, %v4431
        %v4433 = vsel %vm4423, %v4430, %v4432
        %v4434 = vsel %vm4422, %v4412, %v4415
        %v4435 = vsel %vm4425, %v4421, 1326507024
        %v4436 = vsel %vm4424, %v4418, %v4435
        %v4437 = vsel %vm4423, %v4434, %v4436
        %v4438 = vshll.u32 %v4398, 8
        %v4439 = vmul.u32.u64.compose %v4438, %v4437
        %v4440 = vextract.low.u32 %v4439
        %v4441 = vextract.high.u32 %v4439
        %v4442 = vmul.u32.u64.compose %v4438, %v4433
        %v4443 = vextract.low.u32 %v4442
        %v4444 = vextract.high.u32 %v4442
        %v4445 = vmul.u32 %v4438, %v4429
        %v4446 = vadd.s32 %v4441, %v4443
        %vm4447 = vc.u32 %v4441, %v4443
        %v4448 = vadd.s32 %v4444, 1
        %v4449 = vsel %vm4447, %v4448, %v4444
        %v4450 = vadd.s32 %v4445, %v4449
        %v4451 = vadd.s32 %v4450, 536870912
        %v4452 = vshrl.u32 %v4451, 30
        %v4453 = vshll.u32 %v4452, 30
        %v4454 = vsub.s32 %v4450, %v4453
        %vm4455 = vcmp.lt.s32.totalorder %v4454, 0
        %v4456 = vsub.s32 0, %v4454
        %v4457 = vsel %vm4455, %v4456, %v4454
        %v4458 = vclz %v4457
        %v4459 = vsub.s32 %v4458, 2
        %vm4460 = vcmp.gt.s32.totalorder 0, %v4459
        %v4461 = vsel %vm4460, 0, %v4459
        %v4462 = vsub.s32 32, %v4461
        %v4463 = vshll.u32 %v4454, %v4461
        %v4464 = vshrl.u32 %v4446, %v4462
        %v4465 = vor.u32 %v4463, %v4464
        %v4466 = vsub.s32 4294967266, %v4461
        %v4467 = vadd.s32 %v4466, 127
        %v4468 = vshll.u32 %v4467, 23
        %v4469 = vor.u32 4788187, %v4468
        %v4470 = vand.u32 2147483647, %v4469
        %v4472 = vcvt.s32.f32 %v4465
        %v4473 = vmul.f32 %v4472, %v4470
        %v4474 = vxor.u32 %v4473, 2147483648
        %v4475 = vsel %vm4392, %v4474, %v4473
        %v4476 = vsub.s32 4, %v4452
        %v4477 = vsel %vm4392, %v4476, %v4452
        %v4478 = vsel %vm4391, %v1740, %v4475
        %v4479 = vsel %vm4391, 0, %v4477
        %v4480 = vcosq.f32.pop %v4478
        %v4481 = vsinq.f32.pop %v4478
        %vm4482 = vweird.f32 %v1740
        %v4483 = vand.u32 %v4479, 3
        %vm4484 = vcmp.lt.s32.totalorder %v4483, 2
        %vm4485 = vcmp.eq.s32.totalorder %v4483, 0
        %v4486 = vxor.u32 %v4481, 2147483648
        %v4487 = vsel %vm4485, %v4480, %v4486
        %vm4488 = vcmp.eq.s32.totalorder %v4483, 2
        %v4489 = vxor.u32 %v4480, 2147483648
        %v4490 = vsel %vm4488, %v4489, %v4481
        %v4491 = vsel %vm4484, %v4487, %v4490
        %v4492 = vsel %vm4482, nan, %v4491
        %v4493 = vand.u32 2147483647, %v1791
        %vm4494 = vcmp.le.f32.partialorder %v4493, 0.7853982
        %vm4495 = vcmp.lt.s32.totalorder %v1791, 0
        %v4496 = vand.u32 %v1791, 2139095040
        %v4497 = vshrl.u32 %v4496, 23
        %v4498 = vsub.s32 %v4497, 127
        %v4499 = vand.u32 2147483647, %v1791
        %v4500 = vand.u32 %v4499, 8388607
        %v4501 = vor.u32 %v4500, 8388608
        %v4502 = vsub.s32 0, %v4501
        %v4503 = vadd.s32 %v4498, 1
        %vm4504 = vcmp.gt.s32.totalorder %v4503, 0
        %v4505 = vsel %vm4504, %v4503, 0
        %v4506 = vshrl.u32 %v4505, 5
        %v4507 = vand.u32 %v4505, 31
        %v4508 = vsub.s32 32, %v4507
        %v4509 = vshrl.u32 683565275, %v4508
        %v4510 = vshll.u32 683565275, %v4507
        %v4511 = vshrl.u32 2475754826, %v4508
        %v4512 = vor.u32 %v4510, %v4511
        %v4513 = vshll.u32 2475754826, %v4507
        %v4514 = vshrl.u32 2131351028, %v4508
        %v4515 = vor.u32 %v4513, %v4514
        %v4516 = vshll.u32 2131351028, %v4507
        %v4517 = vshrl.u32 2102212464, %v4508
        %v4518 = vor.u32 %v4516, %v4517
        %v4519 = vshll.u32 2102212464, %v4507
        %v4520 = vshrl.u32 920167782, %v4508
        %v4521 = vor.u32 %v4519, %v4520
        %v4522 = vshll.u32 920167782, %v4507
        %v4523 = vshrl.u32 1326507024, %v4508
        %v4524 = vor.u32 %v4522, %v4523
        %vm4525 = vcmp.lt.s32.totalorder %v4506, 1
        %vm4526 = vcmp.lt.s32.totalorder %v4506, 2
        %vm4527 = vcmp.lt.s32.totalorder %v4506, 3
        %vm4528 = vcmp.lt.s32.totalorder %v4506, 4
        %v4529 = vsel %vm4525, %v4509, %v4512
        %v4530 = vsel %vm4528, %v4518, 2102212464
        %v4531 = vsel %vm4527, %v4515, %v4530
        %v4532 = vsel %vm4526, %v4529, %v4531
        %v4533 = vsel %vm4525, %v4512, %v4515
        %v4534 = vsel %vm4528, %v4521, 920167782
        %v4535 = vsel %vm4527, %v4518, %v4534
        %v4536 = vsel %vm4526, %v4533, %v4535
        %v4537 = vsel %vm4525, %v4515, %v4518
        %v4538 = vsel %vm4528, %v4524, 1326507024
        %v4539 = vsel %vm4527, %v4521, %v4538
        %v4540 = vsel %vm4526, %v4537, %v4539
        %v4541 = vshll.u32 %v4501, 8
        %v4542 = vmul.u32.u64.compose %v4541, %v4540
        %v4543 = vextract.low.u32 %v4542
        %v4544 = vextract.high.u32 %v4542
        %v4545 = vmul.u32.u64.compose %v4541, %v4536
        %v4546 = vextract.low.u32 %v4545
        %v4547 = vextract.high.u32 %v4545
        %v4548 = vmul.u32 %v4541, %v4532
        %v4549 = vadd.s32 %v4544, %v4546
        %vm4550 = vc.u32 %v4544, %v4546
        %v4551 = vadd.s32 %v4547, 1
        %v4552 = vsel %vm4550, %v4551, %v4547
        %v4553 = vadd.s32 %v4548, %v4552
        %v4554 = vadd.s32 %v4553, 536870912
        %v4555 = vshrl.u32 %v4554, 30
        %v4556 = vshll.u32 %v4555, 30
        %v4557 = vsub.s32 %v4553, %v4556
        %vm4558 = vcmp.lt.s32.totalorder %v4557, 0
        %v4559 = vsub.s32 0, %v4557
        %v4560 = vsel %vm4558, %v4559, %v4557
        %v4561 = vclz %v4560
        %v4562 = vsub.s32 %v4561, 2
        %vm4563 = vcmp.gt.s32.totalorder 0, %v4562
        %v4564 = vsel %vm4563, 0, %v4562
        %v4565 = vsub.s32 32, %v4564
        %v4566 = vshll.u32 %v4557, %v4564
        %v4567 = vshrl.u32 %v4549, %v4565
        %v4568 = vor.u32 %v4566, %v4567
        %v4569 = vsub.s32 4294967266, %v4564
        %v4570 = vadd.s32 %v4569, 127
        %v4571 = vshll.u32 %v4570, 23
        %v4572 = vor.u32 4788187, %v4571
        %v4573 = vand.u32 2147483647, %v4572
        %v4575 = vcvt.s32.f32 %v4568
        %v4576 = vmul.f32 %v4575, %v4573
        %v4577 = vxor.u32 %v4576, 2147483648
        %v4578 = vsel %vm4495, %v4577, %v4576
        %v4579 = vsub.s32 4, %v4555
        %v4580 = vsel %vm4495, %v4579, %v4555
        %v4581 = vsel %vm4494, %v1791, %v4578
        %v4582 = vsel %vm4494, 0, %v4580
        %v4583 = vcosq.f32.pop %v4581
        %v4584 = vsinq.f32.pop %v4581
        %vm4585 = vweird.f32 %v1791
        %v4586 = vand.u32 %v4582, 3
        %vm4587 = vcmp.lt.s32.totalorder %v4586, 2
        %vm4588 = vcmp.eq.s32.totalorder %v4586, 0
        %v4589 = vxor.u32 %v4584, 2147483648
        %v4590 = vsel %vm4588, %v4583, %v4589
        %vm4591 = vcmp.eq.s32.totalorder %v4586, 2
        %v4592 = vxor.u32 %v4583, 2147483648
        %v4593 = vsel %vm4591, %v4592, %v4584
        %v4594 = vsel %vm4587, %v4590, %v4593
        %v4595 = vsel %vm4585, nan, %v4594
        %v4596 = vand.u32 2147483647, %v1793
        %vm4597 = vcmp.le.f32.partialorder %v4596, 0.7853982
        %vm4598 = vcmp.lt.s32.totalorder %v1793, 0
        %v4599 = vand.u32 %v1793, 2139095040
        %v4600 = vshrl.u32 %v4599, 23
        %v4601 = vsub.s32 %v4600, 127
        %v4602 = vand.u32 2147483647, %v1793
        %v4603 = vand.u32 %v4602, 8388607
        %v4604 = vor.u32 %v4603, 8388608
        %v4605 = vsub.s32 0, %v4604
        %v4606 = vadd.s32 %v4601, 1
        %vm4607 = vcmp.gt.s32.totalorder %v4606, 0
        %v4608 = vsel %vm4607, %v4606, 0
        %v4609 = vshrl.u32 %v4608, 5
        %v4610 = vand.u32 %v4608, 31
        %v4611 = vsub.s32 32, %v4610
        %v4612 = vshrl.u32 683565275, %v4611
        %v4613 = vshll.u32 683565275, %v4610
        %v4614 = vshrl.u32 2475754826, %v4611
        %v4615 = vor.u32 %v4613, %v4614
        %v4616 = vshll.u32 2475754826, %v4610
        %v4617 = vshrl.u32 2131351028, %v4611
        %v4618 = vor.u32 %v4616, %v4617
        %v4619 = vshll.u32 2131351028, %v4610
        %v4620 = vshrl.u32 2102212464, %v4611
        %v4621 = vor.u32 %v4619, %v4620
        %v4622 = vshll.u32 2102212464, %v4610
        %v4623 = vshrl.u32 920167782, %v4611
        %v4624 = vor.u32 %v4622, %v4623
        %v4625 = vshll.u32 920167782, %v4610
        %v4626 = vshrl.u32 1326507024, %v4611
        %v4627 = vor.u32 %v4625, %v4626
        %vm4628 = vcmp.lt.s32.totalorder %v4609, 1
        %vm4629 = vcmp.lt.s32.totalorder %v4609, 2
        %vm4630 = vcmp.lt.s32.totalorder %v4609, 3
        %vm4631 = vcmp.lt.s32.totalorder %v4609, 4
        %v4632 = vsel %vm4628, %v4612, %v4615
        %v4633 = vsel %vm4631, %v4621, 2102212464
        %v4634 = vsel %vm4630, %v4618, %v4633
        %v4635 = vsel %vm4629, %v4632, %v4634
        %v4636 = vsel %vm4628, %v4615, %v4618
        %v4637 = vsel %vm4631, %v4624, 920167782
        %v4638 = vsel %vm4630, %v4621, %v4637
        %v4639 = vsel %vm4629, %v4636, %v4638
        %v4640 = vsel %vm4628, %v4618, %v4621
        %v4641 = vsel %vm4631, %v4627, 1326507024
        %v4642 = vsel %vm4630, %v4624, %v4641
        %v4643 = vsel %vm4629, %v4640, %v4642
        %v4644 = vshll.u32 %v4604, 8
        %v4645 = vmul.u32.u64.compose %v4644, %v4643
        %v4646 = vextract.low.u32 %v4645
        %v4647 = vextract.high.u32 %v4645
        %v4648 = vmul.u32.u64.compose %v4644, %v4639
        %v4649 = vextract.low.u32 %v4648
        %v4650 = vextract.high.u32 %v4648
        %v4651 = vmul.u32 %v4644, %v4635
        %v4652 = vadd.s32 %v4647, %v4649
        %vm4653 = vc.u32 %v4647, %v4649
        %v4654 = vadd.s32 %v4650, 1
        %v4655 = vsel %vm4653, %v4654, %v4650
        %v4656 = vadd.s32 %v4651, %v4655
        %v4657 = vadd.s32 %v4656, 536870912
        %v4658 = vshrl.u32 %v4657, 30
        %v4659 = vshll.u32 %v4658, 30
        %v4660 = vsub.s32 %v4656, %v4659
        %vm4661 = vcmp.lt.s32.totalorder %v4660, 0
        %v4662 = vsub.s32 0, %v4660
        %v4663 = vsel %vm4661, %v4662, %v4660
        %v4664 = vclz %v4663
        %v4665 = vsub.s32 %v4664, 2
        %vm4666 = vcmp.gt.s32.totalorder 0, %v4665
        %v4667 = vsel %vm4666, 0, %v4665
        %v4668 = vsub.s32 32, %v4667
        %v4669 = vshll.u32 %v4660, %v4667
        %v4670 = vshrl.u32 %v4652, %v4668
        %v4671 = vor.u32 %v4669, %v4670
        %v4672 = vsub.s32 4294967266, %v4667
        %v4673 = vadd.s32 %v4672, 127
        %v4674 = vshll.u32 %v4673, 23
        %v4675 = vor.u32 4788187, %v4674
        %v4676 = vand.u32 2147483647, %v4675
        %v4678 = vcvt.s32.f32 %v4671
        %v4679 = vmul.f32 %v4678, %v4676
        %v4680 = vxor.u32 %v4679, 2147483648
        %v4681 = vsel %vm4598, %v4680, %v4679
        %v4682 = vsub.s32 4, %v4658
        %v4683 = vsel %vm4598, %v4682, %v4658
        %v4684 = vsel %vm4597, %v1793, %v4681
        %v4685 = vsel %vm4597, 0, %v4683
        %v4686 = vcosq.f32.pop %v4684
        %v4687 = vsinq.f32.pop %v4684
        %vm4688 = vweird.f32 %v1793
        %v4689 = vand.u32 %v4685, 3
        %vm4690 = vcmp.lt.s32.totalorder %v4689, 2
        %vm4691 = vcmp.eq.s32.totalorder %v4689, 0
        %v4692 = vxor.u32 %v4687, 2147483648
        %v4693 = vsel %vm4691, %v4686, %v4692
        %vm4694 = vcmp.eq.s32.totalorder %v4689, 2
        %v4695 = vxor.u32 %v4686, 2147483648
        %v4696 = vsel %vm4694, %v4695, %v4687
        %v4697 = vsel %vm4690, %v4693, %v4696
        %v4698 = vsel %vm4688, nan, %v4697
        %v4699 = vand.u32 2147483647, %v1742
        %vm4700 = vcmp.le.f32.partialorder %v4699, 0.7853982
        %vm4701 = vcmp.lt.s32.totalorder %v1742, 0
        %v4702 = vand.u32 %v1742, 2139095040
        %v4703 = vshrl.u32 %v4702, 23
        %v4704 = vsub.s32 %v4703, 127
        %v4705 = vand.u32 2147483647, %v1742
        %v4706 = vand.u32 %v4705, 8388607
        %v4707 = vor.u32 %v4706, 8388608
        %v4708 = vsub.s32 0, %v4707
        %v4709 = vadd.s32 %v4704, 1
        %vm4710 = vcmp.gt.s32.totalorder %v4709, 0
        %v4711 = vsel %vm4710, %v4709, 0
        %v4712 = vshrl.u32 %v4711, 5
        %v4713 = vand.u32 %v4711, 31
        %v4714 = vsub.s32 32, %v4713
        %v4715 = vshrl.u32 683565275, %v4714
        %v4716 = vshll.u32 683565275, %v4713
        %v4717 = vshrl.u32 2475754826, %v4714
        %v4718 = vor.u32 %v4716, %v4717
        %v4719 = vshll.u32 2475754826, %v4713
        %v4720 = vshrl.u32 2131351028, %v4714
        %v4721 = vor.u32 %v4719, %v4720
        %v4722 = vshll.u32 2131351028, %v4713
        %v4723 = vshrl.u32 2102212464, %v4714
        %v4724 = vor.u32 %v4722, %v4723
        %v4725 = vshll.u32 2102212464, %v4713
        %v4726 = vshrl.u32 920167782, %v4714
        %v4727 = vor.u32 %v4725, %v4726
        %v4728 = vshll.u32 920167782, %v4713
        %v4729 = vshrl.u32 1326507024, %v4714
        %v4730 = vor.u32 %v4728, %v4729
        %vm4731 = vcmp.lt.s32.totalorder %v4712, 1
        %vm4732 = vcmp.lt.s32.totalorder %v4712, 2
        %vm4733 = vcmp.lt.s32.totalorder %v4712, 3
        %vm4734 = vcmp.lt.s32.totalorder %v4712, 4
        %v4735 = vsel %vm4731, %v4715, %v4718
        %v4736 = vsel %vm4734, %v4724, 2102212464
        %v4737 = vsel %vm4733, %v4721, %v4736
        %v4738 = vsel %vm4732, %v4735, %v4737
        %v4739 = vsel %vm4731, %v4718, %v4721
        %v4740 = vsel %vm4734, %v4727, 920167782
        %v4741 = vsel %vm4733, %v4724, %v4740
        %v4742 = vsel %vm4732, %v4739, %v4741
        %v4743 = vsel %vm4731, %v4721, %v4724
        %v4744 = vsel %vm4734, %v4730, 1326507024
        %v4745 = vsel %vm4733, %v4727, %v4744
        %v4746 = vsel %vm4732, %v4743, %v4745
        %v4747 = vshll.u32 %v4707, 8
        %v4748 = vmul.u32.u64.compose %v4747, %v4746
        %v4749 = vextract.low.u32 %v4748
        %v4750 = vextract.high.u32 %v4748
        %v4751 = vmul.u32.u64.compose %v4747, %v4742
        %v4752 = vextract.low.u32 %v4751
        %v4753 = vextract.high.u32 %v4751
        %v4754 = vmul.u32 %v4747, %v4738
        %v4755 = vadd.s32 %v4750, %v4752
        %vm4756 = vc.u32 %v4750, %v4752
        %v4757 = vadd.s32 %v4753, 1
        %v4758 = vsel %vm4756, %v4757, %v4753
        %v4759 = vadd.s32 %v4754, %v4758
        %v4760 = vadd.s32 %v4759, 536870912
        %v4761 = vshrl.u32 %v4760, 30
        %v4762 = vshll.u32 %v4761, 30
        %v4763 = vsub.s32 %v4759, %v4762
        %vm4764 = vcmp.lt.s32.totalorder %v4763, 0
        %v4765 = vsub.s32 0, %v4763
        %v4766 = vsel %vm4764, %v4765, %v4763
        %v4767 = vclz %v4766
        %v4768 = vsub.s32 %v4767, 2
        %vm4769 = vcmp.gt.s32.totalorder 0, %v4768
        %v4770 = vsel %vm4769, 0, %v4768
        %v4771 = vsub.s32 32, %v4770
        %v4772 = vshll.u32 %v4763, %v4770
        %v4773 = vshrl.u32 %v4755, %v4771
        %v4774 = vor.u32 %v4772, %v4773
        %v4775 = vsub.s32 4294967266, %v4770
        %v4776 = vadd.s32 %v4775, 127
        %v4777 = vshll.u32 %v4776, 23
        %v4778 = vor.u32 4788187, %v4777
        %v4779 = vand.u32 2147483647, %v4778
        %v4781 = vcvt.s32.f32 %v4774
        %v4782 = vmul.f32 %v4781, %v4779
        %v4783 = vxor.u32 %v4782, 2147483648
        %v4784 = vsel %vm4701, %v4783, %v4782
        %v4785 = vsub.s32 4, %v4761
        %v4786 = vsel %vm4701, %v4785, %v4761
        %v4787 = vsel %vm4700, %v1742, %v4784
        %v4788 = vsel %vm4700, 0, %v4786
        %v4789 = vcosq.f32.pop %v4787
        %v4790 = vsinq.f32.pop %v4787
        %vm4791 = vweird.f32 %v1742
        %v4792 = vand.u32 %v4788, 3
        %vm4793 = vcmp.lt.s32.totalorder %v4792, 2
        %vm4794 = vcmp.eq.s32.totalorder %v4792, 0
        %v4795 = vxor.u32 %v4790, 2147483648
        %v4796 = vsel %vm4794, %v4789, %v4795
        %vm4797 = vcmp.eq.s32.totalorder %v4792, 2
        %v4798 = vxor.u32 %v4789, 2147483648
        %v4799 = vsel %vm4797, %v4798, %v4790
        %v4800 = vsel %vm4793, %v4796, %v4799
        %v4801 = vsel %vm4791, nan, %v4800
        %v4802 = vand.u32 2147483647, %v1744
        %vm4803 = vcmp.le.f32.partialorder %v4802, 0.7853982
        %vm4804 = vcmp.lt.s32.totalorder %v1744, 0
        %v4805 = vand.u32 %v1744, 2139095040
        %v4806 = vshrl.u32 %v4805, 23
        %v4807 = vsub.s32 %v4806, 127
        %v4808 = vand.u32 2147483647, %v1744
        %v4809 = vand.u32 %v4808, 8388607
        %v4810 = vor.u32 %v4809, 8388608
        %v4811 = vsub.s32 0, %v4810
        %v4812 = vadd.s32 %v4807, 1
        %vm4813 = vcmp.gt.s32.totalorder %v4812, 0
        %v4814 = vsel %vm4813, %v4812, 0
        %v4815 = vshrl.u32 %v4814, 5
        %v4816 = vand.u32 %v4814, 31
        %v4817 = vsub.s32 32, %v4816
        %v4818 = vshrl.u32 683565275, %v4817
        %v4819 = vshll.u32 683565275, %v4816
        %v4820 = vshrl.u32 2475754826, %v4817
        %v4821 = vor.u32 %v4819, %v4820
        %v4822 = vshll.u32 2475754826, %v4816
        %v4823 = vshrl.u32 2131351028, %v4817
        %v4824 = vor.u32 %v4822, %v4823
        %v4825 = vshll.u32 2131351028, %v4816
        %v4826 = vshrl.u32 2102212464, %v4817
        %v4827 = vor.u32 %v4825, %v4826
        %v4828 = vshll.u32 2102212464, %v4816
        %v4829 = vshrl.u32 920167782, %v4817
        %v4830 = vor.u32 %v4828, %v4829
        %v4831 = vshll.u32 920167782, %v4816
        %v4832 = vshrl.u32 1326507024, %v4817
        %v4833 = vor.u32 %v4831, %v4832
        %vm4834 = vcmp.lt.s32.totalorder %v4815, 1
        %vm4835 = vcmp.lt.s32.totalorder %v4815, 2
        %vm4836 = vcmp.lt.s32.totalorder %v4815, 3
        %vm4837 = vcmp.lt.s32.totalorder %v4815, 4
        %v4838 = vsel %vm4834, %v4818, %v4821
        %v4839 = vsel %vm4837, %v4827, 2102212464
        %v4840 = vsel %vm4836, %v4824, %v4839
        %v4841 = vsel %vm4835, %v4838, %v4840
        %v4842 = vsel %vm4834, %v4821, %v4824
        %v4843 = vsel %vm4837, %v4830, 920167782
        %v4844 = vsel %vm4836, %v4827, %v4843
        %v4845 = vsel %vm4835, %v4842, %v4844
        %v4846 = vsel %vm4834, %v4824, %v4827
        %v4847 = vsel %vm4837, %v4833, 1326507024
        %v4848 = vsel %vm4836, %v4830, %v4847
        %v4849 = vsel %vm4835, %v4846, %v4848
        %v4850 = vshll.u32 %v4810, 8
        %v4851 = vmul.u32.u64.compose %v4850, %v4849
        %v4852 = vextract.low.u32 %v4851
        %v4853 = vextract.high.u32 %v4851
        %v4854 = vmul.u32.u64.compose %v4850, %v4845
        %v4855 = vextract.low.u32 %v4854
        %v4856 = vextract.high.u32 %v4854
        %v4857 = vmul.u32 %v4850, %v4841
        %v4858 = vadd.s32 %v4853, %v4855
        %vm4859 = vc.u32 %v4853, %v4855
        %v4860 = vadd.s32 %v4856, 1
        %v4861 = vsel %vm4859, %v4860, %v4856
        %v4862 = vadd.s32 %v4857, %v4861
        %v4863 = vadd.s32 %v4862, 536870912
        %v4864 = vshrl.u32 %v4863, 30
        %v4865 = vshll.u32 %v4864, 30
        %v4866 = vsub.s32 %v4862, %v4865
        %vm4867 = vcmp.lt.s32.totalorder %v4866, 0
        %v4868 = vsub.s32 0, %v4866
        %v4869 = vsel %vm4867, %v4868, %v4866
        %v4870 = vclz %v4869
        %v4871 = vsub.s32 %v4870, 2
        %vm4872 = vcmp.gt.s32.totalorder 0, %v4871
        %v4873 = vsel %vm4872, 0, %v4871
        %v4874 = vsub.s32 32, %v4873
        %v4875 = vshll.u32 %v4866, %v4873
        %v4876 = vshrl.u32 %v4858, %v4874
        %v4877 = vor.u32 %v4875, %v4876
        %v4878 = vsub.s32 4294967266, %v4873
        %v4879 = vadd.s32 %v4878, 127
        %v4880 = vshll.u32 %v4879, 23
        %v4881 = vor.u32 4788187, %v4880
        %v4882 = vand.u32 2147483647, %v4881
        %v4884 = vcvt.s32.f32 %v4877
        %v4885 = vmul.f32 %v4884, %v4882
        %v4886 = vxor.u32 %v4885, 2147483648
        %v4887 = vsel %vm4804, %v4886, %v4885
        %v4888 = vsub.s32 4, %v4864
        %v4889 = vsel %vm4804, %v4888, %v4864
        %v4890 = vsel %vm4803, %v1744, %v4887
        %v4891 = vsel %vm4803, 0, %v4889
        %v4892 = vcosq.f32.pop %v4890
        %v4893 = vsinq.f32.pop %v4890
        %vm4894 = vweird.f32 %v1744
        %v4895 = vand.u32 %v4891, 3
        %vm4896 = vcmp.lt.s32.totalorder %v4895, 2
        %vm4897 = vcmp.eq.s32.totalorder %v4895, 0
        %v4898 = vxor.u32 %v4893, 2147483648
        %v4899 = vsel %vm4897, %v4892, %v4898
        %vm4900 = vcmp.eq.s32.totalorder %v4895, 2
        %v4901 = vxor.u32 %v4892, 2147483648
        %v4902 = vsel %vm4900, %v4901, %v4893
        %v4903 = vsel %vm4896, %v4899, %v4902
        %v4904 = vsel %vm4894, nan, %v4903
        %v4905 = vand.u32 2147483647, %v1795
        %vm4906 = vcmp.le.f32.partialorder %v4905, 0.7853982
        %vm4907 = vcmp.lt.s32.totalorder %v1795, 0
        %v4908 = vand.u32 %v1795, 2139095040
        %v4909 = vshrl.u32 %v4908, 23
        %v4910 = vsub.s32 %v4909, 127
        %v4911 = vand.u32 2147483647, %v1795
        %v4912 = vand.u32 %v4911, 8388607
        %v4913 = vor.u32 %v4912, 8388608
        %v4914 = vsub.s32 0, %v4913
        %v4915 = vadd.s32 %v4910, 1
        %vm4916 = vcmp.gt.s32.totalorder %v4915, 0
        %v4917 = vsel %vm4916, %v4915, 0
        %v4918 = vshrl.u32 %v4917, 5
        %v4919 = vand.u32 %v4917, 31
        %v4920 = vsub.s32 32, %v4919
        %v4921 = vshrl.u32 683565275, %v4920
        %v4922 = vshll.u32 683565275, %v4919
        %v4923 = vshrl.u32 2475754826, %v4920
        %v4924 = vor.u32 %v4922, %v4923
        %v4925 = vshll.u32 2475754826, %v4919
        %v4926 = vshrl.u32 2131351028, %v4920
        %v4927 = vor.u32 %v4925, %v4926
        %v4928 = vshll.u32 2131351028, %v4919
        %v4929 = vshrl.u32 2102212464, %v4920
        %v4930 = vor.u32 %v4928, %v4929
        %v4931 = vshll.u32 2102212464, %v4919
        %v4932 = vshrl.u32 920167782, %v4920
        %v4933 = vor.u32 %v4931, %v4932
        %v4934 = vshll.u32 920167782, %v4919
        %v4935 = vshrl.u32 1326507024, %v4920
        %v4936 = vor.u32 %v4934, %v4935
        %vm4937 = vcmp.lt.s32.totalorder %v4918, 1
        %vm4938 = vcmp.lt.s32.totalorder %v4918, 2
        %vm4939 = vcmp.lt.s32.totalorder %v4918, 3
        %vm4940 = vcmp.lt.s32.totalorder %v4918, 4
        %v4941 = vsel %vm4937, %v4921, %v4924
        %v4942 = vsel %vm4940, %v4930, 2102212464
        %v4943 = vsel %vm4939, %v4927, %v4942
        %v4944 = vsel %vm4938, %v4941, %v4943
        %v4945 = vsel %vm4937, %v4924, %v4927
        %v4946 = vsel %vm4940, %v4933, 920167782
        %v4947 = vsel %vm4939, %v4930, %v4946
        %v4948 = vsel %vm4938, %v4945, %v4947
        %v4949 = vsel %vm4937, %v4927, %v4930
        %v4950 = vsel %vm4940, %v4936, 1326507024
        %v4951 = vsel %vm4939, %v4933, %v4950
        %v4952 = vsel %vm4938, %v4949, %v4951
        %v4953 = vshll.u32 %v4913, 8
        %v4954 = vmul.u32.u64.compose %v4953, %v4952
        %v4955 = vextract.low.u32 %v4954
        %v4956 = vextract.high.u32 %v4954
        %v4957 = vmul.u32.u64.compose %v4953, %v4948
        %v4958 = vextract.low.u32 %v4957
        %v4959 = vextract.high.u32 %v4957
        %v4960 = vmul.u32 %v4953, %v4944
        %v4961 = vadd.s32 %v4956, %v4958
        %vm4962 = vc.u32 %v4956, %v4958
        %v4963 = vadd.s32 %v4959, 1
        %v4964 = vsel %vm4962, %v4963, %v4959
        %v4965 = vadd.s32 %v4960, %v4964
        %v4966 = vadd.s32 %v4965, 536870912
        %v4967 = vshrl.u32 %v4966, 30
        %v4968 = vshll.u32 %v4967, 30
        %v4969 = vsub.s32 %v4965, %v4968
        %vm4970 = vcmp.lt.s32.totalorder %v4969, 0
        %v4971 = vsub.s32 0, %v4969
        %v4972 = vsel %vm4970, %v4971, %v4969
        %v4973 = vclz %v4972
        %v4974 = vsub.s32 %v4973, 2
        %vm4975 = vcmp.gt.s32.totalorder 0, %v4974
        %v4976 = vsel %vm4975, 0, %v4974
        %v4977 = vsub.s32 32, %v4976
        %v4978 = vshll.u32 %v4969, %v4976
        %v4979 = vshrl.u32 %v4961, %v4977
        %v4980 = vor.u32 %v4978, %v4979
        %v4981 = vsub.s32 4294967266, %v4976
        %v4982 = vadd.s32 %v4981, 127
        %v4983 = vshll.u32 %v4982, 23
        %v4984 = vor.u32 4788187, %v4983
        %v4985 = vand.u32 2147483647, %v4984
        %v4987 = vcvt.s32.f32 %v4980
        %v4988 = vmul.f32 %v4987, %v4985
        %v4989 = vxor.u32 %v4988, 2147483648
        %v4990 = vsel %vm4907, %v4989, %v4988
        %v4991 = vsub.s32 4, %v4967
        %v4992 = vsel %vm4907, %v4991, %v4967
        %v4993 = vsel %vm4906, %v1795, %v4990
        %v4994 = vsel %vm4906, 0, %v4992
        %v4995 = vcosq.f32.pop %v4993
        %v4996 = vsinq.f32.pop %v4993
        %vm4997 = vweird.f32 %v1795
        %v4998 = vand.u32 %v4994, 3
        %vm4999 = vcmp.lt.s32.totalorder %v4998, 2
        %vm5000 = vcmp.eq.s32.totalorder %v4998, 0
        %v5001 = vxor.u32 %v4996, 2147483648
        %v5002 = vsel %vm5000, %v4995, %v5001
        %vm5003 = vcmp.eq.s32.totalorder %v4998, 2
        %v5004 = vxor.u32 %v4995, 2147483648
        %v5005 = vsel %vm5003, %v5004, %v4996
        %v5006 = vsel %vm4999, %v5002, %v5005
        %v5007 = vsel %vm4997, nan, %v5006
        %v5008 = vand.u32 2147483647, %v1797
        %vm5009 = vcmp.le.f32.partialorder %v5008, 0.7853982
        %vm5010 = vcmp.lt.s32.totalorder %v1797, 0
        %v5011 = vand.u32 %v1797, 2139095040
        %v5012 = vshrl.u32 %v5011, 23
        %v5013 = vsub.s32 %v5012, 127
        %v5014 = vand.u32 2147483647, %v1797
        %v5015 = vand.u32 %v5014, 8388607
        %v5016 = vor.u32 %v5015, 8388608
        %v5017 = vsub.s32 0, %v5016
        %v5018 = vadd.s32 %v5013, 1
        %vm5019 = vcmp.gt.s32.totalorder %v5018, 0
        %v5020 = vsel %vm5019, %v5018, 0
        %v5021 = vshrl.u32 %v5020, 5
        %v5022 = vand.u32 %v5020, 31
        %v5023 = vsub.s32 32, %v5022
        %v5024 = vshrl.u32 683565275, %v5023
        %v5025 = vshll.u32 683565275, %v5022
        %v5026 = vshrl.u32 2475754826, %v5023
        %v5027 = vor.u32 %v5025, %v5026
        %v5028 = vshll.u32 2475754826, %v5022
        %v5029 = vshrl.u32 2131351028, %v5023
        %v5030 = vor.u32 %v5028, %v5029
        %v5031 = vshll.u32 2131351028, %v5022
        %v5032 = vshrl.u32 2102212464, %v5023
        %v5033 = vor.u32 %v5031, %v5032
        %v5034 = vshll.u32 2102212464, %v5022
        %v5035 = vshrl.u32 920167782, %v5023
        %v5036 = vor.u32 %v5034, %v5035
        %v5037 = vshll.u32 920167782, %v5022
        %v5038 = vshrl.u32 1326507024, %v5023
        %v5039 = vor.u32 %v5037, %v5038
        %vm5040 = vcmp.lt.s32.totalorder %v5021, 1
        %vm5041 = vcmp.lt.s32.totalorder %v5021, 2
        %vm5042 = vcmp.lt.s32.totalorder %v5021, 3
        %vm5043 = vcmp.lt.s32.totalorder %v5021, 4
        %v5044 = vsel %vm5040, %v5024, %v5027
        %v5045 = vsel %vm5043, %v5033, 2102212464
        %v5046 = vsel %vm5042, %v5030, %v5045
        %v5047 = vsel %vm5041, %v5044, %v5046
        %v5048 = vsel %vm5040, %v5027, %v5030
        %v5049 = vsel %vm5043, %v5036, 920167782
        %v5050 = vsel %vm5042, %v5033, %v5049
        %v5051 = vsel %vm5041, %v5048, %v5050
        %v5052 = vsel %vm5040, %v5030, %v5033
        %v5053 = vsel %vm5043, %v5039, 1326507024
        %v5054 = vsel %vm5042, %v5036, %v5053
        %v5055 = vsel %vm5041, %v5052, %v5054
        %v5056 = vshll.u32 %v5016, 8
        %v5057 = vmul.u32.u64.compose %v5056, %v5055
        %v5058 = vextract.low.u32 %v5057
        %v5059 = vextract.high.u32 %v5057
        %v5060 = vmul.u32.u64.compose %v5056, %v5051
        %v5061 = vextract.low.u32 %v5060
        %v5062 = vextract.high.u32 %v5060
        %v5063 = vmul.u32 %v5056, %v5047
        %v5064 = vadd.s32 %v5059, %v5061
        %vm5065 = vc.u32 %v5059, %v5061
        %v5066 = vadd.s32 %v5062, 1
        %v5067 = vsel %vm5065, %v5066, %v5062
        %v5068 = vadd.s32 %v5063, %v5067
        %v5069 = vadd.s32 %v5068, 536870912
        %v5070 = vshrl.u32 %v5069, 30
        %v5071 = vshll.u32 %v5070, 30
        %v5072 = vsub.s32 %v5068, %v5071
        %vm5073 = vcmp.lt.s32.totalorder %v5072, 0
        %v5074 = vsub.s32 0, %v5072
        %v5075 = vsel %vm5073, %v5074, %v5072
        %v5076 = vclz %v5075
        %v5077 = vsub.s32 %v5076, 2
        %vm5078 = vcmp.gt.s32.totalorder 0, %v5077
        %v5079 = vsel %vm5078, 0, %v5077
        %v5080 = vsub.s32 32, %v5079
        %v5081 = vshll.u32 %v5072, %v5079
        %v5082 = vshrl.u32 %v5064, %v5080
        %v5083 = vor.u32 %v5081, %v5082
        %v5084 = vsub.s32 4294967266, %v5079
        %v5085 = vadd.s32 %v5084, 127
        %v5086 = vshll.u32 %v5085, 23
        %v5087 = vor.u32 4788187, %v5086
        %v5088 = vand.u32 2147483647, %v5087
        %v5090 = vcvt.s32.f32 %v5083
        %v5091 = vmul.f32 %v5090, %v5088
        %v5092 = vxor.u32 %v5091, 2147483648
        %v5093 = vsel %vm5010, %v5092, %v5091
        %v5094 = vsub.s32 4, %v5070
        %v5095 = vsel %vm5010, %v5094, %v5070
        %v5096 = vsel %vm5009, %v1797, %v5093
        %v5097 = vsel %vm5009, 0, %v5095
        %v5098 = vcosq.f32.pop %v5096
        %v5099 = vsinq.f32.pop %v5096
        %vm5100 = vweird.f32 %v1797
        %v5101 = vand.u32 %v5097, 3
        %vm5102 = vcmp.lt.s32.totalorder %v5101, 2
        %vm5103 = vcmp.eq.s32.totalorder %v5101, 0
        %v5104 = vxor.u32 %v5099, 2147483648
        %v5105 = vsel %vm5103, %v5098, %v5104
        %vm5106 = vcmp.eq.s32.totalorder %v5101, 2
        %v5107 = vxor.u32 %v5098, 2147483648
        %v5108 = vsel %vm5106, %v5107, %v5099
        %v5109 = vsel %vm5102, %v5105, %v5108
        %v5110 = vsel %vm5100, nan, %v5109
        %v5111 = vmul.f32 %v1902, %v3565
        %v5112 = vmul.f32 %v2006, %v3668
        %v5113 = vmul.f32 %v2110, %v3771
        %v5114 = vmul.f32 %v2214, %v3874
        %v5115 = vmul.f32 %v2318, %v3977
        %v5116 = vmul.f32 %v2422, %v4080
        %v5117 = vmul.f32 %v2526, %v4183
        %v5118 = vmul.f32 %v2630, %v4286
        %v5119 = vmul.f32 %v2734, %v4389
        %v5120 = vmul.f32 %v2838, %v4492
        %v5121 = vmul.f32 %v2942, %v4595
        %v5122 = vmul.f32 %v3046, %v4698
        %v5123 = vmul.f32 %v3150, %v4801
        %v5124 = vmul.f32 %v3254, %v4904
        %v5125 = vmul.f32 %v3358, %v5007
        %v5126 = vmul.f32 %v3462, %v5110
        %v5127 = vmul.f32 %v5111, 2.0
        %v5128 = vmul.f32 %v5112, 2.0
        %v5129 = vmul.f32 %v5113, 2.0
        %v5130 = vmul.f32 %v5114, 2.0
        %v5131 = vmul.f32 %v5115, 2.0
        %v5132 = vmul.f32 %v5116, 2.0
        %v5133 = vmul.f32 %v5117, 2.0
        %v5134 = vmul.f32 %v5118, 2.0
        %v5135 = vmul.f32 %v5119, 2.0
        %v5136 = vmul.f32 %v5120, 2.0
        %v5137 = vmul.f32 %v5121, 2.0
        %v5138 = vmul.f32 %v5122, 2.0
        %v5139 = vmul.f32 %v5123, 2.0
        %v5140 = vmul.f32 %v5124, 2.0
        %v5141 = vmul.f32 %v5125, 2.0
        %v5142 = vmul.f32 %v5126, 2.0
        %v5143 = vmul.f32 %v1902, %v1902
        %v5144 = vmul.f32 %v2006, %v2006
        %v5145 = vmul.f32 %v2110, %v2110
        %v5146 = vmul.f32 %v2214, %v2214
        %v5147 = vmul.f32 %v2318, %v2318
        %v5148 = vmul.f32 %v2422, %v2422
        %v5149 = vmul.f32 %v2526, %v2526
        %v5150 = vmul.f32 %v2630, %v2630
        %v5151 = vmul.f32 %v2734, %v2734
        %v5152 = vmul.f32 %v2838, %v2838
        %v5153 = vmul.f32 %v2942, %v2942
        %v5154 = vmul.f32 %v3046, %v3046
        %v5155 = vmul.f32 %v3150, %v3150
        %v5156 = vmul.f32 %v3254, %v3254
        %v5157 = vmul.f32 %v3358, %v3358
        %v5158 = vmul.f32 %v3462, %v3462
        %v5159 = vmul.f32 %v5143, 2.0
        %v5160 = vmul.f32 %v5144, 2.0
        %v5161 = vmul.f32 %v5145, 2.0
        %v5162 = vmul.f32 %v5146, 2.0
        %v5163 = vmul.f32 %v5147, 2.0
        %v5164 = vmul.f32 %v5148, 2.0
        %v5165 = vmul.f32 %v5149, 2.0
        %v5166 = vmul.f32 %v5150, 2.0
        %v5167 = vmul.f32 %v5151, 2.0
        %v5168 = vmul.f32 %v5152, 2.0
        %v5169 = vmul.f32 %v5153, 2.0
        %v5170 = vmul.f32 %v5154, 2.0
        %v5171 = vmul.f32 %v5155, 2.0
        %v5172 = vmul.f32 %v5156, 2.0
        %v5173 = vmul.f32 %v5157, 2.0
        %v5174 = vmul.f32 %v5158, 2.0
        %v5175 = vsub.f32 1.0, %v5159
        %v5176 = vsub.f32 1.0, %v5160
        %v5177 = vsub.f32 1.0, %v5161
        %v5178 = vsub.f32 1.0, %v5162
        %v5179 = vsub.f32 1.0, %v5163
        %v5180 = vsub.f32 1.0, %v5164
        %v5181 = vsub.f32 1.0, %v5165
        %v5182 = vsub.f32 1.0, %v5166
        %v5183 = vsub.f32 1.0, %v5167
        %v5184 = vsub.f32 1.0, %v5168
        %v5185 = vsub.f32 1.0, %v5169
        %v5186 = vsub.f32 1.0, %v5170
        %v5187 = vsub.f32 1.0, %v5171
        %v5188 = vsub.f32 1.0, %v5172
        %v5189 = vsub.f32 1.0, %v5173
        %v5190 = vsub.f32 1.0, %v5174
        %v5191 = vpack.c.bf16 %v1732, %v1728
        %v5192 = vpack.c.bf16 %v1734, %v1730
        %v5193 = vpack.c.bf16 %v1785, %v1781
        %v5194 = vpack.c.bf16 %v1787, %v1783
        %v5195 = vpack.c.bf16 %v1742, %v1738
        %v5196 = vpack.c.bf16 %v1744, %v1740
        %v5197 = vpack.c.bf16 %v1795, %v1791
        %v5198 = vpack.c.bf16 %v1797, %v1793
        %v5199 = vpack.c.bf16 %v2318, %v1902
        %v5200 = vpack.c.bf16 %v2422, %v2006
        %v5201 = vpack.c.bf16 %v2526, %v2110
        %v5202 = vpack.c.bf16 %v2630, %v2214
        %v5203 = vpack.c.bf16 %v3150, %v2734
        %v5204 = vpack.c.bf16 %v3254, %v2838
        %v5205 = vpack.c.bf16 %v3358, %v2942
        %v5206 = vpack.c.bf16 %v3462, %v3046
        %v5207 = vpack.c.bf16 %v3977, %v3565
        %v5208 = vpack.c.bf16 %v4080, %v3668
        %v5209 = vpack.c.bf16 %v4183, %v3771
        %v5210 = vpack.c.bf16 %v4286, %v3874
        %v5211 = vpack.c.bf16 %v4801, %v4389
        %v5212 = vpack.c.bf16 %v4904, %v4492
        %v5213 = vpack.c.bf16 %v5007, %v4595
        %v5214 = vpack.c.bf16 %v5110, %v4698
        %v5215 = vpack.c.bf16 %v5131, %v5127
        %v5216 = vpack.c.bf16 %v5132, %v5128
        %v5217 = vpack.c.bf16 %v5133, %v5129
        %v5218 = vpack.c.bf16 %v5134, %v5130
        %v5219 = vpack.c.bf16 %v5139, %v5135
        %v5220 = vpack.c.bf16 %v5140, %v5136
        %v5221 = vpack.c.bf16 %v5141, %v5137
        %v5222 = vpack.c.bf16 %v5142, %v5138
        %v5223 = vpack.c.bf16 %v5179, %v5175
        %v5224 = vpack.c.bf16 %v5180, %v5176
        %v5225 = vpack.c.bf16 %v5181, %v5177
        %v5226 = vpack.c.bf16 %v5182, %v5178
        %v5227 = vpack.c.bf16 %v5187, %v5183
        %v5228 = vpack.c.bf16 %v5188, %v5184
        %v5229 = vpack.c.bf16 %v5189, %v5185
        %v5230 = vpack.c.bf16 %v5190, %v5186
        %v5231 = vld [vmem:[%s3] sm:$0xff]
        %v5232 = vld [vmem:[%s3 + $0x8] sm:$0xff]
        %v5233 = vld [vmem:[%s3 + $0x10] sm:$0xff]
        %v5234 = vld [vmem:[%s3 + $0x18] sm:$0xff]
        %v5235 = vld [vmem:[%s3 + $0x20] sm:$0xff]
        %v5236 = vld [vmem:[%s3 + $0x28] sm:$0xff]
        %v5237 = vld [vmem:[%s3 + $0x30] sm:$0xff]
        %v5238 = vld [vmem:[%s3 + $0x38] sm:$0xff]
        %v5239 = vld [vmem:[%s3 + $0x40] sm:$0xff]
        %v5240 = vld [vmem:[%s3 + $0x48] sm:$0xff]
        %v5241 = vld [vmem:[%s3 + $0x50] sm:$0xff]
        %v5242 = vld [vmem:[%s3 + $0x58] sm:$0xff]
        %v5243 = vld [vmem:[%s3 + $0x60] sm:$0xff]
        %v5244 = vld [vmem:[%s3 + $0x68] sm:$0xff]
        %v5245 = vld [vmem:[%s3 + $0x70] sm:$0xff]
        %v5246 = vld [vmem:[%s3 + $0x78] sm:$0xff]
        %v5263 = vunpack.c.l.b16 %v5231
        %v5264 = vunpack.c.h.b16 %v5231
        %v5265 = vunpack.c.l.b16 %v5232
        %v5266 = vunpack.c.h.b16 %v5232
        %v5267 = vunpack.c.l.b16 %v5233
        %v5268 = vunpack.c.h.b16 %v5233
        %v5269 = vunpack.c.l.b16 %v5234
        %v5270 = vunpack.c.h.b16 %v5234
        %v5271 = vunpack.c.l.b16 %v5235
        %v5272 = vunpack.c.h.b16 %v5235
        %v5273 = vunpack.c.l.b16 %v5236
        %v5274 = vunpack.c.h.b16 %v5236
        %v5275 = vunpack.c.l.b16 %v5237
        %v5276 = vunpack.c.h.b16 %v5237
        %v5277 = vunpack.c.l.b16 %v5238
        %v5278 = vunpack.c.h.b16 %v5238
        %v5279 = vunpack.c.l.b16 %v5239
        %v5280 = vunpack.c.h.b16 %v5239
        %v5281 = vunpack.c.l.b16 %v5240
        %v5282 = vunpack.c.h.b16 %v5240
        %v5283 = vunpack.c.l.b16 %v5241
        %v5284 = vunpack.c.h.b16 %v5241
        %v5285 = vunpack.c.l.b16 %v5242
        %v5286 = vunpack.c.h.b16 %v5242
        %v5287 = vunpack.c.l.b16 %v5243
        %v5288 = vunpack.c.h.b16 %v5243
        %v5289 = vunpack.c.l.b16 %v5244
        %v5290 = vunpack.c.h.b16 %v5244
        %v5291 = vunpack.c.l.b16 %v5245
        %v5292 = vunpack.c.h.b16 %v5245
        %v5293 = vunpack.c.l.b16 %v5246
        %v5294 = vunpack.c.h.b16 %v5246
        %v5295 = vpack.c.b16 %v5265, %v5263
        %v5296 = vpack.c.b16 %v5266, %v5264
        %v5297 = vpack.c.b16 %v5269, %v5267
        %v5298 = vpack.c.b16 %v5270, %v5268
        %v5299 = vpack.c.b16 %v5273, %v5271
        %v5300 = vpack.c.b16 %v5274, %v5272
        %v5301 = vpack.c.b16 %v5277, %v5275
        %v5302 = vpack.c.b16 %v5278, %v5276
        %v5303 = vpack.c.b16 %v5281, %v5279
        %v5304 = vpack.c.b16 %v5282, %v5280
        %v5305 = vpack.c.b16 %v5285, %v5283
        %v5306 = vpack.c.b16 %v5286, %v5284
        %v5307 = vpack.c.b16 %v5289, %v5287
        %v5308 = vpack.c.b16 %v5290, %v5288
        %v5309 = vpack.c.b16 %v5293, %v5291
        %v5310 = vpack.c.b16 %v5294, %v5292
        %v5320 = vsel %vm1450, %v5296, 0
        %v5323 = vsel %vm1450, %v5298, 0
        %v5326 = vsel %vm1450, %v5300, 0
        %v5329 = vsel %vm1450, %v5302, 0
        %v5332 = vsel %vm1450, %v5304, 0
        %v5335 = vsel %vm1450, %v5306, 0
        %v5338 = vsel %vm1450, %v5308, 0
        %v5341 = vsel %vm1450, %v5310, 0
        %5343 = vmatprep.subr.bf16.mxu0 %v5220
        %5344 = vmatpush1.bf16.msra.mxu0 %v5219
        %5345 = vmatprep.subr.bf16.mxu0 %v5216
        %5346 = vmatpush1.bf16.msra.mxu0 %v5215
        %5347 = vmatprep.subr.bf16.mxu0 %v5212
        %5348 = vmatpush1.bf16.msra.mxu0 %v5211
        %5349 = vmatprep.subr.bf16.mxu0 %v5208
        %5350 = vmatpush1.bf16.msra.mxu0 %v5207
        %5351 = vmatprep.subr.bf16.mxu0 %v5204
        %5352 = vmatpush1.bf16.msra.mxu0 %v5203
        %5353 = vmatprep.subr.bf16.mxu0 %v5200
        %5354 = vmatpush1.bf16.msra.mxu0 %v5199
        %5355 = vmatprep.subr.bf16.mxu0 %v5196
        %5356 = vmatpush1.bf16.msra.mxu0 %v5195
        %5357 = vmatprep.subr.bf16.mxu0 %v5192
        %5358 = vmatpush1.bf16.msra.mxu0 %v5191
        %5359 = vmatprep.subr.bf16.mxu0 0
        %5360 = vmatpush2.bf16.msra.mxu0 0
        %5361 = vmatprep.subr.bf16.mxu0 0
        %5362 = vmatpush2.bf16.msra.mxu0 0
        %5363 = vmatprep.subr.bf16.mxu0 0
        %5364 = vmatpush2.bf16.msra.mxu0 0
        %5365 = vmatprep.subr.bf16.mxu0 0
        %5366 = vmatpush2.bf16.msra.mxu0 0
        %5367 = vmatprep.subr.bf16.mxu0 0
        %5368 = vmatpush2.bf16.msra.mxu0 0
        %5369 = vmatprep.subr.bf16.mxu0 %v1691
        %5370 = vmatpush2.bf16.msra.mxu0 %v1691
        %5371 = vmatprep.subr.bf16.mxu0 %v5228
        %5372 = vmatpush2.bf16.msra.mxu0 %v5227
        %5373 = vmatprep.subr.bf16.mxu0 %v5224
        %5374 = vmatpush2.bf16.msra.mxu0 %v5223
        %5375 = vmatprep.mubr.bf16.mxu0 %v5320
        %5376 = vmatmul.mubr.bf16.gmra.mxu0 %v5295
        %v5377 = vpop.f32.mrf.mxu0
        %v5378 = vadd.f32 0.0, %v5377
        %v5379 = vpop.f32.mrf.mxu0
        %v5380 = vadd.f32 0.0, %v5379
        %v5381 = vpop.f32.mrf.mxu0
        %v5382 = vadd.f32 0.0, %v5381
        %v5383 = vpop.f32.mrf.mxu0
        %v5384 = vadd.f32 0.0, %v5383
        %5385 = vmatprep.mubr.bf16.mxu0 %v5323
        %5386 = vmatmul.mubr.bf16.gmra.mxu0 %v5297
        %v5387 = vpop.f32.mrf.mxu0
        %v5388 = vadd.f32 0.0, %v5387
        %v5389 = vpop.f32.mrf.mxu0
        %v5390 = vadd.f32 0.0, %v5389
        %v5391 = vpop.f32.mrf.mxu0
        %v5392 = vadd.f32 0.0, %v5391
        %v5393 = vpop.f32.mrf.mxu0
        %v5394 = vadd.f32 0.0, %v5393
        %5395 = vmatprep.mubr.bf16.mxu0 %v5326
        %5396 = vmatmul.mubr.bf16.gmra.mxu0 %v5299
        %v5397 = vpop.f32.mrf.mxu0
        %v5398 = vadd.f32 0.0, %v5397
        %v5399 = vpop.f32.mrf.mxu0
        %v5400 = vadd.f32 0.0, %v5399
        %v5401 = vpop.f32.mrf.mxu0
        %v5402 = vadd.f32 0.0, %v5401
        %v5403 = vpop.f32.mrf.mxu0
        %v5404 = vadd.f32 0.0, %v5403
        %5405 = vmatprep.mubr.bf16.mxu0 %v5329
        %5406 = vmatmul.mubr.bf16.gmra.mxu0 %v5301
        %v5407 = vpop.f32.mrf.mxu0
        %v5408 = vadd.f32 0.0, %v5407
        %v5409 = vpop.f32.mrf.mxu0
        %v5410 = vadd.f32 0.0, %v5409
        %v5411 = vpop.f32.mrf.mxu0
        %v5412 = vadd.f32 0.0, %v5411
        %v5413 = vpop.f32.mrf.mxu0
        %v5414 = vadd.f32 0.0, %v5413
        %5415 = vmatprep.mubr.bf16.mxu0 %v5332
        %5416 = vmatmul.mubr.bf16.gmra.mxu0 %v5303
        %v5417 = vpop.f32.mrf.mxu0
        %v5418 = vadd.f32 0.0, %v5417
        %v5419 = vpop.f32.mrf.mxu0
        %v5420 = vadd.f32 0.0, %v5419
        %v5421 = vpop.f32.mrf.mxu0
        %v5422 = vadd.f32 0.0, %v5421
        %v5423 = vpop.f32.mrf.mxu0
        %v5424 = vadd.f32 0.0, %v5423
        %5425 = vmatprep.mubr.bf16.mxu0 %v5335
        %5426 = vmatmul.mubr.bf16.gmra.mxu0 %v5305
        %v5427 = vpop.f32.mrf.mxu0
        %v5428 = vadd.f32 0.0, %v5427
        %v5429 = vpop.f32.mrf.mxu0
        %v5430 = vadd.f32 0.0, %v5429
        %v5431 = vpop.f32.mrf.mxu0
        %v5432 = vadd.f32 0.0, %v5431
        %v5433 = vpop.f32.mrf.mxu0
        %v5434 = vadd.f32 0.0, %v5433
        %5435 = vmatprep.mubr.bf16.mxu0 %v5338
        %5436 = vmatmul.mubr.bf16.gmra.mxu0 %v5307
        %v5437 = vpop.f32.mrf.mxu0
        %v5438 = vadd.f32 0.0, %v5437
        %v5439 = vpop.f32.mrf.mxu0
        %v5440 = vadd.f32 0.0, %v5439
        %v5441 = vpop.f32.mrf.mxu0
        %v5442 = vadd.f32 0.0, %v5441
        %v5443 = vpop.f32.mrf.mxu0
        %v5444 = vadd.f32 0.0, %v5443
        %5445 = vmatprep.mubr.bf16.mxu0 %v5341
        %5446 = vmatmul.mubr.bf16.gmra.mxu0 %v5309
        %v5447 = vpop.f32.mrf.mxu0
        %v5448 = vadd.f32 0.0, %v5447
        %v5449 = vpop.f32.mrf.mxu0
        %v5450 = vadd.f32 0.0, %v5449
        %v5451 = vpop.f32.mrf.mxu0
        %v5452 = vadd.f32 0.0, %v5451
        %v5453 = vpop.f32.mrf.mxu0
        %v5454 = vadd.f32 0.0, %v5453
        %5455 = vdwg.mxu0
        %5456 = vmatprep.subr.bf16.mxu0 %v5222
        %5457 = vmatpush1.bf16.msra.mxu0 %v5221
        %5458 = vmatprep.subr.bf16.mxu0 %v5218
        %5459 = vmatpush1.bf16.msra.mxu0 %v5217
        %5460 = vmatprep.subr.bf16.mxu0 %v5214
        %5461 = vmatpush1.bf16.msra.mxu0 %v5213
        %5462 = vmatprep.subr.bf16.mxu0 %v5210
        %5463 = vmatpush1.bf16.msra.mxu0 %v5209
        %5464 = vmatprep.subr.bf16.mxu0 %v5206
        %5465 = vmatpush1.bf16.msra.mxu0 %v5205
        %5466 = vmatprep.subr.bf16.mxu0 %v5202
        %5467 = vmatpush1.bf16.msra.mxu0 %v5201
        %5468 = vmatprep.subr.bf16.mxu0 %v5198
        %5469 = vmatpush1.bf16.msra.mxu0 %v5197
        %5470 = vmatprep.subr.bf16.mxu0 %v5194
        %5471 = vmatpush1.bf16.msra.mxu0 %v5193
        %5472 = vmatprep.subr.bf16.mxu0 0
        %5473 = vmatpush2.bf16.msra.mxu0 0
        %5474 = vmatprep.subr.bf16.mxu0 0
        %5475 = vmatpush2.bf16.msra.mxu0 0
        %5476 = vmatprep.subr.bf16.mxu0 0
        %5477 = vmatpush2.bf16.msra.mxu0 0
        %5478 = vmatprep.subr.bf16.mxu0 0
        %5479 = vmatpush2.bf16.msra.mxu0 0
        %5480 = vmatprep.subr.bf16.mxu0 0
        %5481 = vmatpush2.bf16.msra.mxu0 0
        %5482 = vmatprep.subr.bf16.mxu0 %v1691
        %5483 = vmatpush2.bf16.msra.mxu0 %v1691
        %5484 = vmatprep.subr.bf16.mxu0 %v5230
        %5485 = vmatpush2.bf16.msra.mxu0 %v5229
        %5486 = vmatprep.subr.bf16.mxu0 %v5226
        %5487 = vmatpush2.bf16.msra.mxu0 %v5225
        %5488 = vmatprep.mubr.bf16.mxu0 %v5320
        %5489 = vmatmul.mubr.bf16.gmra.mxu0 %v5295
        %v5490 = vpop.f32.mrf.mxu0
        %v5491 = vadd.f32 0.0, %v5490
        %v5492 = vpop.f32.mrf.mxu0
        %v5493 = vadd.f32 0.0, %v5492
        %v5494 = vpop.f32.mrf.mxu0
        %v5495 = vadd.f32 0.0, %v5494
        %v5496 = vpop.f32.mrf.mxu0
        %v5497 = vadd.f32 0.0, %v5496
        %5498 = vmatprep.mubr.bf16.mxu0 %v5323
        %5499 = vmatmul.mubr.bf16.gmra.mxu0 %v5297
        %v5500 = vpop.f32.mrf.mxu0
        %v5501 = vadd.f32 0.0, %v5500
        %v5502 = vpop.f32.mrf.mxu0
        %v5503 = vadd.f32 0.0, %v5502
        %v5504 = vpop.f32.mrf.mxu0
        %v5505 = vadd.f32 0.0, %v5504
        %v5506 = vpop.f32.mrf.mxu0
        %v5507 = vadd.f32 0.0, %v5506
        %5508 = vmatprep.mubr.bf16.mxu0 %v5326
        %5509 = vmatmul.mubr.bf16.gmra.mxu0 %v5299
        %v5510 = vpop.f32.mrf.mxu0
        %v5511 = vadd.f32 0.0, %v5510
        %v5512 = vpop.f32.mrf.mxu0
        %v5513 = vadd.f32 0.0, %v5512
        %v5514 = vpop.f32.mrf.mxu0
        %v5515 = vadd.f32 0.0, %v5514
        %v5516 = vpop.f32.mrf.mxu0
        %v5517 = vadd.f32 0.0, %v5516
        %5518 = vmatprep.mubr.bf16.mxu0 %v5329
        %5519 = vmatmul.mubr.bf16.gmra.mxu0 %v5301
        %v5520 = vpop.f32.mrf.mxu0
        %v5521 = vadd.f32 0.0, %v5520
        %v5522 = vpop.f32.mrf.mxu0
        %v5523 = vadd.f32 0.0, %v5522
        %v5524 = vpop.f32.mrf.mxu0
        %v5525 = vadd.f32 0.0, %v5524
        %v5526 = vpop.f32.mrf.mxu0
        %v5527 = vadd.f32 0.0, %v5526
        %5528 = vmatprep.mubr.bf16.mxu0 %v5332
        %5529 = vmatmul.mubr.bf16.gmra.mxu0 %v5303
        %v5530 = vpop.f32.mrf.mxu0
        %v5531 = vadd.f32 0.0, %v5530
        %v5532 = vpop.f32.mrf.mxu0
        %v5533 = vadd.f32 0.0, %v5532
        %v5534 = vpop.f32.mrf.mxu0
        %v5535 = vadd.f32 0.0, %v5534
        %v5536 = vpop.f32.mrf.mxu0
        %v5537 = vadd.f32 0.0, %v5536
        %5538 = vmatprep.mubr.bf16.mxu0 %v5335
        %5539 = vmatmul.mubr.bf16.gmra.mxu0 %v5305
        %v5540 = vpop.f32.mrf.mxu0
        %v5541 = vadd.f32 0.0, %v5540
        %v5542 = vpop.f32.mrf.mxu0
        %v5543 = vadd.f32 0.0, %v5542
        %v5544 = vpop.f32.mrf.mxu0
        %v5545 = vadd.f32 0.0, %v5544
        %v5546 = vpop.f32.mrf.mxu0
        %v5547 = vadd.f32 0.0, %v5546
        %5548 = vmatprep.mubr.bf16.mxu0 %v5338
        %5549 = vmatmul.mubr.bf16.gmra.mxu0 %v5307
        %v5550 = vpop.f32.mrf.mxu0
        %v5551 = vadd.f32 0.0, %v5550
        %v5552 = vpop.f32.mrf.mxu0
        %v5553 = vadd.f32 0.0, %v5552
        %v5554 = vpop.f32.mrf.mxu0
        %v5555 = vadd.f32 0.0, %v5554
        %v5556 = vpop.f32.mrf.mxu0
        %v5557 = vadd.f32 0.0, %v5556
        %5558 = vmatprep.mubr.bf16.mxu0 %v5341
        %5559 = vmatmul.mubr.bf16.gmra.mxu0 %v5309
        %v5560 = vpop.f32.mrf.mxu0
        %v5561 = vadd.f32 0.0, %v5560
        %v5562 = vpop.f32.mrf.mxu0
        %v5563 = vadd.f32 0.0, %v5562
        %v5564 = vpop.f32.mrf.mxu0
        %v5565 = vadd.f32 0.0, %v5564
        %v5566 = vpop.f32.mrf.mxu0
        %v5567 = vadd.f32 0.0, %v5566
        %5568 = vdwg.mxu0
        %v5569 = vmax.f32 %v5378, 0.0
        %v5570 = vmax.f32 %v5380, 0.0
        %v5571 = vmax.f32 %v5491, 0.0
        %v5572 = vmax.f32 %v5493, 0.0
        %v5573 = vmax.f32 %v5382, 0.0
        %v5574 = vmax.f32 %v5384, 0.0
        %v5575 = vmax.f32 %v5495, 0.0
        %v5576 = vmax.f32 %v5497, 0.0
        %v5577 = vmax.f32 %v5388, 0.0
        %v5578 = vmax.f32 %v5390, 0.0
        %v5579 = vmax.f32 %v5501, 0.0
        %v5580 = vmax.f32 %v5503, 0.0
        %v5581 = vmax.f32 %v5392, 0.0
        %v5582 = vmax.f32 %v5394, 0.0
        %v5583 = vmax.f32 %v5505, 0.0
        %v5584 = vmax.f32 %v5507, 0.0
        %v5585 = vmax.f32 %v5398, 0.0
        %v5586 = vmax.f32 %v5400, 0.0
        %v5587 = vmax.f32 %v5511, 0.0
        %v5588 = vmax.f32 %v5513, 0.0
        %v5589 = vmax.f32 %v5402, 0.0
        %v5590 = vmax.f32 %v5404, 0.0
        %v5591 = vmax.f32 %v5515, 0.0
        %v5592 = vmax.f32 %v5517, 0.0
        %v5593 = vmax.f32 %v5408, 0.0
        %v5594 = vmax.f32 %v5410, 0.0
        %v5595 = vmax.f32 %v5521, 0.0
        %v5596 = vmax.f32 %v5523, 0.0
        %v5597 = vmax.f32 %v5412, 0.0
        %v5598 = vmax.f32 %v5414, 0.0
        %v5599 = vmax.f32 %v5525, 0.0
        %v5600 = vmax.f32 %v5527, 0.0
        %v5601 = vmax.f32 %v5418, 0.0
        %v5602 = vmax.f32 %v5420, 0.0
        %v5603 = vmax.f32 %v5531, 0.0
        %v5604 = vmax.f32 %v5533, 0.0
        %v5605 = vmax.f32 %v5422, 0.0
        %v5606 = vmax.f32 %v5424, 0.0
        %v5607 = vmax.f32 %v5535, 0.0
        %v5608 = vmax.f32 %v5537, 0.0
        %v5609 = vmax.f32 %v5428, 0.0
        %v5610 = vmax.f32 %v5430, 0.0
        %v5611 = vmax.f32 %v5541, 0.0
        %v5612 = vmax.f32 %v5543, 0.0
        %v5613 = vmax.f32 %v5432, 0.0
        %v5614 = vmax.f32 %v5434, 0.0
        %v5615 = vmax.f32 %v5545, 0.0
        %v5616 = vmax.f32 %v5547, 0.0
        %v5617 = vmax.f32 %v5438, 0.0
        %v5618 = vmax.f32 %v5440, 0.0
        %v5619 = vmax.f32 %v5551, 0.0
        %v5620 = vmax.f32 %v5553, 0.0
        %v5621 = vmax.f32 %v5442, 0.0
        %v5622 = vmax.f32 %v5444, 0.0
        %v5623 = vmax.f32 %v5555, 0.0
        %v5624 = vmax.f32 %v5557, 0.0
        %v5625 = vmax.f32 %v5448, 0.0
        %v5626 = vmax.f32 %v5450, 0.0
        %v5627 = vmax.f32 %v5561, 0.0
        %v5628 = vmax.f32 %v5563, 0.0
        %v5629 = vmax.f32 %v5452, 0.0
        %v5630 = vmax.f32 %v5454, 0.0
        %v5631 = vmax.f32 %v5565, 0.0
        %v5632 = vmax.f32 %v5567, 0.0
        %v5633 = vpack.c.bf16 %v5573, %v5569
        %v5634 = vpack.c.bf16 %v5574, %v5570
        %v5635 = vpack.c.bf16 %v5575, %v5571
        %v5636 = vpack.c.bf16 %v5576, %v5572
        %v5637 = vpack.c.bf16 %v5581, %v5577
        %v5638 = vpack.c.bf16 %v5582, %v5578
        %v5639 = vpack.c.bf16 %v5583, %v5579
        %v5640 = vpack.c.bf16 %v5584, %v5580
        %v5641 = vpack.c.bf16 %v5589, %v5585
        %v5642 = vpack.c.bf16 %v5590, %v5586
        %v5643 = vpack.c.bf16 %v5591, %v5587
        %v5644 = vpack.c.bf16 %v5592, %v5588
        %v5645 = vpack.c.bf16 %v5597, %v5593
        %v5646 = vpack.c.bf16 %v5598, %v5594
        %v5647 = vpack.c.bf16 %v5599, %v5595
        %v5648 = vpack.c.bf16 %v5600, %v5596
        %v5649 = vpack.c.bf16 %v5605, %v5601
        %v5650 = vpack.c.bf16 %v5606, %v5602
        %v5651 = vpack.c.bf16 %v5607, %v5603
        %v5652 = vpack.c.bf16 %v5608, %v5604
        %v5653 = vpack.c.bf16 %v5613, %v5609
        %v5654 = vpack.c.bf16 %v5614, %v5610
        %v5655 = vpack.c.bf16 %v5615, %v5611
        %v5656 = vpack.c.bf16 %v5616, %v5612
        %v5657 = vpack.c.bf16 %v5621, %v5617
        %v5658 = vpack.c.bf16 %v5622, %v5618
        %v5659 = vpack.c.bf16 %v5623, %v5619
        %v5660 = vpack.c.bf16 %v5624, %v5620
        %v5661 = vpack.c.bf16 %v5629, %v5625
        %v5662 = vpack.c.bf16 %v5630, %v5626
        %v5663 = vpack.c.bf16 %v5631, %v5627
        %v5664 = vpack.c.bf16 %v5632, %v5628
        %v5665 = vld [vmem:[%s4] sm:$0xff]
        %v5666 = vld [vmem:[%s4 + $0x8] sm:$0xff]
        %v5667 = vld [vmem:[%s4 + $0x10] sm:$0xff]
        %v5668 = vld [vmem:[%s4 + $0x18] sm:$0xff]
        %v5673 = vunpack.c.l.b16 %v5665
        %v5674 = vunpack.c.h.b16 %v5665
        %v5675 = vunpack.c.l.b16 %v5666
        %v5676 = vunpack.c.h.b16 %v5666
        %v5677 = vunpack.c.l.b16 %v5667
        %v5678 = vunpack.c.h.b16 %v5667
        %v5679 = vunpack.c.l.b16 %v5668
        %v5680 = vunpack.c.h.b16 %v5668
        %v5681 = vpack.c.b16 %v5675, %v5673
        %v5682 = vpack.c.b16 %v5676, %v5674
        %v5683 = vpack.c.b16 %v5679, %v5677
        %v5684 = vpack.c.b16 %v5680, %v5678
        %vm5687 = vcmask 64512
        %v5689 = vsel %vm5687, %v5682, 0
        %v5692 = vsel %vm5687, %v5684, 0
        %5694 = vmatprep.subr.bf16.mxu0 %v5662
        %5695 = vmatpush1.bf16.msra.mxu0 %v5661
        %5696 = vmatprep.subr.bf16.mxu0 %v5658
        %5697 = vmatpush1.bf16.msra.mxu0 %v5657
        %5698 = vmatprep.subr.bf16.mxu0 %v5654
        %5699 = vmatpush1.bf16.msra.mxu0 %v5653
        %5700 = vmatprep.subr.bf16.mxu0 %v5650
        %5701 = vmatpush1.bf16.msra.mxu0 %v5649
        %5702 = vmatprep.subr.bf16.mxu0 %v5646
        %5703 = vmatpush1.bf16.msra.mxu0 %v5645
        %5704 = vmatprep.subr.bf16.mxu0 %v5642
        %5705 = vmatpush1.bf16.msra.mxu0 %v5641
        %5706 = vmatprep.subr.bf16.mxu0 %v5638
        %5707 = vmatpush1.bf16.msra.mxu0 %v5637
        %5708 = vmatprep.subr.bf16.mxu0 %v5634
        %5709 = vmatpush1.bf16.msra.mxu0 %v5633
        %5710 = vmatprep.subr.bf16.mxu0 0
        %5711 = vmatpush2.bf16.msra.mxu0 0
        %5712 = vmatprep.subr.bf16.mxu0 0
        %5713 = vmatpush2.bf16.msra.mxu0 0
        %5714 = vmatprep.subr.bf16.mxu0 0
        %5715 = vmatpush2.bf16.msra.mxu0 0
        %5716 = vmatprep.subr.bf16.mxu0 0
        %5717 = vmatpush2.bf16.msra.mxu0 0
        %5718 = vmatprep.subr.bf16.mxu0 0
        %5719 = vmatpush2.bf16.msra.mxu0 0
        %5720 = vmatprep.subr.bf16.mxu0 0
        %5721 = vmatpush2.bf16.msra.mxu0 0
        %5722 = vmatprep.subr.bf16.mxu0 0
        %5723 = vmatpush2.bf16.msra.mxu0 0
        %5724 = vmatprep.subr.bf16.mxu0 %v1691
        %5725 = vmatpush2.bf16.msra.mxu0 %v1691
        %5726 = vmatprep.mubr.bf16.mxu0 %v5689
        %5727 = vmatmul.mubr.bf16.gmra.mxu0 %v5681
        %v5728 = vpop.f32.mrf.mxu0
        %v5729 = vadd.f32 0.0, %v5728
        %v5730 = vpop.f32.mrf.mxu0
        %v5731 = vadd.f32 0.0, %v5730
        %v5732 = vpop.f32.mrf.mxu0
        %v5733 = vadd.f32 0.0, %v5732
        %v5734 = vpop.f32.mrf.mxu0
        %v5735 = vadd.f32 0.0, %v5734
        %5736 = vmatprep.mubr.bf16.mxu0 %v5692
        %5737 = vmatmul.mubr.bf16.gmra.mxu0 %v5683
        %v5738 = vpop.f32.mrf.mxu0
        %v5739 = vadd.f32 0.0, %v5738
        %v5740 = vpop.f32.mrf.mxu0
        %v5741 = vadd.f32 0.0, %v5740
        %v5742 = vpop.f32.mrf.mxu0
        %v5743 = vadd.f32 0.0, %v5742
        %v5744 = vpop.f32.mrf.mxu0
        %v5745 = vadd.f32 0.0, %v5744
        %5746 = vdwg.mxu0
        %5747 = vmatprep.subr.bf16.mxu0 %v5664
        %5748 = vmatpush1.bf16.msra.mxu0 %v5663
        %5749 = vmatprep.subr.bf16.mxu0 %v5660
        %5750 = vmatpush1.bf16.msra.mxu0 %v5659
        %5751 = vmatprep.subr.bf16.mxu0 %v5656
        %5752 = vmatpush1.bf16.msra.mxu0 %v5655
        %5753 = vmatprep.subr.bf16.mxu0 %v5652
        %5754 = vmatpush1.bf16.msra.mxu0 %v5651
        %5755 = vmatprep.subr.bf16.mxu0 %v5648
        %5756 = vmatpush1.bf16.msra.mxu0 %v5647
        %5757 = vmatprep.subr.bf16.mxu0 %v5644
        %5758 = vmatpush1.bf16.msra.mxu0 %v5643
        %5759 = vmatprep.subr.bf16.mxu0 %v5640
        %5760 = vmatpush1.bf16.msra.mxu0 %v5639
        %5761 = vmatprep.subr.bf16.mxu0 %v5636
        %5762 = vmatpush1.bf16.msra.mxu0 %v5635
        %5763 = vmatprep.subr.bf16.mxu0 0
        %5764 = vmatpush2.bf16.msra.mxu0 0
        %5765 = vmatprep.subr.bf16.mxu0 0
        %5766 = vmatpush2.bf16.msra.mxu0 0
        %5767 = vmatprep.subr.bf16.mxu0 0
        %5768 = vmatpush2.bf16.msra.mxu0 0
        %5769 = vmatprep.subr.bf16.mxu0 0
        %5770 = vmatpush2.bf16.msra.mxu0 0
        %5771 = vmatprep.subr.bf16.mxu0 0
        %5772 = vmatpush2.bf16.msra.mxu0 0
        %5773 = vmatprep.subr.bf16.mxu0 0
        %5774 = vmatpush2.bf16.msra.mxu0 0
        %5775 = vmatprep.subr.bf16.mxu0 0
        %5776 = vmatpush2.bf16.msra.mxu0 0
        %5777 = vmatprep.subr.bf16.mxu0 %v1691
        %5778 = vmatpush2.bf16.msra.mxu0 %v1691
        %5779 = vmatprep.mubr.bf16.mxu0 %v5689
        %5780 = vmatmul.mubr.bf16.gmra.mxu0 %v5681
        %v5781 = vpop.f32.mrf.mxu0
        %v5782 = vadd.f32 0.0, %v5781
        %v5783 = vpop.f32.mrf.mxu0
        %v5784 = vadd.f32 0.0, %v5783
        %v5785 = vpop.f32.mrf.mxu0
        %v5786 = vadd.f32 0.0, %v5785
        %v5787 = vpop.f32.mrf.mxu0
        %v5788 = vadd.f32 0.0, %v5787
        %5789 = vmatprep.mubr.bf16.mxu0 %v5692
        %5790 = vmatmul.mubr.bf16.gmra.mxu0 %v5683
        %v5791 = vpop.f32.mrf.mxu0
        %v5792 = vadd.f32 0.0, %v5791
        %v5793 = vpop.f32.mrf.mxu0
        %v5794 = vadd.f32 0.0, %v5793
        %v5795 = vpop.f32.mrf.mxu0
        %v5796 = vadd.f32 0.0, %v5795
        %v5797 = vpop.f32.mrf.mxu0
        %v5798 = vadd.f32 0.0, %v5797
        %5799 = vdwg.mxu0
        %v5800 = vmul.f32 %v5729, %v5739
        %v5801 = vmul.f32 %v5731, %v5741
        %v5802 = vmul.f32 %v5782, %v5792
        %v5803 = vmul.f32 %v5784, %v5794
        %v5804 = vmul.f32 %v5733, %v5743
        %v5805 = vmul.f32 %v5735, %v5745
        %v5806 = vmul.f32 %v5786, %v5796
        %v5807 = vmul.f32 %v5788, %v5798
        %v5808 = vpack.c.bf16 %v5804, %v5800
        %v5809 = vpack.c.bf16 %v5805, %v5801
        %v5810 = vpack.c.bf16 %v5806, %v5802
        %v5811 = vpack.c.bf16 %v5807, %v5803
        %v5812 = vld [vmem:[%s5] sm:$0x3]
        %v5817 = vrot.slane %v5733, 4
        %v5818 = vrot.slane %v5735, 4
        %v5819 = vrot.slane %v5786, 4
        %v5820 = vrot.slane %v5788, 4
        %vm5825 = vcmask 97280
        %v5827 = vsel %vm5825, %v5812, 0
        %v5830 = vsel %vm552, %v5808, 0
        %v5833 = vsel %vm552, %v5809, 0
        %v5836 = vsel %vm552, %v5810, 0
        %v5839 = vsel %vm552, %v5811, 0
        %5841 = vmatprep.subr.bf16.mxu0 0
        %5842 = vmatpush1.bf16.msra.mxu0 0
        %5843 = vmatprep.subr.bf16.mxu0 0
        %5844 = vmatpush1.bf16.msra.mxu0 0
        %5845 = vmatprep.subr.bf16.mxu0 0
        %5846 = vmatpush1.bf16.msra.mxu0 0
        %5847 = vmatprep.subr.bf16.mxu0 0
        %5848 = vmatpush1.bf16.msra.mxu0 0
        %5849 = vmatprep.subr.bf16.mxu0 0
        %5850 = vmatpush1.bf16.msra.mxu0 0
        %5851 = vmatprep.subr.bf16.mxu0 0
        %5852 = vmatpush1.bf16.msra.mxu0 0
        %5853 = vmatprep.subr.bf16.mxu0 0
        %5854 = vmatpush1.bf16.msra.mxu0 0
        %5855 = vmatprep.subr.bf16.mxu0 %v5833
        %5856 = vmatpush1.bf16.msra.mxu0 %v5830
        %5857 = vmatprep.subr.bf16.mxu0 0
        %5858 = vmatpush2.bf16.msra.mxu0 0
        %5859 = vmatprep.subr.bf16.mxu0 0
        %5860 = vmatpush2.bf16.msra.mxu0 0
        %5861 = vmatprep.subr.bf16.mxu0 0
        %5862 = vmatpush2.bf16.msra.mxu0 0
        %5863 = vmatprep.subr.bf16.mxu0 0
        %5864 = vmatpush2.bf16.msra.mxu0 0
        %5865 = vmatprep.subr.bf16.mxu0 0
        %5866 = vmatpush2.bf16.msra.mxu0 0
        %5867 = vmatprep.subr.bf16.mxu0 0
        %5868 = vmatpush2.bf16.msra.mxu0 0
        %5869 = vmatprep.subr.bf16.mxu0 0
        %5870 = vmatpush2.bf16.msra.mxu0 0
        %5871 = vmatprep.subr.bf16.mxu0 0
        %5872 = vmatpush2.bf16.msra.mxu0 0
        %5873 = vmatprep.mubr.bf16.mxu0 0
        %5874 = vmatmul.mubr.bf16.gmra.mxu0 %v5827
        %v5875 = vpop.f32.mrf.mxu0
        %v5876 = vadd.f32 %v5817, %v5875
        %v5877 = vpop.f32.mrf.mxu0
        %v5878 = vadd.f32 %v5818, %v5877
        %v5879 = vpop.f32.mrf.mxu0
        %v5880 = vpop.f32.mrf.mxu0
        %5881 = vdwg.mxu0
        %5882 = vmatprep.subr.bf16.mxu0 0
        %5883 = vmatpush1.bf16.msra.mxu0 0
        %5884 = vmatprep.subr.bf16.mxu0 0
        %5885 = vmatpush1.bf16.msra.mxu0 0
        %5886 = vmatprep.subr.bf16.mxu0 0
        %5887 = vmatpush1.bf16.msra.mxu0 0
        %5888 = vmatprep.subr.bf16.mxu0 0
        %5889 = vmatpush1.bf16.msra.mxu0 0
        %5890 = vmatprep.subr.bf16.mxu0 0
        %5891 = vmatpush1.bf16.msra.mxu0 0
        %5892 = vmatprep.subr.bf16.mxu0 0
        %5893 = vmatpush1.bf16.msra.mxu0 0
        %5894 = vmatprep.subr.bf16.mxu0 0
        %5895 = vmatpush1.bf16.msra.mxu0 0
        %5896 = vmatprep.subr.bf16.mxu0 %v5839
        %5897 = vmatpush1.bf16.msra.mxu0 %v5836
        %5898 = vmatprep.subr.bf16.mxu0 0
        %5899 = vmatpush2.bf16.msra.mxu0 0
        %5900 = vmatprep.subr.bf16.mxu0 0
        %5901 = vmatpush2.bf16.msra.mxu0 0
        %5902 = vmatprep.subr.bf16.mxu0 0
        %5903 = vmatpush2.bf16.msra.mxu0 0
        %5904 = vmatprep.subr.bf16.mxu0 0
        %5905 = vmatpush2.bf16.msra.mxu0 0
        %5906 = vmatprep.subr.bf16.mxu0 0
        %5907 = vmatpush2.bf16.msra.mxu0 0
        %5908 = vmatprep.subr.bf16.mxu0 0
        %5909 = vmatpush2.bf16.msra.mxu0 0
        %5910 = vmatprep.subr.bf16.mxu0 0
        %5911 = vmatpush2.bf16.msra.mxu0 0
        %5912 = vmatprep.subr.bf16.mxu0 0
        %5913 = vmatpush2.bf16.msra.mxu0 0
        %5914 = vmatprep.mubr.bf16.mxu0 0
        %5915 = vmatmul.mubr.bf16.gmra.mxu0 %v5827
        %v5916 = vpop.f32.mrf.mxu0
        %v5917 = vadd.f32 %v5819, %v5916
        %v5918 = vpop.f32.mrf.mxu0
        %v5919 = vadd.f32 %v5820, %v5918
        %v5920 = vpop.f32.mrf.mxu0
        %v5921 = vpop.f32.mrf.mxu0
        %5922 = vdwg.mxu0
        %v5923 = vxor.u32 %v5876, 2147483648
        %v5924 = vxor.u32 %v5878, 2147483648
        %v5925 = vxor.u32 %v5917, 2147483648
        %v5926 = vxor.u32 %v5919, 2147483648
        %v5927 = vmul.f32 %v5923, 1.442695
        %v5928 = vpow.pop %v5927
        %v5929 = vmul.f32 %v5924, 1.442695
        %v5930 = vpow.pop %v5929
        %v5931 = vmul.f32 %v5925, 1.442695
        %v5932 = vpow.pop %v5931
        %v5933 = vmul.f32 %v5926, 1.442695
        %v5934 = vpow.pop %v5933
        %v5935 = vadd.f32 %v5928, 1.0
        %v5936 = vadd.f32 %v5930, 1.0
        %v5937 = vadd.f32 %v5932, 1.0
        %v5938 = vadd.f32 %v5934, 1.0
        %v5939 = vrcp.pop %v5935
        %v5940 = vmul.f32 1.0, %v5939
        %v5941 = vrcp.pop %v5936
        %v5942 = vmul.f32 1.0, %v5941
        %v5943 = vrcp.pop %v5937
        %v5944 = vmul.f32 1.0, %v5943
        %v5945 = vrcp.pop %v5938
        %v5946 = vmul.f32 1.0, %v5945
        %v5951 = vcombine.low %v5940, %v5942
        %v5952 = vcombine.low %v5944, %v5946
        %5955 = vst [vmem:[%s245] sm:$0x77] %v5951
        %5956 = vst [vmem:[%s245 + $0x8] sm:$0x77] %v5952
        %s5957 = sand.u32 %s159, 1
        %s5958 = scalar_lea.sflag [#allocation3], %s5957
        %s5959 = sand.u32 %s159, 1
        %s5960 = smul.addr %s5959, 16
        %s5961 = scalar_lea.vmem [#allocation2], %s5960
        // Predicated region
        $region45: #{tpu_custom_call.1} parent=43 // pred_check
          %p5962 = pneg %p169
        $region46: #{tpu_custom_call.1} parent=43 // pred_check_branch
          %5964 = sbr.rel (%p5962) target = $region48
        $region47: #{tpu_custom_call.1} parent=43 // pred_region
          %s5965 = smul.u32 4, %s20
          %s5967 = ssub.s32 256, 256
          %5968 = vsyncadd %s5958, %s5967
          %s5969 = smul.addr %s5965, 64
          %s5970 = scalar_lea.hbm %s6, %s5969
          %s5972 = sshll.u32 %s5961, 4
          %s5973 = int_to_ptr.vmem [resolvable:$true] %s5972
          %5975 = dma.vmem_to_hbm [thread:$0]  %s5973, 256, %s5970, %s5958
        $region48: #{tpu_custom_call.1} parent=43 // pred_fallthru
          _
      $region44: #{tpu_custom_call.1} parent=5 // pred_fallthru
        _
      %p5976 = scmp.le.s32.totalorder 2, %s15
      // Predicated region
      $region49: #{tpu_custom_call.1} parent=5 // pred_check
        %p5977 = pneg %p5976
      $region50: #{tpu_custom_call.1} parent=5 // pred_check_branch
        %5979 = sbr.rel (%p5977) target = $region52
      $region51: #{tpu_custom_call.1} parent=5 // pred_region
        %s5980 = ssub.s32 %s15, 2
        // Predicated region
        $region53: #{tpu_custom_call.1} parent=51 // pred_check
          %p5981 = pneg %p175
        $region54: #{tpu_custom_call.1} parent=51 // pred_check_branch
          %5983 = sbr.rel (%p5981) target = $region56
        $region55: #{tpu_custom_call.1} parent=51 // pred_region
          %s5984 = sand.u32 %s160, 1
          %s5985 = scalar_lea.sflag [#allocation3], %s5984
          %s5986 = sand.u32 %s160, 1
          %s5987 = smul.addr %s5986, 16
          %s5988 = scalar_lea.vmem [#allocation2], %s5987
          %5989 = dma.done %s5985, 256
        $region56: #{tpu_custom_call.1} parent=51 // pred_fallthru
          _
      $region52: #{tpu_custom_call.1} parent=5 // pred_fallthru
        _
    $region6: #{tpu_custom_call.1} parent=1 // loop_footer
      %s19 = sadd.s32 1, %s15
    $region7: #{tpu_custom_call.1} parent=1 // loop_footer_branch
      %14 = sbr.rel target = $region3
    $region8: #{tpu_custom_call.1} parent=1 // loop_exit
      _
    %5990 = vsyncpa [#allocation3], 1
    %s5991 = scalar_lea.sflag [#allocation3], 1
    %5992 = vsyncpa %s5991, 1

</llo_original>
